<compile_context>
chip_gen: v7x
topology: tpu7x:2x2x1
jax: 0.10.0
libtpu: 0.0.40
codegen_flags: <defaults>
</compile_context>

<pallas_src>
import numpy as np
import jax
import jax.numpy as jnp
from jax.experimental import pallas as pl
from jax.experimental.pallas import tpu as pltpu


def _round_up(n, m):
    return ((n + m - 1) // m) * m


# ----------------------------------------------------------------------------
# Pallas kernel (factory closes over the static dims).
# ----------------------------------------------------------------------------
def _make_kernel(L, Mp, C, O):
    LMp = L * Mp

    def kernel(x_ref, afT_ref, wc_ref, biTr_ref, biTi_ref,
               bias_ref, skw_ref, skb_ref, out_ref):
        xb = x_ref[...]              # (HW, C)       bf16  residual / input
        afT = afT_ref[...]           # (2*LMp, HW)   bf16  forward SHT, real|imag rows
        wc = wc_ref[...]             # (L, 2C, 2O)   bf16  fused complex spectral weight
        biTr = biTr_ref[...]         # (HW, LMp)     bf16  inverse SHT, real part
        biTi = biTi_ref[...]         # (HW, LMp)     bf16  inverse SHT, imag part
        bias = bias_ref[...]         # (1, O)        f32   SphericalConv bias
        skw = skw_ref[...]           # (C, O + C)    bf16  inner|outer 1x1 skips stacked
        skb = skb_ref[...]           # (1, O + C)    f32

        # ---- forward SHT: (rfft over lon) o (latitude contraction), composed;
        #      real & imag fused into ONE MXU matmul ---------------------------
        cf = jnp.dot(afT, xb, preferred_element_type=jnp.float32)   # (2*LMp, C) f32
        cf16 = cf.astype(jnp.bfloat16)                              # single cast
        cr = cf16[:LMp].reshape(L, Mp, C)
        ci = cf16[LMp:].reshape(L, Mp, C)
        # stack real|imag along channels -> contraction dim 2C
        c_cat = jnp.concatenate([cr, ci], axis=-1)                  # (L, Mp, 2C) bf16

        # ---- contract_dhconv: per-degree complex channel mix as ONE batched
        #      dot_general over l (weights pre-arranged as [[wr,wi],[-wi,wr]]) --
        oc = jnp.einsum('lmk,lko->lmo', c_cat, wc,
                        preferred_element_type=jnp.float32)          # (L, Mp, 2O) f32

        # real / imag halves (lane-aligned slices at realistic O multiples of 128)
        o_r = oc[..., :O].reshape(LMp, O).astype(jnp.bfloat16)       # (LMp, O)
        o_i = oc[..., O:].reshape(LMp, O).astype(jnp.bfloat16)

        # ---- inverse SHT: two accumulating MXU dots (no concat copy) ---------
        y = (jnp.dot(biTr, o_r, preferred_element_type=jnp.float32)
             + jnp.dot(biTi, o_i, preferred_element_type=jnp.float32))  # (HW, O) f32
        y = y + bias

        # ---- stacked 1x1-conv skips: one (HW, C) @ (C, O + C) matmul ---------
        sk = jnp.dot(xb, skw, preferred_element_type=jnp.float32) + skb
        y = y + sk[:, :O]                     # inner skip
        # exact erf GELU (matches nn.GELU() default)
        y = 0.5 * y * (1.0 + jax.lax.erf(y * 0.7071067811865476))
        y = y + sk[:, O:]                     # outer skip (valid because O == C)

        out_ref[...] = y.astype(out_ref.dtype)

    return kernel


def sfno_block_pallas(x_hwc, p):
    """x_hwc: (B, H*W, C) float32, channels-last / spatially flattened."""
    B, HW, C = x_hwc.shape
    L, twoC, twoO = p["wc"].shape
    O = twoO // 2
    assert twoC == 2 * C
    # use_outer_skip=True adds the (C->C) outer skip to the (C->O) branch output:
    assert O == C, "use_outer_skip=True requires output_dim == input_dim"
    Mp = p["Mp"]
    LMp = L * Mp

    kernel = _make_kernel(L, Mp, C, O)

    # cast once on the XLA side: the kernel only uses x as a bf16 matmul operand
    x_bf16 = x_hwc.astype(jnp.bfloat16)

    # grid-invariant operand: same (whole-array) block for every grid step
    def inv(shape):
        nd = len(shape)
        return pl.BlockSpec(shape, lambda b, _nd=nd: (0,) * _nd)

    # explicit VMEM budget: double-buffered per-step activations + (double-
    # buffered) invariant operators + headroom for f32 temporaries.
    op_bytes = (
        2 * (HW * C * 2 + HW * O * 4)                    # x block (bf16) + out block (f32)
        + 2 * (2 * LMp * HW * 2                          # afT
               + 2 * HW * LMp * 2                        # biT_r + biT_i
               + L * (2 * C) * (2 * O) * 2               # wc
               + C * (O + C) * 2                         # skw
               + (O + (O + C)) * 4))                     # biases
    vmem_limit = int(min(64 * 1024 * 1024, op_bytes + (8 << 20)))

    return pl.pallas_call(
        kernel,
        out_shape=jax.ShapeDtypeStruct((B, HW, O), jnp.float32),
        grid=(B,),
        in_specs=[
            pl.BlockSpec((None, HW, C), lambda b: (b, 0, 0)),   # x, one batch elem/step
            inv((2 * LMp, HW)),                                 # afT   (bf16)
            inv((L, 2 * C, 2 * O)),                             # wc    (bf16)
            inv((HW, LMp)),                                     # biT_r (bf16)
            inv((HW, LMp)),                                     # biT_i (bf16)
            inv((1, O)),                                        # filter bias
            inv((C, O + C)),                                    # stacked skip weights
            inv((1, O + C)),                                    # stacked skip biases
        ],
        out_specs=pl.BlockSpec((None, HW, O), lambda b: (b, 0, 0)),
        compiler_params=pltpu.CompilerParams(
            dimension_semantics=("parallel",),
            vmem_limit_bytes=vmem_limit),
    )(x_bf16, p["afT"], p["wc"], p["biT_r"], p["biT_i"],
      p["bias2"], p["skw"], p["skb"])


# ----------------------------------------------------------------------------
# Deterministic parameter / transform construction (host-side numpy/JAX glue).
# ----------------------------------------------------------------------------
def build_params(key, *, C, O, H, W):
    assert O == C, "use_outer_skip=True requires output_dim == input_dim (as in the PyTorch module)"
    assert W % 2 == 0, "Hermitian fold below assumes even W (Nyquist counted once)"
    M = W // 2 + 1          # mmax
    L = H                   # lmax
    Mp = _round_up(M, 8)    # pad order axis to a sublane multiple (zero cols -> no-op)
    gain = 1.0

    # --- longitude transforms: exact rfft / irfft matrices (norm="forward") ---
    w_idx = np.arange(W)[:, None]
    m_idx = np.arange(M)[None, :]
    ang = 2.0 * np.pi * w_idx * m_idx / W
    dft_r = np.cos(ang) * (2.0 * np.pi / W)      # torch_harmonics: 2*pi*rfft(norm="forward")
    dft_i = -np.sin(ang) * (2.0 * np.pi / W)
    mult = np.ones(M)
    mult[1:M - 1] = 2.0                          # Hermitian fold; W even -> Nyquist counted once
    ang2 = 2.0 * np.pi * np.arange(M)[:, None] * np.arange(W)[None, :] / W
    idft_r = np.cos(ang2) * mult[:, None]        # irfft, norm="forward" (no 1/N on inverse)
    idft_i = -np.sin(ang2) * mult[:, None]

    # --- latitude ("Legendre") contraction: synthetic deterministic basis ---
    theta = np.pi * (np.arange(H) + 0.5) / H
    quad = (np.pi / H) * np.sin(theta)           # quadrature weights
    basis = np.cos(np.pi * np.arange(L)[:, None] * (np.arange(H)[None, :] + 0.5) / H)
    basis = basis * np.sqrt(2.0 / H)
    basis[0] /= np.sqrt(2.0)
    legf = np.einsum('lh,h,m->mlh', basis, quad, np.ones(M))    # (M, L, H) forward
    legi = np.einsum('lh,m->mlh', basis, np.ones(M))            # (M, L, H) inverse

    # --- composed, transposed & M-padded operators used by the kernel ---
    afT_r = np.zeros((L, Mp, H * W))
    afT_i = np.zeros((L, Mp, H * W))
    afT_r[:, :M] = np.einsum('wm,mlh->lmhw', dft_r, legf).reshape(L, M, H * W)
    afT_i[:, :M] = np.einsum('wm,mlh->lmhw', dft_i, legf).reshape(L, M, H * W)
    afT = np.concatenate([afT_r.reshape(L * Mp, H * W),
                          afT_i.reshape(L * Mp, H * W)], axis=0)    # (2*L*Mp, HW)

    biT_r = np.zeros((H * W, L, Mp))
    biT_i = np.zeros((H * W, L, Mp))
    biT_r[:, :, :M] = np.einsum('mlh,mw->hwlm', legi, idft_r).reshape(H * W, L, M)
    biT_i[:, :, :M] = np.einsum('mlh,mw->hwlm', legi, idft_i).reshape(H * W, L, M)
    biT_r = biT_r.reshape(H * W, L * Mp)                            # (HW, L*Mp)
    biT_i = biT_i.reshape(H * W, L * Mp)

    # --- SphericalConv spectral weight: scale * randn complex, (O, C, L) ---
    k1, k2, k3, k4, k5 = jax.random.split(key, 5)
    scale = np.full((L,), np.sqrt(gain / C), np.float32)
    scale[0] *= np.sqrt(2.0)
    w_ri = jax.random.normal(k1, (O, C, L, 2), jnp.float32)
    wr = w_ri[..., 0] * scale
    wi = w_ri[..., 1] * scale

    bias = jnp.zeros((O,), jnp.float32)          # nn.Parameter(torch.zeros(1,O,1,1))

    # --- 1x1-conv skips ---
    isw = jax.random.normal(k2, (O, C), jnp.float32) * np.sqrt(gain / C)
    isb = jax.random.uniform(k3, (O,), jnp.float32,
                             -1.0 / np.sqrt(C), 1.0 / np.sqrt(C))
    osw = jax.random.normal(k4, (C, C), jnp.float32) * np.sqrt(0.5 / C)
    osb = jax.random.uniform(k5, (C,), jnp.float32,
                             -1.0 / np.sqrt(C), 1.0 / np.sqrt(C))

    f32 = lambda a: jnp.asarray(a, jnp.float32)
    bf16 = lambda a: jnp.asarray(a, jnp.bfloat16)

    raw = dict(dft_r=f32(dft_r), dft_i=f32(dft_i), idft_r=f32(idft_r),
               idft_i=f32(idft_i), legf=f32(legf), legi=f32(legi),
               wr=wr, wi=wi, bias=bias, isw=isw, isb=isb, osw=osw, osb=osb)

    # fused complex-mix weight: (L, 2C, 2O) = [[wrT, wiT], [-wiT, wrT]]
    #   o_r = cr @ wrT - ci @ wiT ;  o_i = cr @ wiT + ci @ wrT
    wrT = jnp.transpose(wr, (2, 1, 0))           # (L, C, O), contraction dim adjacent
    wiT = jnp.transpose(wi, (2, 1, 0))
    wc = jnp.concatenate(
        [jnp.concatenate([wrT, wiT], axis=2),
         jnp.concatenate([-wiT, wrT], axis=2)], axis=1)             # (L, 2C, 2O)

    packed = dict(
        Mp=Mp,
        afT=bf16(afT),                                     # (2*L*Mp, HW)
        biT_r=bf16(biT_r),                                 # (HW, L*Mp)
        biT_i=bf16(biT_i),                                 # (HW, L*Mp)
        wc=bf16(wc),                                       # (L, 2C, 2O)
        bias2=bias.reshape(1, O),
        skw=bf16(jnp.concatenate([isw.T, osw.T], axis=1)), # (C, O + C)
        skb=jnp.concatenate([isb, osb]).reshape(1, O + C),
    )
    return raw, packed


# ----------------------------------------------------------------------------
# Pure-JAX reference (un-composed, f32) for the correctness check.
# ----------------------------------------------------------------------------
def sfno_block_reference(x, r):
    residual = x
    xr = jnp.einsum('bchw,wm->bchm', x, r["dft_r"])
    xi = jnp.einsum('bchw,wm->bchm', x, r["dft_i"])
    cr = jnp.einsum('bchm,mlh->bclm', xr, r["legf"])
    ci = jnp.einsum('bchm,mlh->bclm', xi, r["legf"])
    o_r = (jnp.einsum('bclm,ocl->bolm', cr, r["wr"])
           - jnp.einsum('bclm,ocl->bolm', ci, r["wi"]))
    o_i = (jnp.einsum('bclm,ocl->bolm', cr, r["wi"])
           + jnp.einsum('bclm,ocl->bolm', ci, r["wr"]))
    gr = jnp.einsum('bolm,mlh->bohm', o_r, r["legi"])
    gi = jnp.einsum('bolm,mlh->bohm', o_i, r["legi"])
    y = (jnp.einsum('bohm,mw->bohw', gr, r["idft_r"])
         + jnp.einsum('bohm,mw->bohw', gi, r["idft_i"]))
    y = y + r["bias"].reshape(1, -1, 1, 1)
    y = y + jnp.einsum('oc,bchw->bohw', r["isw"], residual) + r["isb"].reshape(1, -1, 1, 1)
    y = 0.5 * y * (1.0 + jax.lax.erf(y / jnp.sqrt(2.0)))
    y = y + jnp.einsum('oc,bchw->bohw', r["osw"], residual) + r["osb"].reshape(1, -1, 1, 1)
    return y


if __name__ == "__main__":
    B, C, O, H, W = 2, 8, 8, 16, 16      # input NCHW = (2, 8, 16, 16)
    key = jax.random.PRNGKey(0)
    kx, kp = jax.random.split(key)
    x = jax.random.normal(kx, (B, C, H, W), jnp.float32)
    raw, packed = build_params(kp, C=C, O=O, H=H, W=W)

    # channels-last, spatially flattened view for the kernel
    x_hwc = jnp.transpose(x, (0, 2, 3, 1)).reshape(B, H * W, C)

    out = sfno_block_pallas(x_hwc, packed)            # (B, HW, O)
    out = jax.block_until_ready(out)
    out_nchw = jnp.transpose(out.reshape(B, H, W, O), (0, 3, 1, 2))

    ref = sfno_block_reference(x, raw)
    err = float(jnp.max(jnp.abs(out_nchw - ref)))
    scale = float(jnp.max(jnp.abs(ref)))
    # bf16 operands (f32 accumulation) on the MXU: allow ~3% of dynamic range
    if err > 3e-2 * max(1.0, scale):
        raise AssertionError(
            f"Pallas/reference mismatch: max abs err = {err}, ref scale = {scale}")
    print("KERNEL_OK")
</pallas_src>

<mosaic_0001>
module attributes {stable_mosaic.version = 11 : i64} {
  func.func @kernel(%arg0: i32, %arg1: memref<1x256x8xbf16, #tpu.memory_space<vmem>>, %arg2: memref<512x256xbf16, #tpu.memory_space<vmem>>, %arg3: memref<16x16x16xbf16, #tpu.memory_space<vmem>>, %arg4: memref<256x256xbf16, #tpu.memory_space<vmem>>, %arg5: memref<256x256xbf16, #tpu.memory_space<vmem>>, %arg6: memref<1x8xf32, #tpu.memory_space<vmem>>, %arg7: memref<8x16xbf16, #tpu.memory_space<vmem>>, %arg8: memref<1x16xf32, #tpu.memory_space<vmem>>, %arg9: memref<1x256x8xf32, #tpu.memory_space<vmem>>) attributes {dimension_semantics = [#tpu.dimension_semantics<parallel>], iteration_bounds = array<i64: 2>, scalar_prefetch = 0 : i64, scratch_operands = 0 : i64, tpu.core_type = #tpu.core_type<tc>, window_params = [{transform_indices = @transform_0, window_bounds = array<i64: 1, 256, 8>}, {pipeline_mode = #tpu.pipeline_mode<synchronous>, transform_indices = @transform_1, window_bounds = array<i64: 512, 256>}, {pipeline_mode = #tpu.pipeline_mode<synchronous>, transform_indices = @transform_2, window_bounds = array<i64: 16, 16, 16>}, {pipeline_mode = #tpu.pipeline_mode<synchronous>, transform_indices = @transform_3, window_bounds = array<i64: 256, 256>}, {pipeline_mode = #tpu.pipeline_mode<synchronous>, transform_indices = @transform_4, window_bounds = array<i64: 256, 256>}, {pipeline_mode = #tpu.pipeline_mode<synchronous>, transform_indices = @transform_5, window_bounds = array<i64: 1, 8>}, {pipeline_mode = #tpu.pipeline_mode<synchronous>, transform_indices = @transform_6, window_bounds = array<i64: 8, 16>}, {pipeline_mode = #tpu.pipeline_mode<synchronous>, transform_indices = @transform_7, window_bounds = array<i64: 1, 16>}, {transform_indices = @transform_8, window_bounds = array<i64: 1, 256, 8>}]} {
    %c0 = arith.constant 0 : index
    %c0_0 = arith.constant 0 : index
    %c0_1 = arith.constant 0 : index
    %0 = vector.load %arg1[%c0, %c0_0, %c0_1] : memref<1x256x8xbf16, #tpu.memory_space<vmem>>, vector<1x256x8xbf16>
    %1 = vector.shape_cast %0 : vector<1x256x8xbf16> to vector<256x8xbf16>
    %c0_2 = arith.constant 0 : index
    %c0_3 = arith.constant 0 : index
    %2 = vector.load %arg2[%c0_2, %c0_3] : memref<512x256xbf16, #tpu.memory_space<vmem>>, vector<512x256xbf16>
    %c0_4 = arith.constant 0 : index
    %c0_5 = arith.constant 0 : index
    %c0_6 = arith.constant 0 : index
    %3 = vector.load %arg3[%c0_4, %c0_5, %c0_6] : memref<16x16x16xbf16, #tpu.memory_space<vmem>>, vector<16x16x16xbf16>
    %c0_7 = arith.constant 0 : index
    %c0_8 = arith.constant 0 : index
    %4 = vector.load %arg4[%c0_7, %c0_8] : memref<256x256xbf16, #tpu.memory_space<vmem>>, vector<256x256xbf16>
    %c0_9 = arith.constant 0 : index
    %c0_10 = arith.constant 0 : index
    %5 = vector.load %arg5[%c0_9, %c0_10] : memref<256x256xbf16, #tpu.memory_space<vmem>>, vector<256x256xbf16>
    %c0_11 = arith.constant 0 : index
    %c0_12 = arith.constant 0 : index
    %6 = vector.load %arg6[%c0_11, %c0_12] : memref<1x8xf32, #tpu.memory_space<vmem>>, vector<1x8xf32>
    %c0_13 = arith.constant 0 : index
    %c0_14 = arith.constant 0 : index
    %7 = vector.load %arg7[%c0_13, %c0_14] : memref<8x16xbf16, #tpu.memory_space<vmem>>, vector<8x16xbf16>
    %c0_15 = arith.constant 0 : index
    %c0_16 = arith.constant 0 : index
    %8 = vector.load %arg8[%c0_15, %c0_16] : memref<1x16xf32, #tpu.memory_space<vmem>>, vector<1x16xf32>
    %cst = arith.constant dense<0.000000e+00> : vector<512x8xf32>
    %9 = tpu.matmul %2, %1, %cst {dimension_numbers = #tpu.dot_dimension_numbers<[1], [0], [0], [1], [0, 0, 1, 1], [], []>} : vector<512x256xbf16>, vector<256x8xbf16>, vector<512x8xf32> -> vector<512x8xf32>
    %10 = arith.truncf %9 : vector<512x8xf32> to vector<512x8xbf16>
    %11 = vector.extract_strided_slice %10 {offsets = [0, 0], sizes = [256, 8], strides = [1, 1]} : vector<512x8xbf16> to vector<256x8xbf16>
    %12 = vector.shape_cast %11 : vector<256x8xbf16> to vector<16x16x8xbf16>
    %13 = vector.extract_strided_slice %10 {offsets = [256, 0], sizes = [256, 8], strides = [1, 1]} : vector<512x8xbf16> to vector<256x8xbf16>
    %14 = vector.shape_cast %13 : vector<256x8xbf16> to vector<16x16x8xbf16>
    %15 = tpu.concatenate %12, %14 in 2 : vector<16x16x8xbf16>, vector<16x16x8xbf16> -> vector<16x16x16xbf16>
    "tpu.trace_start"() <{level = 10 : i32, message = "lmk,lko->lmo"}> : () -> ()
    %cst_17 = arith.constant dense<0.000000e+00> : vector<16x16x16xf32>
    %16 = tpu.matmul %15, %3, %cst_17 {dimension_numbers = #tpu.dot_dimension_numbers<[2], [1], [1], [2], [0, 0, 0, 1, 1, 2], [0], [0]>} : vector<16x16x16xbf16>, vector<16x16x16xbf16>, vector<16x16x16xf32> -> vector<16x16x16xf32>
    "tpu.trace_stop"() : () -> ()
    %17 = vector.extract_strided_slice %16 {offsets = [0, 0, 0], sizes = [16, 16, 8], strides = [1, 1, 1]} : vector<16x16x16xf32> to vector<16x16x8xf32>
    %18 = vector.shape_cast %17 : vector<16x16x8xf32> to vector<256x8xf32>
    %19 = arith.truncf %18 : vector<256x8xf32> to vector<256x8xbf16>
    %20 = vector.extract_strided_slice %16 {offsets = [0, 0, 8], sizes = [16, 16, 8], strides = [1, 1, 1]} : vector<16x16x16xf32> to vector<16x16x8xf32>
    %21 = vector.shape_cast %20 : vector<16x16x8xf32> to vector<256x8xf32>
    %22 = arith.truncf %21 : vector<256x8xf32> to vector<256x8xbf16>
    %cst_18 = arith.constant dense<0.000000e+00> : vector<256x8xf32>
    %23 = tpu.matmul %4, %19, %cst_18 {dimension_numbers = #tpu.dot_dimension_numbers<[1], [0], [0], [1], [0, 0, 1, 1], [], []>} : vector<256x256xbf16>, vector<256x8xbf16>, vector<256x8xf32> -> vector<256x8xf32>
    %cst_19 = arith.constant dense<0.000000e+00> : vector<256x8xf32>
    %24 = tpu.matmul %5, %22, %cst_19 {dimension_numbers = #tpu.dot_dimension_numbers<[1], [0], [0], [1], [0, 0, 1, 1], [], []>} : vector<256x256xbf16>, vector<256x8xbf16>, vector<256x8xf32> -> vector<256x8xf32>
    %25 = arith.addf %23, %24 : vector<256x8xf32>
    %26 = vector.broadcast %6 : vector<1x8xf32> to vector<256x8xf32>
    %27 = arith.addf %25, %26 : vector<256x8xf32>
    %cst_20 = arith.constant dense<0.000000e+00> : vector<256x16xf32>
    %28 = tpu.matmul %1, %7, %cst_20 {dimension_numbers = #tpu.dot_dimension_numbers<[1], [0], [0], [1], [0, 0, 1, 1], [], []>} : vector<256x8xbf16>, vector<8x16xbf16>, vector<256x16xf32> -> vector<256x16xf32>
    %29 = vector.broadcast %8 : vector<1x16xf32> to vector<256x16xf32>
    %30 = arith.addf %28, %29 : vector<256x16xf32>
    %31 = vector.extract_strided_slice %30 {offsets = [0, 0], sizes = [256, 8], strides = [1, 1]} : vector<256x16xf32> to vector<256x8xf32>
    %32 = arith.addf %27, %31 : vector<256x8xf32>
    %cst_21 = arith.constant 5.000000e-01 : f32
    %33 = vector.broadcast %cst_21 : f32 to vector<256x8xf32>
    %34 = arith.mulf %33, %32 : vector<256x8xf32>
    %cst_22 = arith.constant 0.707106769 : f32
    %35 = vector.broadcast %cst_22 : f32 to vector<256x8xf32>
    %36 = arith.mulf %32, %35 : vector<256x8xf32>
    %37 = math.erf %36 : vector<256x8xf32>
    %cst_23 = arith.constant 1.000000e+00 : f32
    %38 = vector.broadcast %cst_23 : f32 to vector<256x8xf32>
    %39 = arith.addf %38, %37 : vector<256x8xf32>
    %40 = arith.mulf %34, %39 : vector<256x8xf32>
    %41 = vector.extract_strided_slice %30 {offsets = [0, 8], sizes = [256, 8], strides = [1, 1]} : vector<256x16xf32> to vector<256x8xf32>
    %42 = arith.addf %40, %41 : vector<256x8xf32>
    %c0_24 = arith.constant 0 : index
    %c0_25 = arith.constant 0 : index
    %c0_26 = arith.constant 0 : index
    %43 = vector.load %arg9[%c0_24, %c0_25, %c0_26] : memref<1x256x8xf32, #tpu.memory_space<vmem>>, vector<1x256x8xf32>
    %44 = vector.shape_cast %43 : vector<1x256x8xf32> to vector<256x8xf32>
    %45 = vector.shape_cast %42 : vector<256x8xf32> to vector<1x256x8xf32>
    tpu.vector_store %arg9[%c0_24, %c0_25, %c0_26], %45 {strides = array<i32>} : memref<1x256x8xf32, #tpu.memory_space<vmem>>, vector<1x256x8xf32>,
    return
  }
  func.func @transform_0(%arg0: i32) -> (i32, i32, i32) {
    %c0_i32 = arith.constant 0 : i32
    %c0_i32_0 = arith.constant 0 : i32
    %c0_i32_1 = arith.constant 0 : i32
    return %arg0, %c0_i32, %c0_i32_0 : i32, i32, i32
  }
  func.func @transform_1(%arg0: i32) -> (i32, i32) {
    %c0_i32 = arith.constant 0 : i32
    %c0_i32_0 = arith.constant 0 : i32
    %c0_i32_1 = arith.constant 0 : i32
    return %c0_i32, %c0_i32_0 : i32, i32
  }
  func.func @transform_2(%arg0: i32) -> (i32, i32, i32) {
    %c0_i32 = arith.constant 0 : i32
    %c0_i32_0 = arith.constant 0 : i32
    %c0_i32_1 = arith.constant 0 : i32
    %c0_i32_2 = arith.constant 0 : i32
    return %c0_i32, %c0_i32_0, %c0_i32_1 : i32, i32, i32
  }
  func.func @transform_3(%arg0: i32) -> (i32, i32) {
    %c0_i32 = arith.constant 0 : i32
    %c0_i32_0 = arith.constant 0 : i32
    %c0_i32_1 = arith.constant 0 : i32
    return %c0_i32, %c0_i32_0 : i32, i32
  }
  func.func @transform_4(%arg0: i32) -> (i32, i32) {
    %c0_i32 = arith.constant 0 : i32
    %c0_i32_0 = arith.constant 0 : i32
    %c0_i32_1 = arith.constant 0 : i32
    return %c0_i32, %c0_i32_0 : i32, i32
  }
  func.func @transform_5(%arg0: i32) -> (i32, i32) {
    %c0_i32 = arith.constant 0 : i32
    %c0_i32_0 = arith.constant 0 : i32
    %c0_i32_1 = arith.constant 0 : i32
    return %c0_i32, %c0_i32_0 : i32, i32
  }
  func.func @transform_6(%arg0: i32) -> (i32, i32) {
    %c0_i32 = arith.constant 0 : i32
    %c0_i32_0 = arith.constant 0 : i32
    %c0_i32_1 = arith.constant 0 : i32
    return %c0_i32, %c0_i32_0 : i32, i32
  }
  func.func @transform_7(%arg0: i32) -> (i32, i32) {
    %c0_i32 = arith.constant 0 : i32
    %c0_i32_0 = arith.constant 0 : i32
    %c0_i32_1 = arith.constant 0 : i32
    return %c0_i32, %c0_i32_0 : i32, i32
  }
  func.func @transform_8(%arg0: i32) -> (i32, i32, i32) {
    %c0_i32 = arith.constant 0 : i32
    %c0_i32_0 = arith.constant 0 : i32
    %c0_i32_1 = arith.constant 0 : i32
    return %arg0, %c0_i32, %c0_i32_0 : i32, i32, i32
  }
}

</mosaic_0001>

<llo_original>
// kernel: tpu_custom_call.1
$region0: #{tpu_custom_call.1}
  #allocation0 [shape = 'u32[]', space=smem, size = 0x4, offset = 0x4, fixed_abs, tag = 'smem constant byte address 0x4 - core index']
  #allocation1 [shape = 'u32[144,128]{1,0:T(1,128)}', space=vmem, size = 0x12000, scoped, tag = 'internal scratch']
  %s0 = inlined_call_operand.vmem [shape: bf16[2,256,8], index: 0, kind: input, shape index: {}]
  %s1 = inlined_call_operand.hbm [shape: bf16[512,256], index: 1, kind: input, shape index: {}]
  %s2 = inlined_call_operand.hbm [shape: bf16[16,16,16], index: 2, kind: input, shape index: {}]
  %s3 = inlined_call_operand.vmem [shape: bf16[256,256], index: 3, kind: input, shape index: {}]
  %s4 = inlined_call_operand.hbm [shape: bf16[256,256], index: 4, kind: input, shape index: {}]
  %s5 = inlined_call_operand.vmem [shape: f32[1,8], index: 5, kind: input, shape index: {}]
  %s6 = inlined_call_operand.vmem [shape: bf16[8,16], index: 6, kind: input, shape index: {}]
  %s7 = inlined_call_operand.vmem [shape: f32[1,16], index: 7, kind: input, shape index: {}]
  %s8 = inlined_call_operand.vmem [shape: f32[2,256,8], index: 8, kind: output, shape index: {}]
  %s9 = sld [smem:[#allocation0]]
  $region77: #{tpu_custom_call.1} parent=0
    _
  %s11 = ssub.s32 1, %s9
  %s12 = scalar_select 0, %s11, %s9
  $region1: #{tpu_custom_call.1} parent=0
    #allocation2 [shape = 'u8[262144]{0}', space=vmem, size = 0x40000, scoped, tag = 'input window, operand 1, single buffered']
    #allocation3 [shape = 's32[2]{0}', space=sflag, size = 0x8, scoped, tag = 'scoped memory for tpu_custom_call.1']
    #allocation4 [shape = 'u8[65536]{0}', space=vmem, size = 0x10000, scoped, tag = 'input window, operand 2, single buffered']
    #allocation5 [shape = 's32[1]{0}', space=sflag, size = 0x4, scoped, tag = 'scoped memory for tpu_custom_call.1']
    #allocation6 [shape = 'u8[131072]{0}', space=vmem, size = 0x20000, scoped, tag = 'input window, operand 4, single buffered']
    %13 = vsyncpa [#allocation3], 0
    %14 = vsyncpa [#allocation5], 0
    loop: start=0, step=1, limit=4
    $region2: #{tpu_custom_call.1} parent=1 // loop_pre_header
      _
    $region3: #{tpu_custom_call.1} parent=1 // loop_header
      %s16 = sphi 0, %s20
      %p17 = scmp.ge.s32.totalorder %s16, 4
      %s26 = sphi 0, %s28
      %s29 = sphi 0, %s26
      %s30 = sphi 0, %s29
      %s46 = sphi 0, %s30
      %s50 = sphi 0, %s50
      %s52 = sphi 0, %s50
      %s53 = sphi 0, %s52
      %s67 = sphi 0, %s53
      %s71 = sphi 0, %s71
      %s73 = sphi 0, %s71
      %s74 = sphi 0, %s73
      %s88 = sphi 0, %s74
      %s92 = sphi 0, %s92
      %s94 = sphi 0, %s92
      %s95 = sphi 0, %s94
      %s109 = sphi 0, %s95
      %s113 = sphi 0, %s113
      %s115 = sphi 0, %s113
      %s116 = sphi 0, %s115
      %s130 = sphi 0, %s116
      %s134 = sphi 0, %s134
      %s136 = sphi 0, %s134
      %s137 = sphi 0, %s136
      %s151 = sphi 0, %s137
      %s155 = sphi 0, %s155
      %s157 = sphi 0, %s155
      %s158 = sphi 0, %s157
      %s172 = sphi 0, %s158
      %s176 = sphi 0, %s176
      %s178 = sphi 0, %s176
      %s179 = sphi 0, %s178
      %s193 = sphi 0, %s179
      %s199 = sphi 0, %s201
      %s202 = sphi 0, %s199
      %s203 = sphi 0, %s202
      %s219 = sphi 0, %s203
    $region4: #{tpu_custom_call.1} parent=1 // loop_header_branch
      %19 = sbr.rel (%p17) target = $region8
    $region5: #{tpu_custom_call.1} parent=1 // loop_body
      %s21 = ssub.s32 %s16, 1
      %s22 = ssub.s32 %s16, 2
      %s23 = sadd.s32 %s16, 1
      %s24 = ssub.s32 %s16, %s23
      %p25 = scmp.eq.s32.totalorder %s24, 0
      %s27 = sadd.s32 %s26, 1
      %s28 = scalar_select %p25, %s26, %s27
      %p31 = pneg %p25
      %p32 = scmp.eq.s32.totalorder %s16, 1
      %p33 = por %p31, %p32
      %p34 = scmp.ne.s32.totalorder %s26, %s29
      %p35 = scmp.eq.s32.totalorder %s16, 0
      %p36 = por %p34, %p35
      %p37 = scmp.ne.s32.totalorder %s26, %s29
      %p38 = scmp.eq.s32.totalorder %s21, 1
      %p39 = por %p37, %p38
      %p40 = scmp.ne.s32.totalorder %s29, %s30
      %p41 = scmp.eq.s32.totalorder %s21, 0
      %p42 = por %p40, %p41
      %p43 = scmp.ne.s32.totalorder %s29, %s30
      %p44 = scmp.eq.s32.totalorder %s22, 1
      %p45 = por %p43, %p44
      %p47 = scmp.ne.s32.totalorder %s30, %s46
      %p48 = scmp.eq.s32.totalorder %s22, 0
      %p49 = por %p47, %p48
      %s51 = sadd.s32 %s50, 1
      %p54 = scmp.eq.s32.totalorder %s16, 1
      %p55 = scmp.ne.s32.totalorder %s50, %s52
      %p56 = scmp.eq.s32.totalorder %s16, 0
      %p57 = por %p55, %p56
      %p58 = scmp.ne.s32.totalorder %s50, %s52
      %p59 = scmp.eq.s32.totalorder %s21, 1
      %p60 = por %p58, %p59
      %p61 = scmp.ne.s32.totalorder %s52, %s53
      %p62 = scmp.eq.s32.totalorder %s21, 0
      %p63 = por %p61, %p62
      %p64 = scmp.ne.s32.totalorder %s52, %s53
      %p65 = scmp.eq.s32.totalorder %s22, 1
      %p66 = por %p64, %p65
      %p68 = scmp.ne.s32.totalorder %s53, %s67
      %p69 = scmp.eq.s32.totalorder %s22, 0
      %p70 = por %p68, %p69
      %s72 = sadd.s32 %s71, 1
      %p75 = scmp.eq.s32.totalorder %s16, 1
      %p76 = scmp.ne.s32.totalorder %s71, %s73
      %p77 = scmp.eq.s32.totalorder %s16, 0
      %p78 = por %p76, %p77
      %p79 = scmp.ne.s32.totalorder %s71, %s73
      %p80 = scmp.eq.s32.totalorder %s21, 1
      %p81 = por %p79, %p80
      %p82 = scmp.ne.s32.totalorder %s73, %s74
      %p83 = scmp.eq.s32.totalorder %s21, 0
      %p84 = por %p82, %p83
      %p85 = scmp.ne.s32.totalorder %s73, %s74
      %p86 = scmp.eq.s32.totalorder %s22, 1
      %p87 = por %p85, %p86
      %p89 = scmp.ne.s32.totalorder %s74, %s88
      %p90 = scmp.eq.s32.totalorder %s22, 0
      %p91 = por %p89, %p90
      %s93 = sadd.s32 %s92, 1
      %p96 = scmp.eq.s32.totalorder %s16, 1
      %p97 = scmp.ne.s32.totalorder %s92, %s94
      %p98 = scmp.eq.s32.totalorder %s16, 0
      %p99 = por %p97, %p98
      %p100 = scmp.ne.s32.totalorder %s92, %s94
      %p101 = scmp.eq.s32.totalorder %s21, 1
      %p102 = por %p100, %p101
      %p103 = scmp.ne.s32.totalorder %s94, %s95
      %p104 = scmp.eq.s32.totalorder %s21, 0
      %p105 = por %p103, %p104
      %p106 = scmp.ne.s32.totalorder %s94, %s95
      %p107 = scmp.eq.s32.totalorder %s22, 1
      %p108 = por %p106, %p107
      %p110 = scmp.ne.s32.totalorder %s95, %s109
      %p111 = scmp.eq.s32.totalorder %s22, 0
      %p112 = por %p110, %p111
      %s114 = sadd.s32 %s113, 1
      %p117 = scmp.eq.s32.totalorder %s16, 1
      %p118 = scmp.ne.s32.totalorder %s113, %s115
      %p119 = scmp.eq.s32.totalorder %s16, 0
      %p120 = por %p118, %p119
      %p121 = scmp.ne.s32.totalorder %s113, %s115
      %p122 = scmp.eq.s32.totalorder %s21, 1
      %p123 = por %p121, %p122
      %p124 = scmp.ne.s32.totalorder %s115, %s116
      %p125 = scmp.eq.s32.totalorder %s21, 0
      %p126 = por %p124, %p125
      %p127 = scmp.ne.s32.totalorder %s115, %s116
      %p128 = scmp.eq.s32.totalorder %s22, 1
      %p129 = por %p127, %p128
      %p131 = scmp.ne.s32.totalorder %s116, %s130
      %p132 = scmp.eq.s32.totalorder %s22, 0
      %p133 = por %p131, %p132
      %s135 = sadd.s32 %s134, 1
      %p138 = scmp.eq.s32.totalorder %s16, 1
      %p139 = scmp.ne.s32.totalorder %s134, %s136
      %p140 = scmp.eq.s32.totalorder %s16, 0
      %p141 = por %p139, %p140
      %p142 = scmp.ne.s32.totalorder %s134, %s136
      %p143 = scmp.eq.s32.totalorder %s21, 1
      %p144 = por %p142, %p143
      %p145 = scmp.ne.s32.totalorder %s136, %s137
      %p146 = scmp.eq.s32.totalorder %s21, 0
      %p147 = por %p145, %p146
      %p148 = scmp.ne.s32.totalorder %s136, %s137
      %p149 = scmp.eq.s32.totalorder %s22, 1
      %p150 = por %p148, %p149
      %p152 = scmp.ne.s32.totalorder %s137, %s151
      %p153 = scmp.eq.s32.totalorder %s22, 0
      %p154 = por %p152, %p153
      %s156 = sadd.s32 %s155, 1
      %p159 = scmp.eq.s32.totalorder %s16, 1
      %p160 = scmp.ne.s32.totalorder %s155, %s157
      %p161 = scmp.eq.s32.totalorder %s16, 0
      %p162 = por %p160, %p161
      %p163 = scmp.ne.s32.totalorder %s155, %s157
      %p164 = scmp.eq.s32.totalorder %s21, 1
      %p165 = por %p163, %p164
      %p166 = scmp.ne.s32.totalorder %s157, %s158
      %p167 = scmp.eq.s32.totalorder %s21, 0
      %p168 = por %p166, %p167
      %p169 = scmp.ne.s32.totalorder %s157, %s158
      %p170 = scmp.eq.s32.totalorder %s22, 1
      %p171 = por %p169, %p170
      %p173 = scmp.ne.s32.totalorder %s158, %s172
      %p174 = scmp.eq.s32.totalorder %s22, 0
      %p175 = por %p173, %p174
      %s177 = sadd.s32 %s176, 1
      %p180 = scmp.eq.s32.totalorder %s16, 1
      %p181 = scmp.ne.s32.totalorder %s176, %s178
      %p182 = scmp.eq.s32.totalorder %s16, 0
      %p183 = por %p181, %p182
      %p184 = scmp.ne.s32.totalorder %s176, %s178
      %p185 = scmp.eq.s32.totalorder %s21, 1
      %p186 = por %p184, %p185
      %p187 = scmp.ne.s32.totalorder %s178, %s179
      %p188 = scmp.eq.s32.totalorder %s21, 0
      %p189 = por %p187, %p188
      %p190 = scmp.ne.s32.totalorder %s178, %s179
      %p191 = scmp.eq.s32.totalorder %s22, 1
      %p192 = por %p190, %p191
      %p194 = scmp.ne.s32.totalorder %s179, %s193
      %p195 = scmp.eq.s32.totalorder %s22, 0
      %p196 = por %p194, %p195
      %s197 = ssub.s32 %s16, %s23
      %p198 = scmp.eq.s32.totalorder %s197, 0
      %s200 = sadd.s32 %s199, 1
      %s201 = scalar_select %p198, %s199, %s200
      %p204 = pneg %p198
      %p205 = scmp.eq.s32.totalorder %s16, 1
      %p206 = por %p204, %p205
      %p207 = scmp.ne.s32.totalorder %s199, %s202
      %p208 = scmp.eq.s32.totalorder %s16, 0
      %p209 = por %p207, %p208
      %p210 = scmp.ne.s32.totalorder %s199, %s202
      %p211 = scmp.eq.s32.totalorder %s21, 1
      %p212 = por %p210, %p211
      %p213 = scmp.ne.s32.totalorder %s202, %s203
      %p214 = scmp.eq.s32.totalorder %s21, 0
      %p215 = por %p213, %p214
      %p216 = scmp.ne.s32.totalorder %s202, %s203
      %p217 = scmp.eq.s32.totalorder %s22, 1
      %p218 = por %p216, %p217
      %p220 = scmp.ne.s32.totalorder %s203, %s219
      %p221 = scmp.eq.s32.totalorder %s22, 0
      %p222 = por %p220, %p221
      %p223 = scmp.le.s32.totalorder 1, %s16
      %p224 = scmp.lt.s32.totalorder %s16, 3
      %p225 = pnand %p223, %p224
      %p226 = pneg %p225
      // Predicated region
      $region9: #{tpu_custom_call.1} parent=5 // pred_check
        _
      $region10: #{tpu_custom_call.1} parent=5 // pred_check_branch
        %228 = sbr.rel (%p225) target = $region12
      $region11: #{tpu_custom_call.1} parent=5 // pred_region
        %s229 = ssub.s32 %s16, 1
        // Predicated region
        $region13: #{tpu_custom_call.1} parent=11 // pred_check
          %p230 = pneg %p63
        $region14: #{tpu_custom_call.1} parent=11 // pred_check_branch
          %232 = sbr.rel (%p230) target = $region16
        $region15: #{tpu_custom_call.1} parent=11 // pred_region
          %s234 = ssub.s32 8192, 8192
          %235 = vsyncadd [#allocation3], %s234
          %s236 = sshll.u32 [#allocation2], 4
          %s237 = int_to_ptr.vmem [resolvable:$true] %s236
          %242 = dma.hbm_to_vmem [thread:$0]  %s1, 8192, %s237, [#allocation3], 128, 128, 8
        $region16: #{tpu_custom_call.1} parent=11 // pred_fallthru
          _
        // Predicated region
        $region17: #{tpu_custom_call.1} parent=11 // pred_check
          %p243 = pneg %p84
        $region18: #{tpu_custom_call.1} parent=11 // pred_check_branch
          %245 = sbr.rel (%p243) target = $region20
        $region19: #{tpu_custom_call.1} parent=11 // pred_region
          %s247 = ssub.s32 2048, 2048
          %248 = vsyncadd [#allocation5], %s247
          %s249 = sshll.u32 [#allocation4], 4
          %s250 = int_to_ptr.vmem [resolvable:$true] %s249
          %255 = dma.hbm_to_vmem [thread:$0]  %s2, 2048, %s250, [#allocation5], 64, 64, 4
        $region20: #{tpu_custom_call.1} parent=11 // pred_fallthru
          _
        // Predicated region
        $region21: #{tpu_custom_call.1} parent=11 // pred_check
          %p256 = pneg %p105
        $region22: #{tpu_custom_call.1} parent=11 // pred_check_branch
          %258 = sbr.rel (%p256) target = $region24
        $region23: #{tpu_custom_call.1} parent=11 // pred_region
          _
        $region24: #{tpu_custom_call.1} parent=11 // pred_fallthru
          _
        // Predicated region
        $region25: #{tpu_custom_call.1} parent=11 // pred_check
          %p259 = pneg %p126
        $region26: #{tpu_custom_call.1} parent=11 // pred_check_branch
          %261 = sbr.rel (%p259) target = $region28
        $region27: #{tpu_custom_call.1} parent=11 // pred_region
          %s263 = ssub.s32 4096, 4096
          %264 = vsyncadd [#allocation5], %s263
          %s265 = sshll.u32 [#allocation6], 4
          %s266 = int_to_ptr.vmem [resolvable:$true] %s265
          %271 = dma.hbm_to_vmem [thread:$0]  %s4, 4096, %s266, [#allocation5], 128, 128, 8
        $region28: #{tpu_custom_call.1} parent=11 // pred_fallthru
          _
        // Predicated region
        $region29: #{tpu_custom_call.1} parent=11 // pred_check
          %p272 = pneg %p147
        $region30: #{tpu_custom_call.1} parent=11 // pred_check_branch
          %274 = sbr.rel (%p272) target = $region32
        $region31: #{tpu_custom_call.1} parent=11 // pred_region
          _
        $region32: #{tpu_custom_call.1} parent=11 // pred_fallthru
          _
        // Predicated region
        $region33: #{tpu_custom_call.1} parent=11 // pred_check
          %p275 = pneg %p168
        $region34: #{tpu_custom_call.1} parent=11 // pred_check_branch
          %277 = sbr.rel (%p275) target = $region36
        $region35: #{tpu_custom_call.1} parent=11 // pred_region
          _
        $region36: #{tpu_custom_call.1} parent=11 // pred_fallthru
          _
        // Predicated region
        $region37: #{tpu_custom_call.1} parent=11 // pred_check
          %p278 = pneg %p189
        $region38: #{tpu_custom_call.1} parent=11 // pred_check_branch
          %280 = sbr.rel (%p278) target = $region40
        $region39: #{tpu_custom_call.1} parent=11 // pred_region
          _
        $region40: #{tpu_custom_call.1} parent=11 // pred_fallthru
          _
      $region12: #{tpu_custom_call.1} parent=5 // pred_fallthru
        _
      %p281 = scmp.lt.s32.totalorder %s16, 2
      // Predicated region
      $region41: #{tpu_custom_call.1} parent=5 // pred_check
        %p282 = pneg %p281
      $region42: #{tpu_custom_call.1} parent=5 // pred_check_branch
        %284 = sbr.rel (%p282) target = $region44
      $region43: #{tpu_custom_call.1} parent=5 // pred_region
        // Predicated region
        $region45: #{tpu_custom_call.1} parent=43 // pred_check
          %p285 = pneg %p36
        $region46: #{tpu_custom_call.1} parent=43 // pred_check_branch
          %287 = sbr.rel (%p285) target = $region48
        $region47: #{tpu_custom_call.1} parent=43 // pred_region
          %p288 = scmp.lt.s32.totalorder %s16, 1
          %s289 = scalar_select %p288, %s16, 1
          %s290 = smul.addr %s289, 32
          %s291 = smul.addr %s290, 4
          %s292 = scalar_lea.vmem %s0, %s291
        $region48: #{tpu_custom_call.1} parent=43 // pred_fallthru
          _
      $region44: #{tpu_custom_call.1} parent=5 // pred_fallthru
        _
      %p293 = scmp.le.s32.totalorder 1, %s16
      %p294 = scmp.lt.s32.totalorder %s16, 3
      %p295 = pnand %p293, %p294
      %p296 = pneg %p295
      // Predicated region
      $region49: #{tpu_custom_call.1} parent=5 // pred_check
        _
      $region50: #{tpu_custom_call.1} parent=5 // pred_check_branch
        %298 = sbr.rel (%p295) target = $region52
      $region51: #{tpu_custom_call.1} parent=5 // pred_region
        %s299 = ssub.s32 %s16, 1
        // Predicated region
        $region53: #{tpu_custom_call.1} parent=51 // pred_check
          %p300 = pneg %p63
        $region54: #{tpu_custom_call.1} parent=51 // pred_check_branch
          %302 = sbr.rel (%p300) target = $region56
        $region55: #{tpu_custom_call.1} parent=51 // pred_region
          %303 = dma.done [#allocation3], 8192
        $region56: #{tpu_custom_call.1} parent=51 // pred_fallthru
          _
        // Predicated region
        $region57: #{tpu_custom_call.1} parent=51 // pred_check
          %p304 = pneg %p84
        $region58: #{tpu_custom_call.1} parent=51 // pred_check_branch
          %306 = sbr.rel (%p304) target = $region60
        $region59: #{tpu_custom_call.1} parent=51 // pred_region
          %307 = dma.done [#allocation5], 2048
        $region60: #{tpu_custom_call.1} parent=51 // pred_fallthru
          _
        // Predicated region
        $region61: #{tpu_custom_call.1} parent=51 // pred_check
          %p308 = pneg %p126
        $region62: #{tpu_custom_call.1} parent=51 // pred_check_branch
          %310 = sbr.rel (%p308) target = $region64
        $region63: #{tpu_custom_call.1} parent=51 // pred_region
          %311 = dma.done [#allocation5], 4096
        $region64: #{tpu_custom_call.1} parent=51 // pred_fallthru
          _
        %p312 = scmp.lt.s32.totalorder %s21, 1
        %s313 = scalar_select %p312, %s21, 1
        %s314 = smul.addr %s313, 32
        %s315 = smul.addr %s314, 4
        %s316 = scalar_lea.vmem %s0, %s315
        %p317 = pneg %p42
        %p318 = pneg %p39
        %p319 = pneg %p63
        %p320 = pneg %p60
        %p321 = pneg %p84
        %p322 = pneg %p81
        %p323 = pneg %p105
        %p324 = pneg %p102
        %p325 = pneg %p126
        %p326 = pneg %p123
        %p327 = pneg %p147
        %p328 = pneg %p144
        %p329 = pneg %p168
        %p330 = pneg %p165
        %p331 = pneg %p189
        %p332 = pneg %p186
        %p333 = pneg %p215
        %p334 = pneg %p212
        %p335 = scmp.lt.s32.totalorder %s21, 1
        %s336 = scalar_select %p335, %s21, 1
        %s337 = smul.addr %s336, 32
        %s338 = smul.addr %s337, 8
        %s339 = scalar_lea.vmem %s8, %s338
        %p340 = scmp.lt.s32.totalorder %s21, 1
        %s341 = scalar_select %p340, %s21, 1
        %s342 = smul.addr %s341, 32
        %s343 = smul.addr %s342, 4
        %s344 = scalar_lea.vmem %s0, %s343
        %p345 = scmp.lt.s32.totalorder %s21, 1
        %s346 = scalar_select %p345, %s21, 1
        %s347 = smul.addr %s346, 32
        %s348 = smul.addr %s347, 8
        %s349 = scalar_lea.vmem %s8, %s348
        %v351 = vld [vmem:[%s344] sm:$0xf]
        %v352 = vld [vmem:[%s344 + $0x4] sm:$0xf]
        %v353 = vld [vmem:[%s344 + $0x8] sm:$0xf]
        %v354 = vld [vmem:[%s344 + $0xc] sm:$0xf]
        %v355 = vld [vmem:[%s344 + $0x10] sm:$0xf]
        %v356 = vld [vmem:[%s344 + $0x14] sm:$0xf]
        %v357 = vld [vmem:[%s344 + $0x18] sm:$0xf]
        %v358 = vld [vmem:[%s344 + $0x1c] sm:$0xf]
        %v359 = vld [vmem:[%s344 + $0x20] sm:$0xf]
        %v360 = vld [vmem:[%s344 + $0x24] sm:$0xf]
        %v361 = vld [vmem:[%s344 + $0x28] sm:$0xf]
        %v362 = vld [vmem:[%s344 + $0x2c] sm:$0xf]
        %v363 = vld [vmem:[%s344 + $0x30] sm:$0xf]
        %v364 = vld [vmem:[%s344 + $0x34] sm:$0xf]
        %v365 = vld [vmem:[%s344 + $0x38] sm:$0xf]
        %v366 = vld [vmem:[%s344 + $0x3c] sm:$0xf]
        %v367 = vld [vmem:[%s344 + $0x40] sm:$0xf]
        %v368 = vld [vmem:[%s344 + $0x44] sm:$0xf]
        %v369 = vld [vmem:[%s344 + $0x48] sm:$0xf]
        %v370 = vld [vmem:[%s344 + $0x4c] sm:$0xf]
        %v371 = vld [vmem:[%s344 + $0x50] sm:$0xf]
        %v372 = vld [vmem:[%s344 + $0x54] sm:$0xf]
        %v373 = vld [vmem:[%s344 + $0x58] sm:$0xf]
        %v374 = vld [vmem:[%s344 + $0x5c] sm:$0xf]
        %v375 = vld [vmem:[%s344 + $0x60] sm:$0xf]
        %v376 = vld [vmem:[%s344 + $0x64] sm:$0xf]
        %v377 = vld [vmem:[%s344 + $0x68] sm:$0xf]
        %v378 = vld [vmem:[%s344 + $0x6c] sm:$0xf]
        %v379 = vld [vmem:[%s344 + $0x70] sm:$0xf]
        %v380 = vld [vmem:[%s344 + $0x74] sm:$0xf]
        %v381 = vld [vmem:[%s344 + $0x78] sm:$0xf]
        %v382 = vld [vmem:[%s344 + $0x7c] sm:$0xf]
        %v383 = vld [vmem:[#allocation2] sm:$0xff]
        %v384 = vld [vmem:[#allocation2 + $0x8] sm:$0xff]
        %v385 = vld [vmem:[#allocation2 + $0x10] sm:$0xff]
        %v386 = vld [vmem:[#allocation2 + $0x18] sm:$0xff]
        %v387 = vld [vmem:[#allocation2 + $0x20] sm:$0xff]
        %v388 = vld [vmem:[#allocation2 + $0x28] sm:$0xff]
        %v389 = vld [vmem:[#allocation2 + $0x30] sm:$0xff]
        %v390 = vld [vmem:[#allocation2 + $0x38] sm:$0xff]
        %v391 = vld [vmem:[#allocation2 + $0x40] sm:$0xff]
        %v392 = vld [vmem:[#allocation2 + $0x48] sm:$0xff]
        %v393 = vld [vmem:[#allocation2 + $0x50] sm:$0xff]
        %v394 = vld [vmem:[#allocation2 + $0x58] sm:$0xff]
        %v395 = vld [vmem:[#allocation2 + $0x60] sm:$0xff]
        %v396 = vld [vmem:[#allocation2 + $0x68] sm:$0xff]
        %v397 = vld [vmem:[#allocation2 + $0x70] sm:$0xff]
        %v398 = vld [vmem:[#allocation2 + $0x78] sm:$0xff]
        %v399 = vld [vmem:[#allocation2 + $0x80] sm:$0xff]
        %v400 = vld [vmem:[#allocation2 + $0x88] sm:$0xff]
        %v401 = vld [vmem:[#allocation2 + $0x90] sm:$0xff]
        %v402 = vld [vmem:[#allocation2 + $0x98] sm:$0xff]
        %v403 = vld [vmem:[#allocation2 + $0xa0] sm:$0xff]
        %v404 = vld [vmem:[#allocation2 + $0xa8] sm:$0xff]
        %v405 = vld [vmem:[#allocation2 + $0xb0] sm:$0xff]
        %v406 = vld [vmem:[#allocation2 + $0xb8] sm:$0xff]
        %v407 = vld [vmem:[#allocation2 + $0xc0] sm:$0xff]
        %v408 = vld [vmem:[#allocation2 + $0xc8] sm:$0xff]
        %v409 = vld [vmem:[#allocation2 + $0xd0] sm:$0xff]
        %v410 = vld [vmem:[#allocation2 + $0xd8] sm:$0xff]
        %v411 = vld [vmem:[#allocation2 + $0xe0] sm:$0xff]
        %v412 = vld [vmem:[#allocation2 + $0xe8] sm:$0xff]
        %v413 = vld [vmem:[#allocation2 + $0xf0] sm:$0xff]
        %v414 = vld [vmem:[#allocation2 + $0xf8] sm:$0xff]
        %v415 = vld [vmem:[#allocation2 + $0x100] sm:$0xff]
        %v416 = vld [vmem:[#allocation2 + $0x108] sm:$0xff]
        %v417 = vld [vmem:[#allocation2 + $0x110] sm:$0xff]
        %v418 = vld [vmem:[#allocation2 + $0x118] sm:$0xff]
        %v419 = vld [vmem:[#allocation2 + $0x120] sm:$0xff]
        %v420 = vld [vmem:[#allocation2 + $0x128] sm:$0xff]
        %v421 = vld [vmem:[#allocation2 + $0x130] sm:$0xff]
        %v422 = vld [vmem:[#allocation2 + $0x138] sm:$0xff]
        %v423 = vld [vmem:[#allocation2 + $0x140] sm:$0xff]
        %v424 = vld [vmem:[#allocation2 + $0x148] sm:$0xff]
        %v425 = vld [vmem:[#allocation2 + $0x150] sm:$0xff]
        %v426 = vld [vmem:[#allocation2 + $0x158] sm:$0xff]
        %v427 = vld [vmem:[#allocation2 + $0x160] sm:$0xff]
        %v428 = vld [vmem:[#allocation2 + $0x168] sm:$0xff]
        %v429 = vld [vmem:[#allocation2 + $0x170] sm:$0xff]
        %v430 = vld [vmem:[#allocation2 + $0x178] sm:$0xff]
        %v431 = vld [vmem:[#allocation2 + $0x180] sm:$0xff]
        %v432 = vld [vmem:[#allocation2 + $0x188] sm:$0xff]
        %v433 = vld [vmem:[#allocation2 + $0x190] sm:$0xff]
        %v434 = vld [vmem:[#allocation2 + $0x198] sm:$0xff]
        %v435 = vld [vmem:[#allocation2 + $0x1a0] sm:$0xff]
        %v436 = vld [vmem:[#allocation2 + $0x1a8] sm:$0xff]
        %v437 = vld [vmem:[#allocation2 + $0x1b0] sm:$0xff]
        %v438 = vld [vmem:[#allocation2 + $0x1b8] sm:$0xff]
        %v439 = vld [vmem:[#allocation2 + $0x1c0] sm:$0xff]
        %v440 = vld [vmem:[#allocation2 + $0x1c8] sm:$0xff]
        %v441 = vld [vmem:[#allocation2 + $0x1d0] sm:$0xff]
        %v442 = vld [vmem:[#allocation2 + $0x1d8] sm:$0xff]
        %v443 = vld [vmem:[#allocation2 + $0x1e0] sm:$0xff]
        %v444 = vld [vmem:[#allocation2 + $0x1e8] sm:$0xff]
        %v445 = vld [vmem:[#allocation2 + $0x1f0] sm:$0xff]
        %v446 = vld [vmem:[#allocation2 + $0x1f8] sm:$0xff]
        %v447 = vld [vmem:[#allocation4] sm:$0xf]
        %v448 = vld [vmem:[#allocation4 + $0x4] sm:$0xf]
        %v449 = vld [vmem:[#allocation4 + $0x8] sm:$0xf]
        %v450 = vld [vmem:[#allocation4 + $0xc] sm:$0xf]
        %v451 = vld [vmem:[#allocation4 + $0x10] sm:$0xf]
        %v452 = vld [vmem:[#allocation4 + $0x14] sm:$0xf]
        %v453 = vld [vmem:[#allocation4 + $0x18] sm:$0xf]
        %v454 = vld [vmem:[#allocation4 + $0x1c] sm:$0xf]
        %v455 = vld [vmem:[#allocation4 + $0x20] sm:$0xf]
        %v456 = vld [vmem:[#allocation4 + $0x24] sm:$0xf]
        %v457 = vld [vmem:[#allocation4 + $0x28] sm:$0xf]
        %v458 = vld [vmem:[#allocation4 + $0x2c] sm:$0xf]
        %v459 = vld [vmem:[#allocation4 + $0x30] sm:$0xf]
        %v460 = vld [vmem:[#allocation4 + $0x34] sm:$0xf]
        %v461 = vld [vmem:[#allocation4 + $0x38] sm:$0xf]
        %v462 = vld [vmem:[#allocation4 + $0x3c] sm:$0xf]
        %v463 = vld [vmem:[#allocation4 + $0x40] sm:$0xf]
        %v464 = vld [vmem:[#allocation4 + $0x44] sm:$0xf]
        %v465 = vld [vmem:[#allocation4 + $0x48] sm:$0xf]
        %v466 = vld [vmem:[#allocation4 + $0x4c] sm:$0xf]
        %v467 = vld [vmem:[#allocation4 + $0x50] sm:$0xf]
        %v468 = vld [vmem:[#allocation4 + $0x54] sm:$0xf]
        %v469 = vld [vmem:[#allocation4 + $0x58] sm:$0xf]
        %v470 = vld [vmem:[#allocation4 + $0x5c] sm:$0xf]
        %v471 = vld [vmem:[#allocation4 + $0x60] sm:$0xf]
        %v472 = vld [vmem:[#allocation4 + $0x64] sm:$0xf]
        %v473 = vld [vmem:[#allocation4 + $0x68] sm:$0xf]
        %v474 = vld [vmem:[#allocation4 + $0x6c] sm:$0xf]
        %v475 = vld [vmem:[#allocation4 + $0x70] sm:$0xf]
        %v476 = vld [vmem:[#allocation4 + $0x74] sm:$0xf]
        %v477 = vld [vmem:[#allocation4 + $0x78] sm:$0xf]
        %v478 = vld [vmem:[#allocation4 + $0x7c] sm:$0xf]
        %v479 = vld [vmem:[%s3] sm:$0xff]
        %v480 = vld [vmem:[%s3 + $0x8] sm:$0xff]
        %v481 = vld [vmem:[%s3 + $0x10] sm:$0xff]
        %v482 = vld [vmem:[%s3 + $0x18] sm:$0xff]
        %v483 = vld [vmem:[%s3 + $0x20] sm:$0xff]
        %v484 = vld [vmem:[%s3 + $0x28] sm:$0xff]
        %v485 = vld [vmem:[%s3 + $0x30] sm:$0xff]
        %v486 = vld [vmem:[%s3 + $0x38] sm:$0xff]
        %v487 = vld [vmem:[%s3 + $0x40] sm:$0xff]
        %v488 = vld [vmem:[%s3 + $0x48] sm:$0xff]
        %v489 = vld [vmem:[%s3 + $0x50] sm:$0xff]
        %v490 = vld [vmem:[%s3 + $0x58] sm:$0xff]
        %v491 = vld [vmem:[%s3 + $0x60] sm:$0xff]
        %v492 = vld [vmem:[%s3 + $0x68] sm:$0xff]
        %v493 = vld [vmem:[%s3 + $0x70] sm:$0xff]
        %v494 = vld [vmem:[%s3 + $0x78] sm:$0xff]
        %v495 = vld [vmem:[%s3 + $0x80] sm:$0xff]
        %v496 = vld [vmem:[%s3 + $0x88] sm:$0xff]
        %v497 = vld [vmem:[%s3 + $0x90] sm:$0xff]
        %v498 = vld [vmem:[%s3 + $0x98] sm:$0xff]
        %v499 = vld [vmem:[%s3 + $0xa0] sm:$0xff]
        %v500 = vld [vmem:[%s3 + $0xa8] sm:$0xff]
        %v501 = vld [vmem:[%s3 + $0xb0] sm:$0xff]
        %v502 = vld [vmem:[%s3 + $0xb8] sm:$0xff]
        %v503 = vld [vmem:[%s3 + $0xc0] sm:$0xff]
        %v504 = vld [vmem:[%s3 + $0xc8] sm:$0xff]
        %v505 = vld [vmem:[%s3 + $0xd0] sm:$0xff]
        %v506 = vld [vmem:[%s3 + $0xd8] sm:$0xff]
        %v507 = vld [vmem:[%s3 + $0xe0] sm:$0xff]
        %v508 = vld [vmem:[%s3 + $0xe8] sm:$0xff]
        %v509 = vld [vmem:[%s3 + $0xf0] sm:$0xff]
        %v510 = vld [vmem:[%s3 + $0xf8] sm:$0xff]
        %v511 = vld [vmem:[#allocation6] sm:$0xff]
        %v512 = vld [vmem:[#allocation6 + $0x8] sm:$0xff]
        %v513 = vld [vmem:[#allocation6 + $0x10] sm:$0xff]
        %v514 = vld [vmem:[#allocation6 + $0x18] sm:$0xff]
        %v515 = vld [vmem:[#allocation6 + $0x20] sm:$0xff]
        %v516 = vld [vmem:[#allocation6 + $0x28] sm:$0xff]
        %v517 = vld [vmem:[#allocation6 + $0x30] sm:$0xff]
        %v518 = vld [vmem:[#allocation6 + $0x38] sm:$0xff]
        %v519 = vld [vmem:[#allocation6 + $0x40] sm:$0xff]
        %v520 = vld [vmem:[#allocation6 + $0x48] sm:$0xff]
        %v521 = vld [vmem:[#allocation6 + $0x50] sm:$0xff]
        %v522 = vld [vmem:[#allocation6 + $0x58] sm:$0xff]
        %v523 = vld [vmem:[#allocation6 + $0x60] sm:$0xff]
        %v524 = vld [vmem:[#allocation6 + $0x68] sm:$0xff]
        %v525 = vld [vmem:[#allocation6 + $0x70] sm:$0xff]
        %v526 = vld [vmem:[#allocation6 + $0x78] sm:$0xff]
        %v527 = vld [vmem:[#allocation6 + $0x80] sm:$0xff]
        %v528 = vld [vmem:[#allocation6 + $0x88] sm:$0xff]
        %v529 = vld [vmem:[#allocation6 + $0x90] sm:$0xff]
        %v530 = vld [vmem:[#allocation6 + $0x98] sm:$0xff]
        %v531 = vld [vmem:[#allocation6 + $0xa0] sm:$0xff]
        %v532 = vld [vmem:[#allocation6 + $0xa8] sm:$0xff]
        %v533 = vld [vmem:[#allocation6 + $0xb0] sm:$0xff]
        %v534 = vld [vmem:[#allocation6 + $0xb8] sm:$0xff]
        %v535 = vld [vmem:[#allocation6 + $0xc0] sm:$0xff]
        %v536 = vld [vmem:[#allocation6 + $0xc8] sm:$0xff]
        %v537 = vld [vmem:[#allocation6 + $0xd0] sm:$0xff]
        %v538 = vld [vmem:[#allocation6 + $0xd8] sm:$0xff]
        %v539 = vld [vmem:[#allocation6 + $0xe0] sm:$0xff]
        %v540 = vld [vmem:[#allocation6 + $0xe8] sm:$0xff]
        %v541 = vld [vmem:[#allocation6 + $0xf0] sm:$0xff]
        %v542 = vld [vmem:[#allocation6 + $0xf8] sm:$0xff]
        %v543 = vld [vmem:[%s5] sm:$0x1]
        %v544 = vld [vmem:[%s6] sm:$0xf]
        %v545 = vld [vmem:[%s7] sm:$0x1]
        %v610 = vunpack.c.l.b16 %v383
        %v611 = vunpack.c.h.b16 %v383
        %v612 = vunpack.c.l.b16 %v384
        %v613 = vunpack.c.h.b16 %v384
        %v614 = vunpack.c.l.b16 %v385
        %v615 = vunpack.c.h.b16 %v385
        %v616 = vunpack.c.l.b16 %v386
        %v617 = vunpack.c.h.b16 %v386
        %v618 = vunpack.c.l.b16 %v387
        %v619 = vunpack.c.h.b16 %v387
        %v620 = vunpack.c.l.b16 %v388
        %v621 = vunpack.c.h.b16 %v388
        %v622 = vunpack.c.l.b16 %v389
        %v623 = vunpack.c.h.b16 %v389
        %v624 = vunpack.c.l.b16 %v390
        %v625 = vunpack.c.h.b16 %v390
        %v626 = vunpack.c.l.b16 %v391
        %v627 = vunpack.c.h.b16 %v391
        %v628 = vunpack.c.l.b16 %v392
        %v629 = vunpack.c.h.b16 %v392
        %v630 = vunpack.c.l.b16 %v393
        %v631 = vunpack.c.h.b16 %v393
        %v632 = vunpack.c.l.b16 %v394
        %v633 = vunpack.c.h.b16 %v394
        %v634 = vunpack.c.l.b16 %v395
        %v635 = vunpack.c.h.b16 %v395
        %v636 = vunpack.c.l.b16 %v396
        %v637 = vunpack.c.h.b16 %v396
        %v638 = vunpack.c.l.b16 %v397
        %v639 = vunpack.c.h.b16 %v397
        %v640 = vunpack.c.l.b16 %v398
        %v641 = vunpack.c.h.b16 %v398
        %v642 = vunpack.c.l.b16 %v399
        %v643 = vunpack.c.h.b16 %v399
        %v644 = vunpack.c.l.b16 %v400
        %v645 = vunpack.c.h.b16 %v400
        %v646 = vunpack.c.l.b16 %v401
        %v647 = vunpack.c.h.b16 %v401
        %v648 = vunpack.c.l.b16 %v402
        %v649 = vunpack.c.h.b16 %v402
        %v650 = vunpack.c.l.b16 %v403
        %v651 = vunpack.c.h.b16 %v403
        %v652 = vunpack.c.l.b16 %v404
        %v653 = vunpack.c.h.b16 %v404
        %v654 = vunpack.c.l.b16 %v405
        %v655 = vunpack.c.h.b16 %v405
        %v656 = vunpack.c.l.b16 %v406
        %v657 = vunpack.c.h.b16 %v406
        %v658 = vunpack.c.l.b16 %v407
        %v659 = vunpack.c.h.b16 %v407
        %v660 = vunpack.c.l.b16 %v408
        %v661 = vunpack.c.h.b16 %v408
        %v662 = vunpack.c.l.b16 %v409
        %v663 = vunpack.c.h.b16 %v409
        %v664 = vunpack.c.l.b16 %v410
        %v665 = vunpack.c.h.b16 %v410
        %v666 = vunpack.c.l.b16 %v411
        %v667 = vunpack.c.h.b16 %v411
        %v668 = vunpack.c.l.b16 %v412
        %v669 = vunpack.c.h.b16 %v412
        %v670 = vunpack.c.l.b16 %v413
        %v671 = vunpack.c.h.b16 %v413
        %v672 = vunpack.c.l.b16 %v414
        %v673 = vunpack.c.h.b16 %v414
        %v674 = vunpack.c.l.b16 %v415
        %v675 = vunpack.c.h.b16 %v415
        %v676 = vunpack.c.l.b16 %v416
        %v677 = vunpack.c.h.b16 %v416
        %v678 = vunpack.c.l.b16 %v417
        %v679 = vunpack.c.h.b16 %v417
        %v680 = vunpack.c.l.b16 %v418
        %v681 = vunpack.c.h.b16 %v418
        %v682 = vunpack.c.l.b16 %v419
        %v683 = vunpack.c.h.b16 %v419
        %v684 = vunpack.c.l.b16 %v420
        %v685 = vunpack.c.h.b16 %v420
        %v686 = vunpack.c.l.b16 %v421
        %v687 = vunpack.c.h.b16 %v421
        %v688 = vunpack.c.l.b16 %v422
        %v689 = vunpack.c.h.b16 %v422
        %v690 = vunpack.c.l.b16 %v423
        %v691 = vunpack.c.h.b16 %v423
        %v692 = vunpack.c.l.b16 %v424
        %v693 = vunpack.c.h.b16 %v424
        %v694 = vunpack.c.l.b16 %v425
        %v695 = vunpack.c.h.b16 %v425
        %v696 = vunpack.c.l.b16 %v426
        %v697 = vunpack.c.h.b16 %v426
        %v698 = vunpack.c.l.b16 %v427
        %v699 = vunpack.c.h.b16 %v427
        %v700 = vunpack.c.l.b16 %v428
        %v701 = vunpack.c.h.b16 %v428
        %v702 = vunpack.c.l.b16 %v429
        %v703 = vunpack.c.h.b16 %v429
        %v704 = vunpack.c.l.b16 %v430
        %v705 = vunpack.c.h.b16 %v430
        %v706 = vunpack.c.l.b16 %v431
        %v707 = vunpack.c.h.b16 %v431
        %v708 = vunpack.c.l.b16 %v432
        %v709 = vunpack.c.h.b16 %v432
        %v710 = vunpack.c.l.b16 %v433
        %v711 = vunpack.c.h.b16 %v433
        %v712 = vunpack.c.l.b16 %v434
        %v713 = vunpack.c.h.b16 %v434
        %v714 = vunpack.c.l.b16 %v435
        %v715 = vunpack.c.h.b16 %v435
        %v716 = vunpack.c.l.b16 %v436
        %v717 = vunpack.c.h.b16 %v436
        %v718 = vunpack.c.l.b16 %v437
        %v719 = vunpack.c.h.b16 %v437
        %v720 = vunpack.c.l.b16 %v438
        %v721 = vunpack.c.h.b16 %v438
        %v722 = vunpack.c.l.b16 %v439
        %v723 = vunpack.c.h.b16 %v439
        %v724 = vunpack.c.l.b16 %v440
        %v725 = vunpack.c.h.b16 %v440
        %v726 = vunpack.c.l.b16 %v441
        %v727 = vunpack.c.h.b16 %v441
        %v728 = vunpack.c.l.b16 %v442
        %v729 = vunpack.c.h.b16 %v442
        %v730 = vunpack.c.l.b16 %v443
        %v731 = vunpack.c.h.b16 %v443
        %v732 = vunpack.c.l.b16 %v444
        %v733 = vunpack.c.h.b16 %v444
        %v734 = vunpack.c.l.b16 %v445
        %v735 = vunpack.c.h.b16 %v445
        %v736 = vunpack.c.l.b16 %v446
        %v737 = vunpack.c.h.b16 %v446
        %v738 = vpack.c.b16 %v612, %v610
        %v739 = vpack.c.b16 %v613, %v611
        %v740 = vpack.c.b16 %v616, %v614
        %v741 = vpack.c.b16 %v617, %v615
        %v742 = vpack.c.b16 %v620, %v618
        %v743 = vpack.c.b16 %v621, %v619
        %v744 = vpack.c.b16 %v624, %v622
        %v745 = vpack.c.b16 %v625, %v623
        %v746 = vpack.c.b16 %v628, %v626
        %v747 = vpack.c.b16 %v629, %v627
        %v748 = vpack.c.b16 %v632, %v630
        %v749 = vpack.c.b16 %v633, %v631
        %v750 = vpack.c.b16 %v636, %v634
        %v751 = vpack.c.b16 %v637, %v635
        %v752 = vpack.c.b16 %v640, %v638
        %v753 = vpack.c.b16 %v641, %v639
        %v754 = vpack.c.b16 %v644, %v642
        %v755 = vpack.c.b16 %v645, %v643
        %v756 = vpack.c.b16 %v648, %v646
        %v757 = vpack.c.b16 %v649, %v647
        %v758 = vpack.c.b16 %v652, %v650
        %v759 = vpack.c.b16 %v653, %v651
        %v760 = vpack.c.b16 %v656, %v654
        %v761 = vpack.c.b16 %v657, %v655
        %v762 = vpack.c.b16 %v660, %v658
        %v763 = vpack.c.b16 %v661, %v659
        %v764 = vpack.c.b16 %v664, %v662
        %v765 = vpack.c.b16 %v665, %v663
        %v766 = vpack.c.b16 %v668, %v666
        %v767 = vpack.c.b16 %v669, %v667
        %v768 = vpack.c.b16 %v672, %v670
        %v769 = vpack.c.b16 %v673, %v671
        %v770 = vpack.c.b16 %v676, %v674
        %v771 = vpack.c.b16 %v677, %v675
        %v772 = vpack.c.b16 %v680, %v678
        %v773 = vpack.c.b16 %v681, %v679
        %v774 = vpack.c.b16 %v684, %v682
        %v775 = vpack.c.b16 %v685, %v683
        %v776 = vpack.c.b16 %v688, %v686
        %v777 = vpack.c.b16 %v689, %v687
        %v778 = vpack.c.b16 %v692, %v690
        %v779 = vpack.c.b16 %v693, %v691
        %v780 = vpack.c.b16 %v696, %v694
        %v781 = vpack.c.b16 %v697, %v695
        %v782 = vpack.c.b16 %v700, %v698
        %v783 = vpack.c.b16 %v701, %v699
        %v784 = vpack.c.b16 %v704, %v702
        %v785 = vpack.c.b16 %v705, %v703
        %v786 = vpack.c.b16 %v708, %v706
        %v787 = vpack.c.b16 %v709, %v707
        %v788 = vpack.c.b16 %v712, %v710
        %v789 = vpack.c.b16 %v713, %v711
        %v790 = vpack.c.b16 %v716, %v714
        %v791 = vpack.c.b16 %v717, %v715
        %v792 = vpack.c.b16 %v720, %v718
        %v793 = vpack.c.b16 %v721, %v719
        %v794 = vpack.c.b16 %v724, %v722
        %v795 = vpack.c.b16 %v725, %v723
        %v796 = vpack.c.b16 %v728, %v726
        %v797 = vpack.c.b16 %v729, %v727
        %v798 = vpack.c.b16 %v732, %v730
        %v799 = vpack.c.b16 %v733, %v731
        %v800 = vpack.c.b16 %v736, %v734
        %v801 = vpack.c.b16 %v737, %v735
        %v898 = vunpack.c.l.b16 %v351
        %v899 = vunpack.c.l.b16 %v352
        %v900 = vunpack.c.l.b16 %v353
        %v901 = vunpack.c.l.b16 %v354
        %v902 = vunpack.c.l.b16 %v355
        %v903 = vunpack.c.l.b16 %v356
        %v904 = vunpack.c.l.b16 %v357
        %v905 = vunpack.c.l.b16 %v358
        %v906 = vunpack.c.l.b16 %v359
        %v907 = vunpack.c.l.b16 %v360
        %v908 = vunpack.c.l.b16 %v361
        %v909 = vunpack.c.l.b16 %v362
        %v910 = vunpack.c.l.b16 %v363
        %v911 = vunpack.c.l.b16 %v364
        %v912 = vunpack.c.l.b16 %v365
        %v913 = vunpack.c.l.b16 %v366
        %v914 = vunpack.c.l.b16 %v367
        %v915 = vunpack.c.l.b16 %v368
        %v916 = vunpack.c.l.b16 %v369
        %v917 = vunpack.c.l.b16 %v370
        %v918 = vunpack.c.l.b16 %v371
        %v919 = vunpack.c.l.b16 %v372
        %v920 = vunpack.c.l.b16 %v373
        %v921 = vunpack.c.l.b16 %v374
        %v922 = vunpack.c.l.b16 %v375
        %v923 = vunpack.c.l.b16 %v376
        %v924 = vunpack.c.l.b16 %v377
        %v925 = vunpack.c.l.b16 %v378
        %v926 = vunpack.c.l.b16 %v379
        %v927 = vunpack.c.l.b16 %v380
        %v928 = vunpack.c.l.b16 %v381
        %v929 = vunpack.c.l.b16 %v382
        %v930 = vpack.c.b16 %v899, %v898
        %v931 = vpack.c.b16 %v901, %v900
        %v932 = vpack.c.b16 %v903, %v902
        %v933 = vpack.c.b16 %v905, %v904
        %v934 = vpack.c.b16 %v907, %v906
        %v935 = vpack.c.b16 %v909, %v908
        %v936 = vpack.c.b16 %v911, %v910
        %v937 = vpack.c.b16 %v913, %v912
        %v938 = vpack.c.b16 %v915, %v914
        %v939 = vpack.c.b16 %v917, %v916
        %v940 = vpack.c.b16 %v919, %v918
        %v941 = vpack.c.b16 %v921, %v920
        %v942 = vpack.c.b16 %v923, %v922
        %v943 = vpack.c.b16 %v925, %v924
        %v944 = vpack.c.b16 %v927, %v926
        %v945 = vpack.c.b16 %v929, %v928
        %962 = vmatprep.subr.bf16.mxu0 0
        %963 = vmatpush1.bf16.msra.mxu0 %v930
        %964 = vmatprep.subr.bf16.mxu0 0
        %965 = vmatpush1.bf16.msra.mxu0 %v931
        %966 = vmatprep.subr.bf16.mxu0 0
        %967 = vmatpush1.bf16.msra.mxu0 %v932
        %968 = vmatprep.subr.bf16.mxu0 0
        %969 = vmatpush1.bf16.msra.mxu0 %v933
        %970 = vmatprep.subr.bf16.mxu0 0
        %971 = vmatpush1.bf16.msra.mxu0 %v934
        %972 = vmatprep.subr.bf16.mxu0 0
        %973 = vmatpush1.bf16.msra.mxu0 %v935
        %974 = vmatprep.subr.bf16.mxu0 0
        %975 = vmatpush1.bf16.msra.mxu0 %v936
        %976 = vmatprep.subr.bf16.mxu0 0
        %977 = vmatpush1.bf16.msra.mxu0 %v937
        %978 = vmatprep.subr.bf16.mxu0 0
        %979 = vmatpush1.bf16.msra.mxu0 %v938
        %980 = vmatprep.subr.bf16.mxu0 0
        %981 = vmatpush1.bf16.msra.mxu0 %v939
        %982 = vmatprep.subr.bf16.mxu0 0
        %983 = vmatpush1.bf16.msra.mxu0 %v940
        %984 = vmatprep.subr.bf16.mxu0 0
        %985 = vmatpush1.bf16.msra.mxu0 %v941
        %986 = vmatprep.subr.bf16.mxu0 0
        %987 = vmatpush1.bf16.msra.mxu0 %v942
        %988 = vmatprep.subr.bf16.mxu0 0
        %989 = vmatpush1.bf16.msra.mxu0 %v943
        %990 = vmatprep.subr.bf16.mxu0 0
        %991 = vmatpush1.bf16.msra.mxu0 %v944
        %992 = vmatprep.subr.bf16.mxu0 0
        %993 = vmatpush1.bf16.msra.mxu0 %v945
        %994 = vmatprep.mubr.bf16.mxu0 %v739
        %995 = vmatmul.mubr.bf16.gmra.mrb[0].mxu0 %v738
        %v996 = vpop.f32.mrb[0].mxu0
        %v997 = vadd.f32 0.0, %v996
        %v998 = vpop.f32.mrb[0].mxu0
        %v999 = vpop.f32.mrb[0].mxu0
        %v1000 = vadd.f32 0.0, %v999
        %v1001 = vpop.f32.mrb[0].mxu0
        %1002 = vmatprep.mubr.bf16.mxu0 %v741
        %1003 = vmatmul.mubr.bf16.gmra.mrb[0].mxu0 %v740
        %v1004 = vpop.f32.mrb[0].mxu0
        %v1005 = vadd.f32 0.0, %v1004
        %v1006 = vpop.f32.mrb[0].mxu0
        %v1007 = vpop.f32.mrb[0].mxu0
        %v1008 = vadd.f32 0.0, %v1007
        %v1009 = vpop.f32.mrb[0].mxu0
        %1010 = vmatprep.mubr.bf16.mxu0 %v743
        %1011 = vmatmul.mubr.bf16.gmra.mrb[0].mxu0 %v742
        %v1012 = vpop.f32.mrb[0].mxu0
        %v1013 = vadd.f32 0.0, %v1012
        %v1014 = vpop.f32.mrb[0].mxu0
        %v1015 = vpop.f32.mrb[0].mxu0
        %v1016 = vadd.f32 0.0, %v1015
        %v1017 = vpop.f32.mrb[0].mxu0
        %1018 = vmatprep.mubr.bf16.mxu0 %v745
        %1019 = vmatmul.mubr.bf16.gmra.mrb[0].mxu0 %v744
        %v1020 = vpop.f32.mrb[0].mxu0
        %v1021 = vadd.f32 0.0, %v1020
        %v1022 = vpop.f32.mrb[0].mxu0
        %v1023 = vpop.f32.mrb[0].mxu0
        %v1024 = vadd.f32 0.0, %v1023
        %v1025 = vpop.f32.mrb[0].mxu0
        %1026 = vmatprep.mubr.bf16.mxu0 %v747
        %1027 = vmatmul.mubr.bf16.gmra.mrb[0].mxu0 %v746
        %v1028 = vpop.f32.mrb[0].mxu0
        %v1029 = vadd.f32 0.0, %v1028
        %v1030 = vpop.f32.mrb[0].mxu0
        %v1031 = vpop.f32.mrb[0].mxu0
        %v1032 = vadd.f32 0.0, %v1031
        %v1033 = vpop.f32.mrb[0].mxu0
        %1034 = vmatprep.mubr.bf16.mxu0 %v749
        %1035 = vmatmul.mubr.bf16.gmra.mrb[0].mxu0 %v748
        %v1036 = vpop.f32.mrb[0].mxu0
        %v1037 = vadd.f32 0.0, %v1036
        %v1038 = vpop.f32.mrb[0].mxu0
        %v1039 = vpop.f32.mrb[0].mxu0
        %v1040 = vadd.f32 0.0, %v1039
        %v1041 = vpop.f32.mrb[0].mxu0
        %1042 = vmatprep.mubr.bf16.mxu0 %v751
        %1043 = vmatmul.mubr.bf16.gmra.mrb[0].mxu0 %v750
        %v1044 = vpop.f32.mrb[0].mxu0
        %v1045 = vadd.f32 0.0, %v1044
        %v1046 = vpop.f32.mrb[0].mxu0
        %v1047 = vpop.f32.mrb[0].mxu0
        %v1048 = vadd.f32 0.0, %v1047
        %v1049 = vpop.f32.mrb[0].mxu0
        %1050 = vmatprep.mubr.bf16.mxu0 %v753
        %1051 = vmatmul.mubr.bf16.gmra.mrb[0].mxu0 %v752
        %v1052 = vpop.f32.mrb[0].mxu0
        %v1053 = vadd.f32 0.0, %v1052
        %v1054 = vpop.f32.mrb[0].mxu0
        %v1055 = vpop.f32.mrb[0].mxu0
        %v1056 = vadd.f32 0.0, %v1055
        %v1057 = vpop.f32.mrb[0].mxu0
        %1058 = vmatprep.mubr.bf16.mxu0 %v755
        %1059 = vmatmul.mubr.bf16.gmra.mrb[0].mxu0 %v754
        %v1060 = vpop.f32.mrb[0].mxu0
        %v1061 = vadd.f32 0.0, %v1060
        %v1062 = vpop.f32.mrb[0].mxu0
        %v1063 = vpop.f32.mrb[0].mxu0
        %v1064 = vadd.f32 0.0, %v1063
        %v1065 = vpop.f32.mrb[0].mxu0
        %1066 = vmatprep.mubr.bf16.mxu0 %v757
        %1067 = vmatmul.mubr.bf16.gmra.mrb[0].mxu0 %v756
        %v1068 = vpop.f32.mrb[0].mxu0
        %v1069 = vadd.f32 0.0, %v1068
        %v1070 = vpop.f32.mrb[0].mxu0
        %v1071 = vpop.f32.mrb[0].mxu0
        %v1072 = vadd.f32 0.0, %v1071
        %v1073 = vpop.f32.mrb[0].mxu0
        %1074 = vmatprep.mubr.bf16.mxu0 %v759
        %1075 = vmatmul.mubr.bf16.gmra.mrb[0].mxu0 %v758
        %v1076 = vpop.f32.mrb[0].mxu0
        %v1077 = vadd.f32 0.0, %v1076
        %v1078 = vpop.f32.mrb[0].mxu0
        %v1079 = vpop.f32.mrb[0].mxu0
        %v1080 = vadd.f32 0.0, %v1079
        %v1081 = vpop.f32.mrb[0].mxu0
        %1082 = vmatprep.mubr.bf16.mxu0 %v761
        %1083 = vmatmul.mubr.bf16.gmra.mrb[0].mxu0 %v760
        %v1084 = vpop.f32.mrb[0].mxu0
        %v1085 = vadd.f32 0.0, %v1084
        %v1086 = vpop.f32.mrb[0].mxu0
        %v1087 = vpop.f32.mrb[0].mxu0
        %v1088 = vadd.f32 0.0, %v1087
        %v1089 = vpop.f32.mrb[0].mxu0
        %1090 = vmatprep.mubr.bf16.mxu0 %v763
        %1091 = vmatmul.mubr.bf16.gmra.mrb[0].mxu0 %v762
        %v1092 = vpop.f32.mrb[0].mxu0
        %v1093 = vadd.f32 0.0, %v1092
        %v1094 = vpop.f32.mrb[0].mxu0
        %v1095 = vpop.f32.mrb[0].mxu0
        %v1096 = vadd.f32 0.0, %v1095
        %v1097 = vpop.f32.mrb[0].mxu0
        %1098 = vmatprep.mubr.bf16.mxu0 %v765
        %1099 = vmatmul.mubr.bf16.gmra.mrb[0].mxu0 %v764
        %v1100 = vpop.f32.mrb[0].mxu0
        %v1101 = vadd.f32 0.0, %v1100
        %v1102 = vpop.f32.mrb[0].mxu0
        %v1103 = vpop.f32.mrb[0].mxu0
        %v1104 = vadd.f32 0.0, %v1103
        %v1105 = vpop.f32.mrb[0].mxu0
        %1106 = vmatprep.mubr.bf16.mxu0 %v767
        %1107 = vmatmul.mubr.bf16.gmra.mrb[0].mxu0 %v766
        %v1108 = vpop.f32.mrb[0].mxu0
        %v1109 = vadd.f32 0.0, %v1108
        %v1110 = vpop.f32.mrb[0].mxu0
        %v1111 = vpop.f32.mrb[0].mxu0
        %v1112 = vadd.f32 0.0, %v1111
        %v1113 = vpop.f32.mrb[0].mxu0
        %1114 = vmatprep.mubr.bf16.mxu0 %v769
        %1115 = vmatmul.mubr.bf16.gmra.mrb[0].mxu0 %v768
        %v1116 = vpop.f32.mrb[0].mxu0
        %v1117 = vadd.f32 0.0, %v1116
        %v1118 = vpop.f32.mrb[0].mxu0
        %v1119 = vpop.f32.mrb[0].mxu0
        %v1120 = vadd.f32 0.0, %v1119
        %v1121 = vpop.f32.mrb[0].mxu0
        %1122 = vmatprep.mubr.bf16.mxu0 %v771
        %1123 = vmatmul.mubr.bf16.gmra.mrb[0].mxu0 %v770
        %v1124 = vpop.f32.mrb[0].mxu0
        %v1125 = vadd.f32 0.0, %v1124
        %v1126 = vpop.f32.mrb[0].mxu0
        %v1127 = vpop.f32.mrb[0].mxu0
        %v1128 = vadd.f32 0.0, %v1127
        %v1129 = vpop.f32.mrb[0].mxu0
        %1130 = vmatprep.mubr.bf16.mxu0 %v773
        %1131 = vmatmul.mubr.bf16.gmra.mrb[0].mxu0 %v772
        %v1132 = vpop.f32.mrb[0].mxu0
        %v1133 = vadd.f32 0.0, %v1132
        %v1134 = vpop.f32.mrb[0].mxu0
        %v1135 = vpop.f32.mrb[0].mxu0
        %v1136 = vadd.f32 0.0, %v1135
        %v1137 = vpop.f32.mrb[0].mxu0
        %1138 = vmatprep.mubr.bf16.mxu0 %v775
        %1139 = vmatmul.mubr.bf16.gmra.mrb[0].mxu0 %v774
        %v1140 = vpop.f32.mrb[0].mxu0
        %v1141 = vadd.f32 0.0, %v1140
        %v1142 = vpop.f32.mrb[0].mxu0
        %v1143 = vpop.f32.mrb[0].mxu0
        %v1144 = vadd.f32 0.0, %v1143
        %v1145 = vpop.f32.mrb[0].mxu0
        %1146 = vmatprep.mubr.bf16.mxu0 %v777
        %1147 = vmatmul.mubr.bf16.gmra.mrb[0].mxu0 %v776
        %v1148 = vpop.f32.mrb[0].mxu0
        %v1149 = vadd.f32 0.0, %v1148
        %v1150 = vpop.f32.mrb[0].mxu0
        %v1151 = vpop.f32.mrb[0].mxu0
        %v1152 = vadd.f32 0.0, %v1151
        %v1153 = vpop.f32.mrb[0].mxu0
        %1154 = vmatprep.mubr.bf16.mxu0 %v779
        %1155 = vmatmul.mubr.bf16.gmra.mrb[0].mxu0 %v778
        %v1156 = vpop.f32.mrb[0].mxu0
        %v1157 = vadd.f32 0.0, %v1156
        %v1158 = vpop.f32.mrb[0].mxu0
        %v1159 = vpop.f32.mrb[0].mxu0
        %v1160 = vadd.f32 0.0, %v1159
        %v1161 = vpop.f32.mrb[0].mxu0
        %1162 = vmatprep.mubr.bf16.mxu0 %v781
        %1163 = vmatmul.mubr.bf16.gmra.mrb[0].mxu0 %v780
        %v1164 = vpop.f32.mrb[0].mxu0
        %v1165 = vadd.f32 0.0, %v1164
        %v1166 = vpop.f32.mrb[0].mxu0
        %v1167 = vpop.f32.mrb[0].mxu0
        %v1168 = vadd.f32 0.0, %v1167
        %v1169 = vpop.f32.mrb[0].mxu0
        %1170 = vmatprep.mubr.bf16.mxu0 %v783
        %1171 = vmatmul.mubr.bf16.gmra.mrb[0].mxu0 %v782
        %v1172 = vpop.f32.mrb[0].mxu0
        %v1173 = vadd.f32 0.0, %v1172
        %v1174 = vpop.f32.mrb[0].mxu0
        %v1175 = vpop.f32.mrb[0].mxu0
        %v1176 = vadd.f32 0.0, %v1175
        %v1177 = vpop.f32.mrb[0].mxu0
        %1178 = vmatprep.mubr.bf16.mxu0 %v785
        %1179 = vmatmul.mubr.bf16.gmra.mrb[0].mxu0 %v784
        %v1180 = vpop.f32.mrb[0].mxu0
        %v1181 = vadd.f32 0.0, %v1180
        %v1182 = vpop.f32.mrb[0].mxu0
        %v1183 = vpop.f32.mrb[0].mxu0
        %v1184 = vadd.f32 0.0, %v1183
        %v1185 = vpop.f32.mrb[0].mxu0
        %1186 = vmatprep.mubr.bf16.mxu0 %v787
        %1187 = vmatmul.mubr.bf16.gmra.mrb[0].mxu0 %v786
        %v1188 = vpop.f32.mrb[0].mxu0
        %v1189 = vadd.f32 0.0, %v1188
        %v1190 = vpop.f32.mrb[0].mxu0
        %v1191 = vpop.f32.mrb[0].mxu0
        %v1192 = vadd.f32 0.0, %v1191
        %v1193 = vpop.f32.mrb[0].mxu0
        %1194 = vmatprep.mubr.bf16.mxu0 %v789
        %1195 = vmatmul.mubr.bf16.gmra.mrb[0].mxu0 %v788
        %v1196 = vpop.f32.mrb[0].mxu0
        %v1197 = vadd.f32 0.0, %v1196
        %v1198 = vpop.f32.mrb[0].mxu0
        %v1199 = vpop.f32.mrb[0].mxu0
        %v1200 = vadd.f32 0.0, %v1199
        %v1201 = vpop.f32.mrb[0].mxu0
        %1202 = vmatprep.mubr.bf16.mxu0 %v791
        %1203 = vmatmul.mubr.bf16.gmra.mrb[0].mxu0 %v790
        %v1204 = vpop.f32.mrb[0].mxu0
        %v1205 = vadd.f32 0.0, %v1204
        %v1206 = vpop.f32.mrb[0].mxu0
        %v1207 = vpop.f32.mrb[0].mxu0
        %v1208 = vadd.f32 0.0, %v1207
        %v1209 = vpop.f32.mrb[0].mxu0
        %1210 = vmatprep.mubr.bf16.mxu0 %v793
        %1211 = vmatmul.mubr.bf16.gmra.mrb[0].mxu0 %v792
        %v1212 = vpop.f32.mrb[0].mxu0
        %v1213 = vadd.f32 0.0, %v1212
        %v1214 = vpop.f32.mrb[0].mxu0
        %v1215 = vpop.f32.mrb[0].mxu0
        %v1216 = vadd.f32 0.0, %v1215
        %v1217 = vpop.f32.mrb[0].mxu0
        %1218 = vmatprep.mubr.bf16.mxu0 %v795
        %1219 = vmatmul.mubr.bf16.gmra.mrb[0].mxu0 %v794
        %v1220 = vpop.f32.mrb[0].mxu0
        %v1221 = vadd.f32 0.0, %v1220
        %v1222 = vpop.f32.mrb[0].mxu0
        %v1223 = vpop.f32.mrb[0].mxu0
        %v1224 = vadd.f32 0.0, %v1223
        %v1225 = vpop.f32.mrb[0].mxu0
        %1226 = vmatprep.mubr.bf16.mxu0 %v797
        %1227 = vmatmul.mubr.bf16.gmra.mrb[0].mxu0 %v796
        %v1228 = vpop.f32.mrb[0].mxu0
        %v1229 = vadd.f32 0.0, %v1228
        %v1230 = vpop.f32.mrb[0].mxu0
        %v1231 = vpop.f32.mrb[0].mxu0
        %v1232 = vadd.f32 0.0, %v1231
        %v1233 = vpop.f32.mrb[0].mxu0
        %1234 = vmatprep.mubr.bf16.mxu0 %v799
        %1235 = vmatmul.mubr.bf16.gmra.mrb[0].mxu0 %v798
        %v1236 = vpop.f32.mrb[0].mxu0
        %v1237 = vadd.f32 0.0, %v1236
        %v1238 = vpop.f32.mrb[0].mxu0
        %v1239 = vpop.f32.mrb[0].mxu0
        %v1240 = vadd.f32 0.0, %v1239
        %v1241 = vpop.f32.mrb[0].mxu0
        %1242 = vmatprep.mubr.bf16.mxu0 %v801
        %1243 = vmatmul.mubr.bf16.gmra.mrb[0].mxu0 %v800
        %v1244 = vpop.f32.mrb[0].mxu0
        %v1245 = vadd.f32 0.0, %v1244
        %v1246 = vpop.f32.mrb[0].mxu0
        %v1247 = vpop.f32.mrb[0].mxu0
        %v1248 = vadd.f32 0.0, %v1247
        %v1249 = vpop.f32.mrb[0].mxu0
        %1250 = vdwg.mxu0
        %v1251 = vpack.c.bf16 %v1000, %v997
        %v1252 = vpack.c.bf16 %v1008, %v1005
        %v1253 = vpack.c.bf16 %v1016, %v1013
        %v1254 = vpack.c.bf16 %v1024, %v1021
        %v1255 = vpack.c.bf16 %v1032, %v1029
        %v1256 = vpack.c.bf16 %v1040, %v1037
        %v1257 = vpack.c.bf16 %v1048, %v1045
        %v1258 = vpack.c.bf16 %v1056, %v1053
        %v1259 = vpack.c.bf16 %v1064, %v1061
        %v1260 = vpack.c.bf16 %v1072, %v1069
        %v1261 = vpack.c.bf16 %v1080, %v1077
        %v1262 = vpack.c.bf16 %v1088, %v1085
        %v1263 = vpack.c.bf16 %v1096, %v1093
        %v1264 = vpack.c.bf16 %v1104, %v1101
        %v1265 = vpack.c.bf16 %v1112, %v1109
        %v1266 = vpack.c.bf16 %v1120, %v1117
        %v1267 = vpack.c.bf16 %v1128, %v1125
        %v1268 = vpack.c.bf16 %v1136, %v1133
        %v1269 = vpack.c.bf16 %v1144, %v1141
        %v1270 = vpack.c.bf16 %v1152, %v1149
        %v1271 = vpack.c.bf16 %v1160, %v1157
        %v1272 = vpack.c.bf16 %v1168, %v1165
        %v1273 = vpack.c.bf16 %v1176, %v1173
        %v1274 = vpack.c.bf16 %v1184, %v1181
        %v1275 = vpack.c.bf16 %v1192, %v1189
        %v1276 = vpack.c.bf16 %v1200, %v1197
        %v1277 = vpack.c.bf16 %v1208, %v1205
        %v1278 = vpack.c.bf16 %v1216, %v1213
        %v1279 = vpack.c.bf16 %v1224, %v1221
        %v1280 = vpack.c.bf16 %v1232, %v1229
        %v1281 = vpack.c.bf16 %v1240, %v1237
        %v1282 = vpack.c.bf16 %v1248, %v1245
        %1299 = vrot.lane.b32.xlu0 %v1267, 8
        %v1300 = vpop.permute.xlu0 %1299
        %1301 = vrot.lane.b32.xlu0 %v1268, 8
        %v1302 = vpop.permute.xlu0 %1301
        %1303 = vrot.lane.b32.xlu0 %v1269, 8
        %v1304 = vpop.permute.xlu0 %1303
        %1305 = vrot.lane.b32.xlu0 %v1270, 8
        %v1306 = vpop.permute.xlu0 %1305
        %1307 = vrot.lane.b32.xlu0 %v1271, 8
        %v1308 = vpop.permute.xlu0 %1307
        %1309 = vrot.lane.b32.xlu0 %v1272, 8
        %v1310 = vpop.permute.xlu0 %1309
        %1311 = vrot.lane.b32.xlu0 %v1273, 8
        %v1312 = vpop.permute.xlu0 %1311
        %1313 = vrot.lane.b32.xlu0 %v1274, 8
        %v1314 = vpop.permute.xlu0 %1313
        %1315 = vrot.lane.b32.xlu0 %v1275, 8
        %v1316 = vpop.permute.xlu0 %1315
        %1317 = vrot.lane.b32.xlu0 %v1276, 8
        %v1318 = vpop.permute.xlu0 %1317
        %1319 = vrot.lane.b32.xlu0 %v1277, 8
        %v1320 = vpop.permute.xlu0 %1319
        %1321 = vrot.lane.b32.xlu0 %v1278, 8
        %v1322 = vpop.permute.xlu0 %1321
        %1323 = vrot.lane.b32.xlu0 %v1279, 8
        %v1324 = vpop.permute.xlu0 %1323
        %1325 = vrot.lane.b32.xlu0 %v1280, 8
        %v1326 = vpop.permute.xlu0 %1325
        %1327 = vrot.lane.b32.xlu0 %v1281, 8
        %v1328 = vpop.permute.xlu0 %1327
        %1329 = vrot.lane.b32.xlu0 %v1282, 8
        %v1330 = vpop.permute.xlu0 %1329
        %vm1331 = vcmask 64512
        %v1334 = vsel %vm1331, %v1251, %v1300
        %v1337 = vsel %vm1331, %v1252, %v1302
        %v1340 = vsel %vm1331, %v1253, %v1304
        %v1343 = vsel %vm1331, %v1254, %v1306
        %v1346 = vsel %vm1331, %v1255, %v1308
        %v1349 = vsel %vm1331, %v1256, %v1310
        %v1352 = vsel %vm1331, %v1257, %v1312
        %v1355 = vsel %vm1331, %v1258, %v1314
        %v1358 = vsel %vm1331, %v1259, %v1316
        %v1361 = vsel %vm1331, %v1260, %v1318
        %v1364 = vsel %vm1331, %v1261, %v1320
        %v1367 = vsel %vm1331, %v1262, %v1322
        %v1370 = vsel %vm1331, %v1263, %v1324
        %v1373 = vsel %vm1331, %v1264, %v1326
        %v1376 = vsel %vm1331, %v1265, %v1328
        %v1379 = vsel %vm1331, %v1266, %v1330
        %v1382 = vunpack.c.l.b16 %v447
        %v1383 = vunpack.c.l.b16 %v448
        %v1384 = vpack.c.b16 %v1383, %v1382
        %vm1386 = vcmask 130048
        %v1387 = vsel %vm1386, %v1334, 0
        %1389 = vmatprep.subr.bf16.mxu0 0
        %1390 = vmatpush1.bf16.msra.mxu0 %v1384
        %1391 = vmatprep.subr.bf16.mxu0 0
        %1392 = vmatpush1.bf16.msra.mxu0 0
        %1393 = vmatprep.subr.bf16.mxu0 0
        %1394 = vmatpush1.bf16.msra.mxu0 0
        %1395 = vmatprep.subr.bf16.mxu0 0
        %1396 = vmatpush1.bf16.msra.mxu0 0
        %1397 = vmatprep.subr.bf16.mxu0 0
        %1398 = vmatpush1.bf16.msra.mxu0 0
        %1399 = vmatprep.subr.bf16.mxu0 0
        %1400 = vmatpush1.bf16.msra.mxu0 0
        %1401 = vmatprep.subr.bf16.mxu0 0
        %1402 = vmatpush1.bf16.msra.mxu0 0
        %1403 = vmatprep.subr.bf16.mxu0 0
        %1404 = vmatpush1.bf16.msra.mxu0 0
        %1405 = vmatprep.subr.bf16.mxu0 0
        %1406 = vmatpush1.bf16.msra.mxu0 0
        %1407 = vmatprep.subr.bf16.mxu0 0
        %1408 = vmatpush1.bf16.msra.mxu0 0
        %1409 = vmatprep.subr.bf16.mxu0 0
        %1410 = vmatpush1.bf16.msra.mxu0 0
        %1411 = vmatprep.subr.bf16.mxu0 0
        %1412 = vmatpush1.bf16.msra.mxu0 0
        %1413 = vmatprep.subr.bf16.mxu0 0
        %1414 = vmatpush1.bf16.msra.mxu0 0
        %1415 = vmatprep.subr.bf16.mxu0 0
        %1416 = vmatpush1.bf16.msra.mxu0 0
        %1417 = vmatprep.subr.bf16.mxu0 0
        %1418 = vmatpush1.bf16.msra.mxu0 0
        %1419 = vmatprep.subr.bf16.mxu0 0
        %1420 = vmatpush1.bf16.msra.mxu0 0
        %1421 = vmatprep.mubr.bf16.mxu0 0
        %1422 = vmatmul.mubr.bf16.gmra.mrb[0].mxu0 %v1387
        %v1423 = vpop.f32.mrb[0].mxu0
        %v1424 = vadd.f32 0.0, %v1423
        %v1425 = vpop.f32.mrb[0].mxu0
        %v1426 = vpop.f32.mrb[0].mxu0
        %v1427 = vadd.f32 0.0, %v1426
        %v1428 = vpop.f32.mrb[0].mxu0
        %1429 = vdwg.mxu0
        %v1432 = vunpack.c.l.b16 %v449
        %v1433 = vunpack.c.l.b16 %v450
        %v1434 = vpack.c.b16 %v1433, %v1432
        %v1436 = vsel %vm1386, %v1337, 0
        %1438 = vmatprep.subr.bf16.mxu0 0
        %1439 = vmatpush1.bf16.msra.mxu0 %v1434
        %1440 = vmatprep.subr.bf16.mxu0 0
        %1441 = vmatpush1.bf16.msra.mxu0 0
        %1442 = vmatprep.subr.bf16.mxu0 0
        %1443 = vmatpush1.bf16.msra.mxu0 0
        %1444 = vmatprep.subr.bf16.mxu0 0
        %1445 = vmatpush1.bf16.msra.mxu0 0
        %1446 = vmatprep.subr.bf16.mxu0 0
        %1447 = vmatpush1.bf16.msra.mxu0 0
        %1448 = vmatprep.subr.bf16.mxu0 0
        %1449 = vmatpush1.bf16.msra.mxu0 0
        %1450 = vmatprep.subr.bf16.mxu0 0
        %1451 = vmatpush1.bf16.msra.mxu0 0
        %1452 = vmatprep.subr.bf16.mxu0 0
        %1453 = vmatpush1.bf16.msra.mxu0 0
        %1454 = vmatprep.subr.bf16.mxu0 0
        %1455 = vmatpush1.bf16.msra.mxu0 0
        %1456 = vmatprep.subr.bf16.mxu0 0
        %1457 = vmatpush1.bf16.msra.mxu0 0
        %1458 = vmatprep.subr.bf16.mxu0 0
        %1459 = vmatpush1.bf16.msra.mxu0 0
        %1460 = vmatprep.subr.bf16.mxu0 0
        %1461 = vmatpush1.bf16.msra.mxu0 0
        %1462 = vmatprep.subr.bf16.mxu0 0
        %1463 = vmatpush1.bf16.msra.mxu0 0
        %1464 = vmatprep.subr.bf16.mxu0 0
        %1465 = vmatpush1.bf16.msra.mxu0 0
        %1466 = vmatprep.subr.bf16.mxu0 0
        %1467 = vmatpush1.bf16.msra.mxu0 0
        %1468 = vmatprep.subr.bf16.mxu0 0
        %1469 = vmatpush1.bf16.msra.mxu0 0
        %1470 = vmatprep.mubr.bf16.mxu0 0
        %1471 = vmatmul.mubr.bf16.gmra.mrb[0].mxu0 %v1436
        %v1472 = vpop.f32.mrb[0].mxu0
        %v1473 = vadd.f32 0.0, %v1472
        %v1474 = vpop.f32.mrb[0].mxu0
        %v1475 = vpop.f32.mrb[0].mxu0
        %v1476 = vadd.f32 0.0, %v1475
        %v1477 = vpop.f32.mrb[0].mxu0
        %1478 = vdwg.mxu0
        %v1481 = vunpack.c.l.b16 %v451
        %v1482 = vunpack.c.l.b16 %v452
        %v1483 = vpack.c.b16 %v1482, %v1481
        %v1485 = vsel %vm1386, %v1340, 0
        %1487 = vmatprep.subr.bf16.mxu0 0
        %1488 = vmatpush1.bf16.msra.mxu0 %v1483
        %1489 = vmatprep.subr.bf16.mxu0 0
        %1490 = vmatpush1.bf16.msra.mxu0 0
        %1491 = vmatprep.subr.bf16.mxu0 0
        %1492 = vmatpush1.bf16.msra.mxu0 0
        %1493 = vmatprep.subr.bf16.mxu0 0
        %1494 = vmatpush1.bf16.msra.mxu0 0
        %1495 = vmatprep.subr.bf16.mxu0 0
        %1496 = vmatpush1.bf16.msra.mxu0 0
        %1497 = vmatprep.subr.bf16.mxu0 0
        %1498 = vmatpush1.bf16.msra.mxu0 0
        %1499 = vmatprep.subr.bf16.mxu0 0
        %1500 = vmatpush1.bf16.msra.mxu0 0
        %1501 = vmatprep.subr.bf16.mxu0 0
        %1502 = vmatpush1.bf16.msra.mxu0 0
        %1503 = vmatprep.subr.bf16.mxu0 0
        %1504 = vmatpush1.bf16.msra.mxu0 0
        %1505 = vmatprep.subr.bf16.mxu0 0
        %1506 = vmatpush1.bf16.msra.mxu0 0
        %1507 = vmatprep.subr.bf16.mxu0 0
        %1508 = vmatpush1.bf16.msra.mxu0 0
        %1509 = vmatprep.subr.bf16.mxu0 0
        %1510 = vmatpush1.bf16.msra.mxu0 0
        %1511 = vmatprep.subr.bf16.mxu0 0
        %1512 = vmatpush1.bf16.msra.mxu0 0
        %1513 = vmatprep.subr.bf16.mxu0 0
        %1514 = vmatpush1.bf16.msra.mxu0 0
        %1515 = vmatprep.subr.bf16.mxu0 0
        %1516 = vmatpush1.bf16.msra.mxu0 0
        %1517 = vmatprep.subr.bf16.mxu0 0
        %1518 = vmatpush1.bf16.msra.mxu0 0
        %1519 = vmatprep.mubr.bf16.mxu0 0
        %1520 = vmatmul.mubr.bf16.gmra.mrb[0].mxu0 %v1485
        %v1521 = vpop.f32.mrb[0].mxu0
        %v1522 = vadd.f32 0.0, %v1521
        %v1523 = vpop.f32.mrb[0].mxu0
        %v1524 = vpop.f32.mrb[0].mxu0
        %v1525 = vadd.f32 0.0, %v1524
        %v1526 = vpop.f32.mrb[0].mxu0
        %1527 = vdwg.mxu0
        %v1530 = vunpack.c.l.b16 %v453
        %v1531 = vunpack.c.l.b16 %v454
        %v1532 = vpack.c.b16 %v1531, %v1530
        %v1534 = vsel %vm1386, %v1343, 0
        %1536 = vmatprep.subr.bf16.mxu0 0
        %1537 = vmatpush1.bf16.msra.mxu0 %v1532
        %1538 = vmatprep.subr.bf16.mxu0 0
        %1539 = vmatpush1.bf16.msra.mxu0 0
        %1540 = vmatprep.subr.bf16.mxu0 0
        %1541 = vmatpush1.bf16.msra.mxu0 0
        %1542 = vmatprep.subr.bf16.mxu0 0
        %1543 = vmatpush1.bf16.msra.mxu0 0
        %1544 = vmatprep.subr.bf16.mxu0 0
        %1545 = vmatpush1.bf16.msra.mxu0 0
        %1546 = vmatprep.subr.bf16.mxu0 0
        %1547 = vmatpush1.bf16.msra.mxu0 0
        %1548 = vmatprep.subr.bf16.mxu0 0
        %1549 = vmatpush1.bf16.msra.mxu0 0
        %1550 = vmatprep.subr.bf16.mxu0 0
        %1551 = vmatpush1.bf16.msra.mxu0 0
        %1552 = vmatprep.subr.bf16.mxu0 0
        %1553 = vmatpush1.bf16.msra.mxu0 0
        %1554 = vmatprep.subr.bf16.mxu0 0
        %1555 = vmatpush1.bf16.msra.mxu0 0
        %1556 = vmatprep.subr.bf16.mxu0 0
        %1557 = vmatpush1.bf16.msra.mxu0 0
        %1558 = vmatprep.subr.bf16.mxu0 0
        %1559 = vmatpush1.bf16.msra.mxu0 0
        %1560 = vmatprep.subr.bf16.mxu0 0
        %1561 = vmatpush1.bf16.msra.mxu0 0
        %1562 = vmatprep.subr.bf16.mxu0 0
        %1563 = vmatpush1.bf16.msra.mxu0 0
        %1564 = vmatprep.subr.bf16.mxu0 0
        %1565 = vmatpush1.bf16.msra.mxu0 0
        %1566 = vmatprep.subr.bf16.mxu0 0
        %1567 = vmatpush1.bf16.msra.mxu0 0
        %1568 = vmatprep.mubr.bf16.mxu0 0
        %1569 = vmatmul.mubr.bf16.gmra.mrb[0].mxu0 %v1534
        %v1570 = vpop.f32.mrb[0].mxu0
        %v1571 = vadd.f32 0.0, %v1570
        %v1572 = vpop.f32.mrb[0].mxu0
        %v1573 = vpop.f32.mrb[0].mxu0
        %v1574 = vadd.f32 0.0, %v1573
        %v1575 = vpop.f32.mrb[0].mxu0
        %1576 = vdwg.mxu0
        %v1579 = vunpack.c.l.b16 %v455
        %v1580 = vunpack.c.l.b16 %v456
        %v1581 = vpack.c.b16 %v1580, %v1579
        %v1583 = vsel %vm1386, %v1346, 0
        %1585 = vmatprep.subr.bf16.mxu0 0
        %1586 = vmatpush1.bf16.msra.mxu0 %v1581
        %1587 = vmatprep.subr.bf16.mxu0 0
        %1588 = vmatpush1.bf16.msra.mxu0 0
        %1589 = vmatprep.subr.bf16.mxu0 0
        %1590 = vmatpush1.bf16.msra.mxu0 0
        %1591 = vmatprep.subr.bf16.mxu0 0
        %1592 = vmatpush1.bf16.msra.mxu0 0
        %1593 = vmatprep.subr.bf16.mxu0 0
        %1594 = vmatpush1.bf16.msra.mxu0 0
        %1595 = vmatprep.subr.bf16.mxu0 0
        %1596 = vmatpush1.bf16.msra.mxu0 0
        %1597 = vmatprep.subr.bf16.mxu0 0
        %1598 = vmatpush1.bf16.msra.mxu0 0
        %1599 = vmatprep.subr.bf16.mxu0 0
        %1600 = vmatpush1.bf16.msra.mxu0 0
        %1601 = vmatprep.subr.bf16.mxu0 0
        %1602 = vmatpush1.bf16.msra.mxu0 0
        %1603 = vmatprep.subr.bf16.mxu0 0
        %1604 = vmatpush1.bf16.msra.mxu0 0
        %1605 = vmatprep.subr.bf16.mxu0 0
        %1606 = vmatpush1.bf16.msra.mxu0 0
        %1607 = vmatprep.subr.bf16.mxu0 0
        %1608 = vmatpush1.bf16.msra.mxu0 0
        %1609 = vmatprep.subr.bf16.mxu0 0
        %1610 = vmatpush1.bf16.msra.mxu0 0
        %1611 = vmatprep.subr.bf16.mxu0 0
        %1612 = vmatpush1.bf16.msra.mxu0 0
        %1613 = vmatprep.subr.bf16.mxu0 0
        %1614 = vmatpush1.bf16.msra.mxu0 0
        %1615 = vmatprep.subr.bf16.mxu0 0
        %1616 = vmatpush1.bf16.msra.mxu0 0
        %1617 = vmatprep.mubr.bf16.mxu0 0
        %1618 = vmatmul.mubr.bf16.gmra.mrb[0].mxu0 %v1583
        %v1619 = vpop.f32.mrb[0].mxu0
        %v1620 = vadd.f32 0.0, %v1619
        %v1621 = vpop.f32.mrb[0].mxu0
        %v1622 = vpop.f32.mrb[0].mxu0
        %v1623 = vadd.f32 0.0, %v1622
        %v1624 = vpop.f32.mrb[0].mxu0
        %1625 = vdwg.mxu0
        %v1628 = vunpack.c.l.b16 %v457
        %v1629 = vunpack.c.l.b16 %v458
        %v1630 = vpack.c.b16 %v1629, %v1628
        %v1632 = vsel %vm1386, %v1349, 0
        %1634 = vmatprep.subr.bf16.mxu0 0
        %1635 = vmatpush1.bf16.msra.mxu0 %v1630
        %1636 = vmatprep.subr.bf16.mxu0 0
        %1637 = vmatpush1.bf16.msra.mxu0 0
        %1638 = vmatprep.subr.bf16.mxu0 0
        %1639 = vmatpush1.bf16.msra.mxu0 0
        %1640 = vmatprep.subr.bf16.mxu0 0
        %1641 = vmatpush1.bf16.msra.mxu0 0
        %1642 = vmatprep.subr.bf16.mxu0 0
        %1643 = vmatpush1.bf16.msra.mxu0 0
        %1644 = vmatprep.subr.bf16.mxu0 0
        %1645 = vmatpush1.bf16.msra.mxu0 0
        %1646 = vmatprep.subr.bf16.mxu0 0
        %1647 = vmatpush1.bf16.msra.mxu0 0
        %1648 = vmatprep.subr.bf16.mxu0 0
        %1649 = vmatpush1.bf16.msra.mxu0 0
        %1650 = vmatprep.subr.bf16.mxu0 0
        %1651 = vmatpush1.bf16.msra.mxu0 0
        %1652 = vmatprep.subr.bf16.mxu0 0
        %1653 = vmatpush1.bf16.msra.mxu0 0
        %1654 = vmatprep.subr.bf16.mxu0 0
        %1655 = vmatpush1.bf16.msra.mxu0 0
        %1656 = vmatprep.subr.bf16.mxu0 0
        %1657 = vmatpush1.bf16.msra.mxu0 0
        %1658 = vmatprep.subr.bf16.mxu0 0
        %1659 = vmatpush1.bf16.msra.mxu0 0
        %1660 = vmatprep.subr.bf16.mxu0 0
        %1661 = vmatpush1.bf16.msra.mxu0 0
        %1662 = vmatprep.subr.bf16.mxu0 0
        %1663 = vmatpush1.bf16.msra.mxu0 0
        %1664 = vmatprep.subr.bf16.mxu0 0
        %1665 = vmatpush1.bf16.msra.mxu0 0
        %1666 = vmatprep.mubr.bf16.mxu0 0
        %1667 = vmatmul.mubr.bf16.gmra.mrb[0].mxu0 %v1632
        %v1668 = vpop.f32.mrb[0].mxu0
        %v1669 = vadd.f32 0.0, %v1668
        %v1670 = vpop.f32.mrb[0].mxu0
        %v1671 = vpop.f32.mrb[0].mxu0
        %v1672 = vadd.f32 0.0, %v1671
        %v1673 = vpop.f32.mrb[0].mxu0
        %1674 = vdwg.mxu0
        %v1677 = vunpack.c.l.b16 %v459
        %v1678 = vunpack.c.l.b16 %v460
        %v1679 = vpack.c.b16 %v1678, %v1677
        %v1681 = vsel %vm1386, %v1352, 0
        %1683 = vmatprep.subr.bf16.mxu0 0
        %1684 = vmatpush1.bf16.msra.mxu0 %v1679
        %1685 = vmatprep.subr.bf16.mxu0 0
        %1686 = vmatpush1.bf16.msra.mxu0 0
        %1687 = vmatprep.subr.bf16.mxu0 0
        %1688 = vmatpush1.bf16.msra.mxu0 0
        %1689 = vmatprep.subr.bf16.mxu0 0
        %1690 = vmatpush1.bf16.msra.mxu0 0
        %1691 = vmatprep.subr.bf16.mxu0 0
        %1692 = vmatpush1.bf16.msra.mxu0 0
        %1693 = vmatprep.subr.bf16.mxu0 0
        %1694 = vmatpush1.bf16.msra.mxu0 0
        %1695 = vmatprep.subr.bf16.mxu0 0
        %1696 = vmatpush1.bf16.msra.mxu0 0
        %1697 = vmatprep.subr.bf16.mxu0 0
        %1698 = vmatpush1.bf16.msra.mxu0 0
        %1699 = vmatprep.subr.bf16.mxu0 0
        %1700 = vmatpush1.bf16.msra.mxu0 0
        %1701 = vmatprep.subr.bf16.mxu0 0
        %1702 = vmatpush1.bf16.msra.mxu0 0
        %1703 = vmatprep.subr.bf16.mxu0 0
        %1704 = vmatpush1.bf16.msra.mxu0 0
        %1705 = vmatprep.subr.bf16.mxu0 0
        %1706 = vmatpush1.bf16.msra.mxu0 0
        %1707 = vmatprep.subr.bf16.mxu0 0
        %1708 = vmatpush1.bf16.msra.mxu0 0
        %1709 = vmatprep.subr.bf16.mxu0 0
        %1710 = vmatpush1.bf16.msra.mxu0 0
        %1711 = vmatprep.subr.bf16.mxu0 0
        %1712 = vmatpush1.bf16.msra.mxu0 0
        %1713 = vmatprep.subr.bf16.mxu0 0
        %1714 = vmatpush1.bf16.msra.mxu0 0
        %1715 = vmatprep.mubr.bf16.mxu0 0
        %1716 = vmatmul.mubr.bf16.gmra.mrb[0].mxu0 %v1681
        %v1717 = vpop.f32.mrb[0].mxu0
        %v1718 = vadd.f32 0.0, %v1717
        %v1719 = vpop.f32.mrb[0].mxu0
        %v1720 = vpop.f32.mrb[0].mxu0
        %v1721 = vadd.f32 0.0, %v1720
        %v1722 = vpop.f32.mrb[0].mxu0
        %1723 = vdwg.mxu0
        %v1726 = vunpack.c.l.b16 %v461
        %v1727 = vunpack.c.l.b16 %v462
        %v1728 = vpack.c.b16 %v1727, %v1726
        %v1730 = vsel %vm1386, %v1355, 0
        %1732 = vmatprep.subr.bf16.mxu0 0
        %1733 = vmatpush1.bf16.msra.mxu0 %v1728
        %1734 = vmatprep.subr.bf16.mxu0 0
        %1735 = vmatpush1.bf16.msra.mxu0 0
        %1736 = vmatprep.subr.bf16.mxu0 0
        %1737 = vmatpush1.bf16.msra.mxu0 0
        %1738 = vmatprep.subr.bf16.mxu0 0
        %1739 = vmatpush1.bf16.msra.mxu0 0
        %1740 = vmatprep.subr.bf16.mxu0 0
        %1741 = vmatpush1.bf16.msra.mxu0 0
        %1742 = vmatprep.subr.bf16.mxu0 0
        %1743 = vmatpush1.bf16.msra.mxu0 0
        %1744 = vmatprep.subr.bf16.mxu0 0
        %1745 = vmatpush1.bf16.msra.mxu0 0
        %1746 = vmatprep.subr.bf16.mxu0 0
        %1747 = vmatpush1.bf16.msra.mxu0 0
        %1748 = vmatprep.subr.bf16.mxu0 0
        %1749 = vmatpush1.bf16.msra.mxu0 0
        %1750 = vmatprep.subr.bf16.mxu0 0
        %1751 = vmatpush1.bf16.msra.mxu0 0
        %1752 = vmatprep.subr.bf16.mxu0 0
        %1753 = vmatpush1.bf16.msra.mxu0 0
        %1754 = vmatprep.subr.bf16.mxu0 0
        %1755 = vmatpush1.bf16.msra.mxu0 0
        %1756 = vmatprep.subr.bf16.mxu0 0
        %1757 = vmatpush1.bf16.msra.mxu0 0
        %1758 = vmatprep.subr.bf16.mxu0 0
        %1759 = vmatpush1.bf16.msra.mxu0 0
        %1760 = vmatprep.subr.bf16.mxu0 0
        %1761 = vmatpush1.bf16.msra.mxu0 0
        %1762 = vmatprep.subr.bf16.mxu0 0
        %1763 = vmatpush1.bf16.msra.mxu0 0
        %1764 = vmatprep.mubr.bf16.mxu0 0
        %1765 = vmatmul.mubr.bf16.gmra.mrb[0].mxu0 %v1730
        %v1766 = vpop.f32.mrb[0].mxu0
        %v1767 = vadd.f32 0.0, %v1766
        %v1768 = vpop.f32.mrb[0].mxu0
        %v1769 = vpop.f32.mrb[0].mxu0
        %v1770 = vadd.f32 0.0, %v1769
        %v1771 = vpop.f32.mrb[0].mxu0
        %1772 = vdwg.mxu0
        %v1775 = vunpack.c.l.b16 %v463
        %v1776 = vunpack.c.l.b16 %v464
        %v1777 = vpack.c.b16 %v1776, %v1775
        %v1779 = vsel %vm1386, %v1358, 0
        %1781 = vmatprep.subr.bf16.mxu0 0
        %1782 = vmatpush1.bf16.msra.mxu0 %v1777
        %1783 = vmatprep.subr.bf16.mxu0 0
        %1784 = vmatpush1.bf16.msra.mxu0 0
        %1785 = vmatprep.subr.bf16.mxu0 0
        %1786 = vmatpush1.bf16.msra.mxu0 0
        %1787 = vmatprep.subr.bf16.mxu0 0
        %1788 = vmatpush1.bf16.msra.mxu0 0
        %1789 = vmatprep.subr.bf16.mxu0 0
        %1790 = vmatpush1.bf16.msra.mxu0 0
        %1791 = vmatprep.subr.bf16.mxu0 0
        %1792 = vmatpush1.bf16.msra.mxu0 0
        %1793 = vmatprep.subr.bf16.mxu0 0
        %1794 = vmatpush1.bf16.msra.mxu0 0
        %1795 = vmatprep.subr.bf16.mxu0 0
        %1796 = vmatpush1.bf16.msra.mxu0 0
        %1797 = vmatprep.subr.bf16.mxu0 0
        %1798 = vmatpush1.bf16.msra.mxu0 0
        %1799 = vmatprep.subr.bf16.mxu0 0
        %1800 = vmatpush1.bf16.msra.mxu0 0
        %1801 = vmatprep.subr.bf16.mxu0 0
        %1802 = vmatpush1.bf16.msra.mxu0 0
        %1803 = vmatprep.subr.bf16.mxu0 0
        %1804 = vmatpush1.bf16.msra.mxu0 0
        %1805 = vmatprep.subr.bf16.mxu0 0
        %1806 = vmatpush1.bf16.msra.mxu0 0
        %1807 = vmatprep.subr.bf16.mxu0 0
        %1808 = vmatpush1.bf16.msra.mxu0 0
        %1809 = vmatprep.subr.bf16.mxu0 0
        %1810 = vmatpush1.bf16.msra.mxu0 0
        %1811 = vmatprep.subr.bf16.mxu0 0
        %1812 = vmatpush1.bf16.msra.mxu0 0
        %1813 = vmatprep.mubr.bf16.mxu0 0
        %1814 = vmatmul.mubr.bf16.gmra.mrb[0].mxu0 %v1779
        %v1815 = vpop.f32.mrb[0].mxu0
        %v1816 = vadd.f32 0.0, %v1815
        %v1817 = vpop.f32.mrb[0].mxu0
        %v1818 = vpop.f32.mrb[0].mxu0
        %v1819 = vadd.f32 0.0, %v1818
        %v1820 = vpop.f32.mrb[0].mxu0
        %1821 = vdwg.mxu0
        %v1824 = vunpack.c.l.b16 %v465
        %v1825 = vunpack.c.l.b16 %v466
        %v1826 = vpack.c.b16 %v1825, %v1824
        %v1828 = vsel %vm1386, %v1361, 0
        %1830 = vmatprep.subr.bf16.mxu0 0
        %1831 = vmatpush1.bf16.msra.mxu0 %v1826
        %1832 = vmatprep.subr.bf16.mxu0 0
        %1833 = vmatpush1.bf16.msra.mxu0 0
        %1834 = vmatprep.subr.bf16.mxu0 0
        %1835 = vmatpush1.bf16.msra.mxu0 0
        %1836 = vmatprep.subr.bf16.mxu0 0
        %1837 = vmatpush1.bf16.msra.mxu0 0
        %1838 = vmatprep.subr.bf16.mxu0 0
        %1839 = vmatpush1.bf16.msra.mxu0 0
        %1840 = vmatprep.subr.bf16.mxu0 0
        %1841 = vmatpush1.bf16.msra.mxu0 0
        %1842 = vmatprep.subr.bf16.mxu0 0
        %1843 = vmatpush1.bf16.msra.mxu0 0
        %1844 = vmatprep.subr.bf16.mxu0 0
        %1845 = vmatpush1.bf16.msra.mxu0 0
        %1846 = vmatprep.subr.bf16.mxu0 0
        %1847 = vmatpush1.bf16.msra.mxu0 0
        %1848 = vmatprep.subr.bf16.mxu0 0
        %1849 = vmatpush1.bf16.msra.mxu0 0
        %1850 = vmatprep.subr.bf16.mxu0 0
        %1851 = vmatpush1.bf16.msra.mxu0 0
        %1852 = vmatprep.subr.bf16.mxu0 0
        %1853 = vmatpush1.bf16.msra.mxu0 0
        %1854 = vmatprep.subr.bf16.mxu0 0
        %1855 = vmatpush1.bf16.msra.mxu0 0
        %1856 = vmatprep.subr.bf16.mxu0 0
        %1857 = vmatpush1.bf16.msra.mxu0 0
        %1858 = vmatprep.subr.bf16.mxu0 0
        %1859 = vmatpush1.bf16.msra.mxu0 0
        %1860 = vmatprep.subr.bf16.mxu0 0
        %1861 = vmatpush1.bf16.msra.mxu0 0
        %1862 = vmatprep.mubr.bf16.mxu0 0
        %1863 = vmatmul.mubr.bf16.gmra.mrb[0].mxu0 %v1828
        %v1864 = vpop.f32.mrb[0].mxu0
        %v1865 = vadd.f32 0.0, %v1864
        %v1866 = vpop.f32.mrb[0].mxu0
        %v1867 = vpop.f32.mrb[0].mxu0
        %v1868 = vadd.f32 0.0, %v1867
        %v1869 = vpop.f32.mrb[0].mxu0
        %1870 = vdwg.mxu0
        %v1873 = vunpack.c.l.b16 %v467
        %v1874 = vunpack.c.l.b16 %v468
        %v1875 = vpack.c.b16 %v1874, %v1873
        %v1877 = vsel %vm1386, %v1364, 0
        %1879 = vmatprep.subr.bf16.mxu0 0
        %1880 = vmatpush1.bf16.msra.mxu0 %v1875
        %1881 = vmatprep.subr.bf16.mxu0 0
        %1882 = vmatpush1.bf16.msra.mxu0 0
        %1883 = vmatprep.subr.bf16.mxu0 0
        %1884 = vmatpush1.bf16.msra.mxu0 0
        %1885 = vmatprep.subr.bf16.mxu0 0
        %1886 = vmatpush1.bf16.msra.mxu0 0
        %1887 = vmatprep.subr.bf16.mxu0 0
        %1888 = vmatpush1.bf16.msra.mxu0 0
        %1889 = vmatprep.subr.bf16.mxu0 0
        %1890 = vmatpush1.bf16.msra.mxu0 0
        %1891 = vmatprep.subr.bf16.mxu0 0
        %1892 = vmatpush1.bf16.msra.mxu0 0
        %1893 = vmatprep.subr.bf16.mxu0 0
        %1894 = vmatpush1.bf16.msra.mxu0 0
        %1895 = vmatprep.subr.bf16.mxu0 0
        %1896 = vmatpush1.bf16.msra.mxu0 0
        %1897 = vmatprep.subr.bf16.mxu0 0
        %1898 = vmatpush1.bf16.msra.mxu0 0
        %1899 = vmatprep.subr.bf16.mxu0 0
        %1900 = vmatpush1.bf16.msra.mxu0 0
        %1901 = vmatprep.subr.bf16.mxu0 0
        %1902 = vmatpush1.bf16.msra.mxu0 0
        %1903 = vmatprep.subr.bf16.mxu0 0
        %1904 = vmatpush1.bf16.msra.mxu0 0
        %1905 = vmatprep.subr.bf16.mxu0 0
        %1906 = vmatpush1.bf16.msra.mxu0 0
        %1907 = vmatprep.subr.bf16.mxu0 0
        %1908 = vmatpush1.bf16.msra.mxu0 0
        %1909 = vmatprep.subr.bf16.mxu0 0
        %1910 = vmatpush1.bf16.msra.mxu0 0
        %1911 = vmatprep.mubr.bf16.mxu0 0
        %1912 = vmatmul.mubr.bf16.gmra.mrb[0].mxu0 %v1877
        %v1913 = vpop.f32.mrb[0].mxu0
        %v1914 = vadd.f32 0.0, %v1913
        %v1915 = vpop.f32.mrb[0].mxu0
        %v1916 = vpop.f32.mrb[0].mxu0
        %v1917 = vadd.f32 0.0, %v1916
        %v1918 = vpop.f32.mrb[0].mxu0
        %1919 = vdwg.mxu0
        %v1922 = vunpack.c.l.b16 %v469
        %v1923 = vunpack.c.l.b16 %v470
        %v1924 = vpack.c.b16 %v1923, %v1922
        %v1926 = vsel %vm1386, %v1367, 0
        %1928 = vmatprep.subr.bf16.mxu0 0
        %1929 = vmatpush1.bf16.msra.mxu0 %v1924
        %1930 = vmatprep.subr.bf16.mxu0 0
        %1931 = vmatpush1.bf16.msra.mxu0 0
        %1932 = vmatprep.subr.bf16.mxu0 0
        %1933 = vmatpush1.bf16.msra.mxu0 0
        %1934 = vmatprep.subr.bf16.mxu0 0
        %1935 = vmatpush1.bf16.msra.mxu0 0
        %1936 = vmatprep.subr.bf16.mxu0 0
        %1937 = vmatpush1.bf16.msra.mxu0 0
        %1938 = vmatprep.subr.bf16.mxu0 0
        %1939 = vmatpush1.bf16.msra.mxu0 0
        %1940 = vmatprep.subr.bf16.mxu0 0
        %1941 = vmatpush1.bf16.msra.mxu0 0
        %1942 = vmatprep.subr.bf16.mxu0 0
        %1943 = vmatpush1.bf16.msra.mxu0 0
        %1944 = vmatprep.subr.bf16.mxu0 0
        %1945 = vmatpush1.bf16.msra.mxu0 0
        %1946 = vmatprep.subr.bf16.mxu0 0
        %1947 = vmatpush1.bf16.msra.mxu0 0
        %1948 = vmatprep.subr.bf16.mxu0 0
        %1949 = vmatpush1.bf16.msra.mxu0 0
        %1950 = vmatprep.subr.bf16.mxu0 0
        %1951 = vmatpush1.bf16.msra.mxu0 0
        %1952 = vmatprep.subr.bf16.mxu0 0
        %1953 = vmatpush1.bf16.msra.mxu0 0
        %1954 = vmatprep.subr.bf16.mxu0 0
        %1955 = vmatpush1.bf16.msra.mxu0 0
        %1956 = vmatprep.subr.bf16.mxu0 0
        %1957 = vmatpush1.bf16.msra.mxu0 0
        %1958 = vmatprep.subr.bf16.mxu0 0
        %1959 = vmatpush1.bf16.msra.mxu0 0
        %1960 = vmatprep.mubr.bf16.mxu0 0
        %1961 = vmatmul.mubr.bf16.gmra.mrb[0].mxu0 %v1926
        %v1962 = vpop.f32.mrb[0].mxu0
        %v1963 = vadd.f32 0.0, %v1962
        %v1964 = vpop.f32.mrb[0].mxu0
        %v1965 = vpop.f32.mrb[0].mxu0
        %v1966 = vadd.f32 0.0, %v1965
        %v1967 = vpop.f32.mrb[0].mxu0
        %1968 = vdwg.mxu0
        %v1971 = vunpack.c.l.b16 %v471
        %v1972 = vunpack.c.l.b16 %v472
        %v1973 = vpack.c.b16 %v1972, %v1971
        %v1975 = vsel %vm1386, %v1370, 0
        %1977 = vmatprep.subr.bf16.mxu0 0
        %1978 = vmatpush1.bf16.msra.mxu0 %v1973
        %1979 = vmatprep.subr.bf16.mxu0 0
        %1980 = vmatpush1.bf16.msra.mxu0 0
        %1981 = vmatprep.subr.bf16.mxu0 0
        %1982 = vmatpush1.bf16.msra.mxu0 0
        %1983 = vmatprep.subr.bf16.mxu0 0
        %1984 = vmatpush1.bf16.msra.mxu0 0
        %1985 = vmatprep.subr.bf16.mxu0 0
        %1986 = vmatpush1.bf16.msra.mxu0 0
        %1987 = vmatprep.subr.bf16.mxu0 0
        %1988 = vmatpush1.bf16.msra.mxu0 0
        %1989 = vmatprep.subr.bf16.mxu0 0
        %1990 = vmatpush1.bf16.msra.mxu0 0
        %1991 = vmatprep.subr.bf16.mxu0 0
        %1992 = vmatpush1.bf16.msra.mxu0 0
        %1993 = vmatprep.subr.bf16.mxu0 0
        %1994 = vmatpush1.bf16.msra.mxu0 0
        %1995 = vmatprep.subr.bf16.mxu0 0
        %1996 = vmatpush1.bf16.msra.mxu0 0
        %1997 = vmatprep.subr.bf16.mxu0 0
        %1998 = vmatpush1.bf16.msra.mxu0 0
        %1999 = vmatprep.subr.bf16.mxu0 0
        %2000 = vmatpush1.bf16.msra.mxu0 0
        %2001 = vmatprep.subr.bf16.mxu0 0
        %2002 = vmatpush1.bf16.msra.mxu0 0
        %2003 = vmatprep.subr.bf16.mxu0 0
        %2004 = vmatpush1.bf16.msra.mxu0 0
        %2005 = vmatprep.subr.bf16.mxu0 0
        %2006 = vmatpush1.bf16.msra.mxu0 0
        %2007 = vmatprep.subr.bf16.mxu0 0
        %2008 = vmatpush1.bf16.msra.mxu0 0
        %2009 = vmatprep.mubr.bf16.mxu0 0
        %2010 = vmatmul.mubr.bf16.gmra.mrb[0].mxu0 %v1975
        %v2011 = vpop.f32.mrb[0].mxu0
        %v2012 = vadd.f32 0.0, %v2011
        %v2013 = vpop.f32.mrb[0].mxu0
        %v2014 = vpop.f32.mrb[0].mxu0
        %v2015 = vadd.f32 0.0, %v2014
        %v2016 = vpop.f32.mrb[0].mxu0
        %2017 = vdwg.mxu0
        %v2020 = vunpack.c.l.b16 %v473
        %v2021 = vunpack.c.l.b16 %v474
        %v2022 = vpack.c.b16 %v2021, %v2020
        %v2024 = vsel %vm1386, %v1373, 0
        %2026 = vmatprep.subr.bf16.mxu0 0
        %2027 = vmatpush1.bf16.msra.mxu0 %v2022
        %2028 = vmatprep.subr.bf16.mxu0 0
        %2029 = vmatpush1.bf16.msra.mxu0 0
        %2030 = vmatprep.subr.bf16.mxu0 0
        %2031 = vmatpush1.bf16.msra.mxu0 0
        %2032 = vmatprep.subr.bf16.mxu0 0
        %2033 = vmatpush1.bf16.msra.mxu0 0
        %2034 = vmatprep.subr.bf16.mxu0 0
        %2035 = vmatpush1.bf16.msra.mxu0 0
        %2036 = vmatprep.subr.bf16.mxu0 0
        %2037 = vmatpush1.bf16.msra.mxu0 0
        %2038 = vmatprep.subr.bf16.mxu0 0
        %2039 = vmatpush1.bf16.msra.mxu0 0
        %2040 = vmatprep.subr.bf16.mxu0 0
        %2041 = vmatpush1.bf16.msra.mxu0 0
        %2042 = vmatprep.subr.bf16.mxu0 0
        %2043 = vmatpush1.bf16.msra.mxu0 0
        %2044 = vmatprep.subr.bf16.mxu0 0
        %2045 = vmatpush1.bf16.msra.mxu0 0
        %2046 = vmatprep.subr.bf16.mxu0 0
        %2047 = vmatpush1.bf16.msra.mxu0 0
        %2048 = vmatprep.subr.bf16.mxu0 0
        %2049 = vmatpush1.bf16.msra.mxu0 0
        %2050 = vmatprep.subr.bf16.mxu0 0
        %2051 = vmatpush1.bf16.msra.mxu0 0
        %2052 = vmatprep.subr.bf16.mxu0 0
        %2053 = vmatpush1.bf16.msra.mxu0 0
        %2054 = vmatprep.subr.bf16.mxu0 0
        %2055 = vmatpush1.bf16.msra.mxu0 0
        %2056 = vmatprep.subr.bf16.mxu0 0
        %2057 = vmatpush1.bf16.msra.mxu0 0
        %2058 = vmatprep.mubr.bf16.mxu0 0
        %2059 = vmatmul.mubr.bf16.gmra.mrb[0].mxu0 %v2024
        %v2060 = vpop.f32.mrb[0].mxu0
        %v2061 = vadd.f32 0.0, %v2060
        %v2062 = vpop.f32.mrb[0].mxu0
        %v2063 = vpop.f32.mrb[0].mxu0
        %v2064 = vadd.f32 0.0, %v2063
        %v2065 = vpop.f32.mrb[0].mxu0
        %2066 = vdwg.mxu0
        %v2069 = vunpack.c.l.b16 %v475
        %v2070 = vunpack.c.l.b16 %v476
        %v2071 = vpack.c.b16 %v2070, %v2069
        %v2073 = vsel %vm1386, %v1376, 0
        %2075 = vmatprep.subr.bf16.mxu0 0
        %2076 = vmatpush1.bf16.msra.mxu0 %v2071
        %2077 = vmatprep.subr.bf16.mxu0 0
        %2078 = vmatpush1.bf16.msra.mxu0 0
        %2079 = vmatprep.subr.bf16.mxu0 0
        %2080 = vmatpush1.bf16.msra.mxu0 0
        %2081 = vmatprep.subr.bf16.mxu0 0
        %2082 = vmatpush1.bf16.msra.mxu0 0
        %2083 = vmatprep.subr.bf16.mxu0 0
        %2084 = vmatpush1.bf16.msra.mxu0 0
        %2085 = vmatprep.subr.bf16.mxu0 0
        %2086 = vmatpush1.bf16.msra.mxu0 0
        %2087 = vmatprep.subr.bf16.mxu0 0
        %2088 = vmatpush1.bf16.msra.mxu0 0
        %2089 = vmatprep.subr.bf16.mxu0 0
        %2090 = vmatpush1.bf16.msra.mxu0 0
        %2091 = vmatprep.subr.bf16.mxu0 0
        %2092 = vmatpush1.bf16.msra.mxu0 0
        %2093 = vmatprep.subr.bf16.mxu0 0
        %2094 = vmatpush1.bf16.msra.mxu0 0
        %2095 = vmatprep.subr.bf16.mxu0 0
        %2096 = vmatpush1.bf16.msra.mxu0 0
        %2097 = vmatprep.subr.bf16.mxu0 0
        %2098 = vmatpush1.bf16.msra.mxu0 0
        %2099 = vmatprep.subr.bf16.mxu0 0
        %2100 = vmatpush1.bf16.msra.mxu0 0
        %2101 = vmatprep.subr.bf16.mxu0 0
        %2102 = vmatpush1.bf16.msra.mxu0 0
        %2103 = vmatprep.subr.bf16.mxu0 0
        %2104 = vmatpush1.bf16.msra.mxu0 0
        %2105 = vmatprep.subr.bf16.mxu0 0
        %2106 = vmatpush1.bf16.msra.mxu0 0
        %2107 = vmatprep.mubr.bf16.mxu0 0
        %2108 = vmatmul.mubr.bf16.gmra.mrb[0].mxu0 %v2073
        %v2109 = vpop.f32.mrb[0].mxu0
        %v2110 = vadd.f32 0.0, %v2109
        %v2111 = vpop.f32.mrb[0].mxu0
        %v2112 = vpop.f32.mrb[0].mxu0
        %v2113 = vadd.f32 0.0, %v2112
        %v2114 = vpop.f32.mrb[0].mxu0
        %2115 = vdwg.mxu0
        %v2118 = vunpack.c.l.b16 %v477
        %v2119 = vunpack.c.l.b16 %v478
        %v2120 = vpack.c.b16 %v2119, %v2118
        %v2122 = vsel %vm1386, %v1379, 0
        %2124 = vmatprep.subr.bf16.mxu0 0
        %2125 = vmatpush1.bf16.msra.mxu0 %v2120
        %2126 = vmatprep.subr.bf16.mxu0 0
        %2127 = vmatpush1.bf16.msra.mxu0 0
        %2128 = vmatprep.subr.bf16.mxu0 0
        %2129 = vmatpush1.bf16.msra.mxu0 0
        %2130 = vmatprep.subr.bf16.mxu0 0
        %2131 = vmatpush1.bf16.msra.mxu0 0
        %2132 = vmatprep.subr.bf16.mxu0 0
        %2133 = vmatpush1.bf16.msra.mxu0 0
        %2134 = vmatprep.subr.bf16.mxu0 0
        %2135 = vmatpush1.bf16.msra.mxu0 0
        %2136 = vmatprep.subr.bf16.mxu0 0
        %2137 = vmatpush1.bf16.msra.mxu0 0
        %2138 = vmatprep.subr.bf16.mxu0 0
        %2139 = vmatpush1.bf16.msra.mxu0 0
        %2140 = vmatprep.subr.bf16.mxu0 0
        %2141 = vmatpush1.bf16.msra.mxu0 0
        %2142 = vmatprep.subr.bf16.mxu0 0
        %2143 = vmatpush1.bf16.msra.mxu0 0
        %2144 = vmatprep.subr.bf16.mxu0 0
        %2145 = vmatpush1.bf16.msra.mxu0 0
        %2146 = vmatprep.subr.bf16.mxu0 0
        %2147 = vmatpush1.bf16.msra.mxu0 0
        %2148 = vmatprep.subr.bf16.mxu0 0
        %2149 = vmatpush1.bf16.msra.mxu0 0
        %2150 = vmatprep.subr.bf16.mxu0 0
        %2151 = vmatpush1.bf16.msra.mxu0 0
        %2152 = vmatprep.subr.bf16.mxu0 0
        %2153 = vmatpush1.bf16.msra.mxu0 0
        %2154 = vmatprep.subr.bf16.mxu0 0
        %2155 = vmatpush1.bf16.msra.mxu0 0
        %2156 = vmatprep.mubr.bf16.mxu0 0
        %2157 = vmatmul.mubr.bf16.gmra.mrb[0].mxu0 %v2122
        %v2158 = vpop.f32.mrb[0].mxu0
        %v2159 = vadd.f32 0.0, %v2158
        %v2160 = vpop.f32.mrb[0].mxu0
        %v2161 = vpop.f32.mrb[0].mxu0
        %v2162 = vadd.f32 0.0, %v2161
        %v2163 = vpop.f32.mrb[0].mxu0
        %2164 = vdwg.mxu0
        %v2165 = vpack.c.bf16 %v1427, %v1424
        %v2166 = vpack.c.bf16 %v1476, %v1473
        %v2167 = vpack.c.bf16 %v1525, %v1522
        %v2168 = vpack.c.bf16 %v1574, %v1571
        %v2169 = vpack.c.bf16 %v1623, %v1620
        %v2170 = vpack.c.bf16 %v1672, %v1669
        %v2171 = vpack.c.bf16 %v1721, %v1718
        %v2172 = vpack.c.bf16 %v1770, %v1767
        %v2173 = vpack.c.bf16 %v1819, %v1816
        %v2174 = vpack.c.bf16 %v1868, %v1865
        %v2175 = vpack.c.bf16 %v1917, %v1914
        %v2176 = vpack.c.bf16 %v1966, %v1963
        %v2177 = vpack.c.bf16 %v2015, %v2012
        %v2178 = vpack.c.bf16 %v2064, %v2061
        %v2179 = vpack.c.bf16 %v2113, %v2110
        %v2180 = vpack.c.bf16 %v2162, %v2159
        %v2213 = vunpack.c.l.b16 %v511
        %v2214 = vunpack.c.h.b16 %v511
        %v2215 = vunpack.c.l.b16 %v512
        %v2216 = vunpack.c.h.b16 %v512
        %v2217 = vunpack.c.l.b16 %v513
        %v2218 = vunpack.c.h.b16 %v513
        %v2219 = vunpack.c.l.b16 %v514
        %v2220 = vunpack.c.h.b16 %v514
        %v2221 = vunpack.c.l.b16 %v515
        %v2222 = vunpack.c.h.b16 %v515
        %v2223 = vunpack.c.l.b16 %v516
        %v2224 = vunpack.c.h.b16 %v516
        %v2225 = vunpack.c.l.b16 %v517
        %v2226 = vunpack.c.h.b16 %v517
        %v2227 = vunpack.c.l.b16 %v518
        %v2228 = vunpack.c.h.b16 %v518
        %v2229 = vunpack.c.l.b16 %v519
        %v2230 = vunpack.c.h.b16 %v519
        %v2231 = vunpack.c.l.b16 %v520
        %v2232 = vunpack.c.h.b16 %v520
        %v2233 = vunpack.c.l.b16 %v521
        %v2234 = vunpack.c.h.b16 %v521
        %v2235 = vunpack.c.l.b16 %v522
        %v2236 = vunpack.c.h.b16 %v522
        %v2237 = vunpack.c.l.b16 %v523
        %v2238 = vunpack.c.h.b16 %v523
        %v2239 = vunpack.c.l.b16 %v524
        %v2240 = vunpack.c.h.b16 %v524
        %v2241 = vunpack.c.l.b16 %v525
        %v2242 = vunpack.c.h.b16 %v525
        %v2243 = vunpack.c.l.b16 %v526
        %v2244 = vunpack.c.h.b16 %v526
        %v2245 = vunpack.c.l.b16 %v527
        %v2246 = vunpack.c.h.b16 %v527
        %v2247 = vunpack.c.l.b16 %v528
        %v2248 = vunpack.c.h.b16 %v528
        %v2249 = vunpack.c.l.b16 %v529
        %v2250 = vunpack.c.h.b16 %v529
        %v2251 = vunpack.c.l.b16 %v530
        %v2252 = vunpack.c.h.b16 %v530
        %v2253 = vunpack.c.l.b16 %v531
        %v2254 = vunpack.c.h.b16 %v531
        %v2255 = vunpack.c.l.b16 %v532
        %v2256 = vunpack.c.h.b16 %v532
        %v2257 = vunpack.c.l.b16 %v533
        %v2258 = vunpack.c.h.b16 %v533
        %v2259 = vunpack.c.l.b16 %v534
        %v2260 = vunpack.c.h.b16 %v534
        %v2261 = vunpack.c.l.b16 %v535
        %v2262 = vunpack.c.h.b16 %v535
        %v2263 = vunpack.c.l.b16 %v536
        %v2264 = vunpack.c.h.b16 %v536
        %v2265 = vunpack.c.l.b16 %v537
        %v2266 = vunpack.c.h.b16 %v537
        %v2267 = vunpack.c.l.b16 %v538
        %v2268 = vunpack.c.h.b16 %v538
        %v2269 = vunpack.c.l.b16 %v539
        %v2270 = vunpack.c.h.b16 %v539
        %v2271 = vunpack.c.l.b16 %v540
        %v2272 = vunpack.c.h.b16 %v540
        %v2273 = vunpack.c.l.b16 %v541
        %v2274 = vunpack.c.h.b16 %v541
        %v2275 = vunpack.c.l.b16 %v542
        %v2276 = vunpack.c.h.b16 %v542
        %v2277 = vpack.c.b16 %v2215, %v2213
        %v2278 = vpack.c.b16 %v2216, %v2214
        %v2279 = vpack.c.b16 %v2219, %v2217
        %v2280 = vpack.c.b16 %v2220, %v2218
        %v2281 = vpack.c.b16 %v2223, %v2221
        %v2282 = vpack.c.b16 %v2224, %v2222
        %v2283 = vpack.c.b16 %v2227, %v2225
        %v2284 = vpack.c.b16 %v2228, %v2226
        %v2285 = vpack.c.b16 %v2231, %v2229
        %v2286 = vpack.c.b16 %v2232, %v2230
        %v2287 = vpack.c.b16 %v2235, %v2233
        %v2288 = vpack.c.b16 %v2236, %v2234
        %v2289 = vpack.c.b16 %v2239, %v2237
        %v2290 = vpack.c.b16 %v2240, %v2238
        %v2291 = vpack.c.b16 %v2243, %v2241
        %v2292 = vpack.c.b16 %v2244, %v2242
        %v2293 = vpack.c.b16 %v2247, %v2245
        %v2294 = vpack.c.b16 %v2248, %v2246
        %v2295 = vpack.c.b16 %v2251, %v2249
        %v2296 = vpack.c.b16 %v2252, %v2250
        %v2297 = vpack.c.b16 %v2255, %v2253
        %v2298 = vpack.c.b16 %v2256, %v2254
        %v2299 = vpack.c.b16 %v2259, %v2257
        %v2300 = vpack.c.b16 %v2260, %v2258
        %v2301 = vpack.c.b16 %v2263, %v2261
        %v2302 = vpack.c.b16 %v2264, %v2262
        %v2303 = vpack.c.b16 %v2267, %v2265
        %v2304 = vpack.c.b16 %v2268, %v2266
        %v2305 = vpack.c.b16 %v2271, %v2269
        %v2306 = vpack.c.b16 %v2272, %v2270
        %v2307 = vpack.c.b16 %v2275, %v2273
        %v2308 = vpack.c.b16 %v2276, %v2274
        %2357 = vrot.lane.b32.xlu0 %v2165, 120
        %v2358 = vpop.permute.xlu0 %2357
        %2359 = vrot.lane.b32.xlu0 %v2166, 120
        %v2360 = vpop.permute.xlu0 %2359
        %2361 = vrot.lane.b32.xlu0 %v2167, 120
        %v2362 = vpop.permute.xlu0 %2361
        %2363 = vrot.lane.b32.xlu0 %v2168, 120
        %v2364 = vpop.permute.xlu0 %2363
        %2365 = vrot.lane.b32.xlu0 %v2169, 120
        %v2366 = vpop.permute.xlu0 %2365
        %2367 = vrot.lane.b32.xlu0 %v2170, 120
        %v2368 = vpop.permute.xlu0 %2367
        %2369 = vrot.lane.b32.xlu0 %v2171, 120
        %v2370 = vpop.permute.xlu0 %2369
        %2371 = vrot.lane.b32.xlu0 %v2172, 120
        %v2372 = vpop.permute.xlu0 %2371
        %2373 = vrot.lane.b32.xlu0 %v2173, 120
        %v2374 = vpop.permute.xlu0 %2373
        %2375 = vrot.lane.b32.xlu0 %v2174, 120
        %v2376 = vpop.permute.xlu0 %2375
        %2377 = vrot.lane.b32.xlu0 %v2175, 120
        %v2378 = vpop.permute.xlu0 %2377
        %2379 = vrot.lane.b32.xlu0 %v2176, 120
        %v2380 = vpop.permute.xlu0 %2379
        %2381 = vrot.lane.b32.xlu0 %v2177, 120
        %v2382 = vpop.permute.xlu0 %2381
        %2383 = vrot.lane.b32.xlu0 %v2178, 120
        %v2384 = vpop.permute.xlu0 %2383
        %2385 = vrot.lane.b32.xlu0 %v2179, 120
        %v2386 = vpop.permute.xlu0 %2385
        %2387 = vrot.lane.b32.xlu0 %v2180, 120
        %v2388 = vpop.permute.xlu0 %2387
        %2405 = vmatprep.subr.bf16.mxu0 0
        %2406 = vmatpush1.bf16.msra.mxu0 %v2358
        %2407 = vmatprep.subr.bf16.mxu0 0
        %2408 = vmatpush1.bf16.msra.mxu0 %v2360
        %2409 = vmatprep.subr.bf16.mxu0 0
        %2410 = vmatpush1.bf16.msra.mxu0 %v2362
        %2411 = vmatprep.subr.bf16.mxu0 0
        %2412 = vmatpush1.bf16.msra.mxu0 %v2364
        %2413 = vmatprep.subr.bf16.mxu0 0
        %2414 = vmatpush1.bf16.msra.mxu0 %v2366
        %2415 = vmatprep.subr.bf16.mxu0 0
        %2416 = vmatpush1.bf16.msra.mxu0 %v2368
        %2417 = vmatprep.subr.bf16.mxu0 0
        %2418 = vmatpush1.bf16.msra.mxu0 %v2370
        %2419 = vmatprep.subr.bf16.mxu0 0
        %2420 = vmatpush1.bf16.msra.mxu0 %v2372
        %2421 = vmatprep.subr.bf16.mxu0 0
        %2422 = vmatpush1.bf16.msra.mxu0 %v2374
        %2423 = vmatprep.subr.bf16.mxu0 0
        %2424 = vmatpush1.bf16.msra.mxu0 %v2376
        %2425 = vmatprep.subr.bf16.mxu0 0
        %2426 = vmatpush1.bf16.msra.mxu0 %v2378
        %2427 = vmatprep.subr.bf16.mxu0 0
        %2428 = vmatpush1.bf16.msra.mxu0 %v2380
        %2429 = vmatprep.subr.bf16.mxu0 0
        %2430 = vmatpush1.bf16.msra.mxu0 %v2382
        %2431 = vmatprep.subr.bf16.mxu0 0
        %2432 = vmatpush1.bf16.msra.mxu0 %v2384
        %2433 = vmatprep.subr.bf16.mxu0 0
        %2434 = vmatpush1.bf16.msra.mxu0 %v2386
        %2435 = vmatprep.subr.bf16.mxu0 0
        %2436 = vmatpush1.bf16.msra.mxu0 %v2388
        %2437 = vmatprep.mubr.bf16.mxu0 %v2278
        %2438 = vmatmul.mubr.bf16.gmra.mrb[0].mxu0 %v2277
        %v2439 = vpop.f32.mrb[0].mxu0
        %v2440 = vadd.f32 0.0, %v2439
        %v2441 = vpop.f32.mrb[0].mxu0
        %v2442 = vpop.f32.mrb[0].mxu0
        %v2443 = vadd.f32 0.0, %v2442
        %v2444 = vpop.f32.mrb[0].mxu0
        %2445 = vmatprep.mubr.bf16.mxu0 %v2280
        %2446 = vmatmul.mubr.bf16.gmra.mrb[0].mxu0 %v2279
        %v2447 = vpop.f32.mrb[0].mxu0
        %v2448 = vadd.f32 0.0, %v2447
        %v2449 = vpop.f32.mrb[0].mxu0
        %v2450 = vpop.f32.mrb[0].mxu0
        %v2451 = vadd.f32 0.0, %v2450
        %v2452 = vpop.f32.mrb[0].mxu0
        %2453 = vmatprep.mubr.bf16.mxu0 %v2282
        %2454 = vmatmul.mubr.bf16.gmra.mrb[0].mxu0 %v2281
        %v2455 = vpop.f32.mrb[0].mxu0
        %v2456 = vadd.f32 0.0, %v2455
        %v2457 = vpop.f32.mrb[0].mxu0
        %v2458 = vpop.f32.mrb[0].mxu0
        %v2459 = vadd.f32 0.0, %v2458
        %v2460 = vpop.f32.mrb[0].mxu0
        %2461 = vmatprep.mubr.bf16.mxu0 %v2284
        %2462 = vmatmul.mubr.bf16.gmra.mrb[0].mxu0 %v2283
        %v2463 = vpop.f32.mrb[0].mxu0
        %v2464 = vadd.f32 0.0, %v2463
        %v2465 = vpop.f32.mrb[0].mxu0
        %v2466 = vpop.f32.mrb[0].mxu0
        %v2467 = vadd.f32 0.0, %v2466
        %v2468 = vpop.f32.mrb[0].mxu0
        %2469 = vmatprep.mubr.bf16.mxu0 %v2286
        %2470 = vmatmul.mubr.bf16.gmra.mrb[0].mxu0 %v2285
        %v2471 = vpop.f32.mrb[0].mxu0
        %v2472 = vadd.f32 0.0, %v2471
        %v2473 = vpop.f32.mrb[0].mxu0
        %v2474 = vpop.f32.mrb[0].mxu0
        %v2475 = vadd.f32 0.0, %v2474
        %v2476 = vpop.f32.mrb[0].mxu0
        %2477 = vmatprep.mubr.bf16.mxu0 %v2288
        %2478 = vmatmul.mubr.bf16.gmra.mrb[0].mxu0 %v2287
        %v2479 = vpop.f32.mrb[0].mxu0
        %v2480 = vadd.f32 0.0, %v2479
        %v2481 = vpop.f32.mrb[0].mxu0
        %v2482 = vpop.f32.mrb[0].mxu0
        %v2483 = vadd.f32 0.0, %v2482
        %v2484 = vpop.f32.mrb[0].mxu0
        %2485 = vmatprep.mubr.bf16.mxu0 %v2290
        %2486 = vmatmul.mubr.bf16.gmra.mrb[0].mxu0 %v2289
        %v2487 = vpop.f32.mrb[0].mxu0
        %v2488 = vadd.f32 0.0, %v2487
        %v2489 = vpop.f32.mrb[0].mxu0
        %v2490 = vpop.f32.mrb[0].mxu0
        %v2491 = vadd.f32 0.0, %v2490
        %v2492 = vpop.f32.mrb[0].mxu0
        %2493 = vmatprep.mubr.bf16.mxu0 %v2292
        %2494 = vmatmul.mubr.bf16.gmra.mrb[0].mxu0 %v2291
        %v2495 = vpop.f32.mrb[0].mxu0
        %v2496 = vadd.f32 0.0, %v2495
        %v2497 = vpop.f32.mrb[0].mxu0
        %v2498 = vpop.f32.mrb[0].mxu0
        %v2499 = vadd.f32 0.0, %v2498
        %v2500 = vpop.f32.mrb[0].mxu0
        %2501 = vmatprep.mubr.bf16.mxu0 %v2294
        %2502 = vmatmul.mubr.bf16.gmra.mrb[0].mxu0 %v2293
        %v2503 = vpop.f32.mrb[0].mxu0
        %v2504 = vadd.f32 0.0, %v2503
        %v2505 = vpop.f32.mrb[0].mxu0
        %v2506 = vpop.f32.mrb[0].mxu0
        %v2507 = vadd.f32 0.0, %v2506
        %v2508 = vpop.f32.mrb[0].mxu0
        %2509 = vmatprep.mubr.bf16.mxu0 %v2296
        %2510 = vmatmul.mubr.bf16.gmra.mrb[0].mxu0 %v2295
        %v2511 = vpop.f32.mrb[0].mxu0
        %v2512 = vadd.f32 0.0, %v2511
        %v2513 = vpop.f32.mrb[0].mxu0
        %v2514 = vpop.f32.mrb[0].mxu0
        %v2515 = vadd.f32 0.0, %v2514
        %v2516 = vpop.f32.mrb[0].mxu0
        %2517 = vmatprep.mubr.bf16.mxu0 %v2298
        %2518 = vmatmul.mubr.bf16.gmra.mrb[0].mxu0 %v2297
        %v2519 = vpop.f32.mrb[0].mxu0
        %v2520 = vadd.f32 0.0, %v2519
        %v2521 = vpop.f32.mrb[0].mxu0
        %v2522 = vpop.f32.mrb[0].mxu0
        %v2523 = vadd.f32 0.0, %v2522
        %v2524 = vpop.f32.mrb[0].mxu0
        %2525 = vmatprep.mubr.bf16.mxu0 %v2300
        %2526 = vmatmul.mubr.bf16.gmra.mrb[0].mxu0 %v2299
        %v2527 = vpop.f32.mrb[0].mxu0
        %v2528 = vadd.f32 0.0, %v2527
        %v2529 = vpop.f32.mrb[0].mxu0
        %v2530 = vpop.f32.mrb[0].mxu0
        %v2531 = vadd.f32 0.0, %v2530
        %v2532 = vpop.f32.mrb[0].mxu0
        %2533 = vmatprep.mubr.bf16.mxu0 %v2302
        %2534 = vmatmul.mubr.bf16.gmra.mrb[0].mxu0 %v2301
        %v2535 = vpop.f32.mrb[0].mxu0
        %v2536 = vadd.f32 0.0, %v2535
        %v2537 = vpop.f32.mrb[0].mxu0
        %v2538 = vpop.f32.mrb[0].mxu0
        %v2539 = vadd.f32 0.0, %v2538
        %v2540 = vpop.f32.mrb[0].mxu0
        %2541 = vmatprep.mubr.bf16.mxu0 %v2304
        %2542 = vmatmul.mubr.bf16.gmra.mrb[0].mxu0 %v2303
        %v2543 = vpop.f32.mrb[0].mxu0
        %v2544 = vadd.f32 0.0, %v2543
        %v2545 = vpop.f32.mrb[0].mxu0
        %v2546 = vpop.f32.mrb[0].mxu0
        %v2547 = vadd.f32 0.0, %v2546
        %v2548 = vpop.f32.mrb[0].mxu0
        %2549 = vmatprep.mubr.bf16.mxu0 %v2306
        %2550 = vmatmul.mubr.bf16.gmra.mrb[0].mxu0 %v2305
        %v2551 = vpop.f32.mrb[0].mxu0
        %v2552 = vadd.f32 0.0, %v2551
        %v2553 = vpop.f32.mrb[0].mxu0
        %v2554 = vpop.f32.mrb[0].mxu0
        %v2555 = vadd.f32 0.0, %v2554
        %v2556 = vpop.f32.mrb[0].mxu0
        %2557 = vmatprep.mubr.bf16.mxu0 %v2308
        %2558 = vmatmul.mubr.bf16.gmra.mrb[0].mxu0 %v2307
        %v2559 = vpop.f32.mrb[0].mxu0
        %v2560 = vadd.f32 0.0, %v2559
        %v2561 = vpop.f32.mrb[0].mxu0
        %v2562 = vpop.f32.mrb[0].mxu0
        %v2563 = vadd.f32 0.0, %v2562
        %v2564 = vpop.f32.mrb[0].mxu0
        %2565 = vdwg.mxu0
        %v2598 = vunpack.c.l.b16 %v479
        %v2599 = vunpack.c.h.b16 %v479
        %v2600 = vunpack.c.l.b16 %v480
        %v2601 = vunpack.c.h.b16 %v480
        %v2602 = vunpack.c.l.b16 %v481
        %v2603 = vunpack.c.h.b16 %v481
        %v2604 = vunpack.c.l.b16 %v482
        %v2605 = vunpack.c.h.b16 %v482
        %v2606 = vunpack.c.l.b16 %v483
        %v2607 = vunpack.c.h.b16 %v483
        %v2608 = vunpack.c.l.b16 %v484
        %v2609 = vunpack.c.h.b16 %v484
        %v2610 = vunpack.c.l.b16 %v485
        %v2611 = vunpack.c.h.b16 %v485
        %v2612 = vunpack.c.l.b16 %v486
        %v2613 = vunpack.c.h.b16 %v486
        %v2614 = vunpack.c.l.b16 %v487
        %v2615 = vunpack.c.h.b16 %v487
        %v2616 = vunpack.c.l.b16 %v488
        %v2617 = vunpack.c.h.b16 %v488
        %v2618 = vunpack.c.l.b16 %v489
        %v2619 = vunpack.c.h.b16 %v489
        %v2620 = vunpack.c.l.b16 %v490
        %v2621 = vunpack.c.h.b16 %v490
        %v2622 = vunpack.c.l.b16 %v491
        %v2623 = vunpack.c.h.b16 %v491
        %v2624 = vunpack.c.l.b16 %v492
        %v2625 = vunpack.c.h.b16 %v492
        %v2626 = vunpack.c.l.b16 %v493
        %v2627 = vunpack.c.h.b16 %v493
        %v2628 = vunpack.c.l.b16 %v494
        %v2629 = vunpack.c.h.b16 %v494
        %v2630 = vunpack.c.l.b16 %v495
        %v2631 = vunpack.c.h.b16 %v495
        %v2632 = vunpack.c.l.b16 %v496
        %v2633 = vunpack.c.h.b16 %v496
        %v2634 = vunpack.c.l.b16 %v497
        %v2635 = vunpack.c.h.b16 %v497
        %v2636 = vunpack.c.l.b16 %v498
        %v2637 = vunpack.c.h.b16 %v498
        %v2638 = vunpack.c.l.b16 %v499
        %v2639 = vunpack.c.h.b16 %v499
        %v2640 = vunpack.c.l.b16 %v500
        %v2641 = vunpack.c.h.b16 %v500
        %v2642 = vunpack.c.l.b16 %v501
        %v2643 = vunpack.c.h.b16 %v501
        %v2644 = vunpack.c.l.b16 %v502
        %v2645 = vunpack.c.h.b16 %v502
        %v2646 = vunpack.c.l.b16 %v503
        %v2647 = vunpack.c.h.b16 %v503
        %v2648 = vunpack.c.l.b16 %v504
        %v2649 = vunpack.c.h.b16 %v504
        %v2650 = vunpack.c.l.b16 %v505
        %v2651 = vunpack.c.h.b16 %v505
        %v2652 = vunpack.c.l.b16 %v506
        %v2653 = vunpack.c.h.b16 %v506
        %v2654 = vunpack.c.l.b16 %v507
        %v2655 = vunpack.c.h.b16 %v507
        %v2656 = vunpack.c.l.b16 %v508
        %v2657 = vunpack.c.h.b16 %v508
        %v2658 = vunpack.c.l.b16 %v509
        %v2659 = vunpack.c.h.b16 %v509
        %v2660 = vunpack.c.l.b16 %v510
        %v2661 = vunpack.c.h.b16 %v510
        %v2662 = vpack.c.b16 %v2600, %v2598
        %v2663 = vpack.c.b16 %v2601, %v2599
        %v2664 = vpack.c.b16 %v2604, %v2602
        %v2665 = vpack.c.b16 %v2605, %v2603
        %v2666 = vpack.c.b16 %v2608, %v2606
        %v2667 = vpack.c.b16 %v2609, %v2607
        %v2668 = vpack.c.b16 %v2612, %v2610
        %v2669 = vpack.c.b16 %v2613, %v2611
        %v2670 = vpack.c.b16 %v2616, %v2614
        %v2671 = vpack.c.b16 %v2617, %v2615
        %v2672 = vpack.c.b16 %v2620, %v2618
        %v2673 = vpack.c.b16 %v2621, %v2619
        %v2674 = vpack.c.b16 %v2624, %v2622
        %v2675 = vpack.c.b16 %v2625, %v2623
        %v2676 = vpack.c.b16 %v2628, %v2626
        %v2677 = vpack.c.b16 %v2629, %v2627
        %v2678 = vpack.c.b16 %v2632, %v2630
        %v2679 = vpack.c.b16 %v2633, %v2631
        %v2680 = vpack.c.b16 %v2636, %v2634
        %v2681 = vpack.c.b16 %v2637, %v2635
        %v2682 = vpack.c.b16 %v2640, %v2638
        %v2683 = vpack.c.b16 %v2641, %v2639
        %v2684 = vpack.c.b16 %v2644, %v2642
        %v2685 = vpack.c.b16 %v2645, %v2643
        %v2686 = vpack.c.b16 %v2648, %v2646
        %v2687 = vpack.c.b16 %v2649, %v2647
        %v2688 = vpack.c.b16 %v2652, %v2650
        %v2689 = vpack.c.b16 %v2653, %v2651
        %v2690 = vpack.c.b16 %v2656, %v2654
        %v2691 = vpack.c.b16 %v2657, %v2655
        %v2692 = vpack.c.b16 %v2660, %v2658
        %v2693 = vpack.c.b16 %v2661, %v2659
        %2726 = vmatprep.subr.bf16.mxu0 0
        %2727 = vmatpush1.bf16.msra.mxu0 %v2165
        %2728 = vmatprep.subr.bf16.mxu0 0
        %2729 = vmatpush1.bf16.msra.mxu0 %v2166
        %2730 = vmatprep.subr.bf16.mxu0 0
        %2731 = vmatpush1.bf16.msra.mxu0 %v2167
        %2732 = vmatprep.subr.bf16.mxu0 0
        %2733 = vmatpush1.bf16.msra.mxu0 %v2168
        %2734 = vmatprep.subr.bf16.mxu0 0
        %2735 = vmatpush1.bf16.msra.mxu0 %v2169
        %2736 = vmatprep.subr.bf16.mxu0 0
        %2737 = vmatpush1.bf16.msra.mxu0 %v2170
        %2738 = vmatprep.subr.bf16.mxu0 0
        %2739 = vmatpush1.bf16.msra.mxu0 %v2171
        %2740 = vmatprep.subr.bf16.mxu0 0
        %2741 = vmatpush1.bf16.msra.mxu0 %v2172
        %2742 = vmatprep.subr.bf16.mxu0 0
        %2743 = vmatpush1.bf16.msra.mxu0 %v2173
        %2744 = vmatprep.subr.bf16.mxu0 0
        %2745 = vmatpush1.bf16.msra.mxu0 %v2174
        %2746 = vmatprep.subr.bf16.mxu0 0
        %2747 = vmatpush1.bf16.msra.mxu0 %v2175
        %2748 = vmatprep.subr.bf16.mxu0 0
        %2749 = vmatpush1.bf16.msra.mxu0 %v2176
        %2750 = vmatprep.subr.bf16.mxu0 0
        %2751 = vmatpush1.bf16.msra.mxu0 %v2177
        %2752 = vmatprep.subr.bf16.mxu0 0
        %2753 = vmatpush1.bf16.msra.mxu0 %v2178
        %2754 = vmatprep.subr.bf16.mxu0 0
        %2755 = vmatpush1.bf16.msra.mxu0 %v2179
        %2756 = vmatprep.subr.bf16.mxu0 0
        %2757 = vmatpush1.bf16.msra.mxu0 %v2180
        %2758 = vmatprep.mubr.bf16.mxu0 %v2663
        %2759 = vmatmul.mubr.bf16.gmra.mrb[0].mxu0 %v2662
        %v2760 = vpop.f32.mrb[0].mxu0
        %v2761 = vadd.f32 %v2440, %v2760
        %v2762 = vpop.f32.mrb[0].mxu0
        %v2763 = vpop.f32.mrb[0].mxu0
        %v2764 = vadd.f32 %v2443, %v2763
        %v2765 = vpop.f32.mrb[0].mxu0
        %2766 = vmatprep.mubr.bf16.mxu0 %v2665
        %2767 = vmatmul.mubr.bf16.gmra.mrb[0].mxu0 %v2664
        %v2768 = vpop.f32.mrb[0].mxu0
        %v2769 = vadd.f32 %v2448, %v2768
        %v2770 = vpop.f32.mrb[0].mxu0
        %v2771 = vpop.f32.mrb[0].mxu0
        %v2772 = vadd.f32 %v2451, %v2771
        %v2773 = vpop.f32.mrb[0].mxu0
        %2774 = vmatprep.mubr.bf16.mxu0 %v2667
        %2775 = vmatmul.mubr.bf16.gmra.mrb[0].mxu0 %v2666
        %v2776 = vpop.f32.mrb[0].mxu0
        %v2777 = vadd.f32 %v2456, %v2776
        %v2778 = vpop.f32.mrb[0].mxu0
        %v2779 = vpop.f32.mrb[0].mxu0
        %v2780 = vadd.f32 %v2459, %v2779
        %v2781 = vpop.f32.mrb[0].mxu0
        %2782 = vmatprep.mubr.bf16.mxu0 %v2669
        %2783 = vmatmul.mubr.bf16.gmra.mrb[0].mxu0 %v2668
        %v2784 = vpop.f32.mrb[0].mxu0
        %v2785 = vadd.f32 %v2464, %v2784
        %v2786 = vpop.f32.mrb[0].mxu0
        %v2787 = vpop.f32.mrb[0].mxu0
        %v2788 = vadd.f32 %v2467, %v2787
        %v2789 = vpop.f32.mrb[0].mxu0
        %2790 = vmatprep.mubr.bf16.mxu0 %v2671
        %2791 = vmatmul.mubr.bf16.gmra.mrb[0].mxu0 %v2670
        %v2792 = vpop.f32.mrb[0].mxu0
        %v2793 = vadd.f32 %v2472, %v2792
        %v2794 = vpop.f32.mrb[0].mxu0
        %v2795 = vpop.f32.mrb[0].mxu0
        %v2796 = vadd.f32 %v2475, %v2795
        %v2797 = vpop.f32.mrb[0].mxu0
        %2798 = vmatprep.mubr.bf16.mxu0 %v2673
        %2799 = vmatmul.mubr.bf16.gmra.mrb[0].mxu0 %v2672
        %v2800 = vpop.f32.mrb[0].mxu0
        %v2801 = vadd.f32 %v2480, %v2800
        %v2802 = vpop.f32.mrb[0].mxu0
        %v2803 = vpop.f32.mrb[0].mxu0
        %v2804 = vadd.f32 %v2483, %v2803
        %v2805 = vpop.f32.mrb[0].mxu0
        %2806 = vmatprep.mubr.bf16.mxu0 %v2675
        %2807 = vmatmul.mubr.bf16.gmra.mrb[0].mxu0 %v2674
        %v2808 = vpop.f32.mrb[0].mxu0
        %v2809 = vadd.f32 %v2488, %v2808
        %v2810 = vpop.f32.mrb[0].mxu0
        %v2811 = vpop.f32.mrb[0].mxu0
        %v2812 = vadd.f32 %v2491, %v2811
        %v2813 = vpop.f32.mrb[0].mxu0
        %2814 = vmatprep.mubr.bf16.mxu0 %v2677
        %2815 = vmatmul.mubr.bf16.gmra.mrb[0].mxu0 %v2676
        %v2816 = vpop.f32.mrb[0].mxu0
        %v2817 = vadd.f32 %v2496, %v2816
        %v2818 = vpop.f32.mrb[0].mxu0
        %v2819 = vpop.f32.mrb[0].mxu0
        %v2820 = vadd.f32 %v2499, %v2819
        %v2821 = vpop.f32.mrb[0].mxu0
        %2822 = vmatprep.mubr.bf16.mxu0 %v2679
        %2823 = vmatmul.mubr.bf16.gmra.mrb[0].mxu0 %v2678
        %v2824 = vpop.f32.mrb[0].mxu0
        %v2825 = vadd.f32 %v2504, %v2824
        %v2826 = vpop.f32.mrb[0].mxu0
        %v2827 = vpop.f32.mrb[0].mxu0
        %v2828 = vadd.f32 %v2507, %v2827
        %v2829 = vpop.f32.mrb[0].mxu0
        %2830 = vmatprep.mubr.bf16.mxu0 %v2681
        %2831 = vmatmul.mubr.bf16.gmra.mrb[0].mxu0 %v2680
        %v2832 = vpop.f32.mrb[0].mxu0
        %v2833 = vadd.f32 %v2512, %v2832
        %v2834 = vpop.f32.mrb[0].mxu0
        %v2835 = vpop.f32.mrb[0].mxu0
        %v2836 = vadd.f32 %v2515, %v2835
        %v2837 = vpop.f32.mrb[0].mxu0
        %2838 = vmatprep.mubr.bf16.mxu0 %v2683
        %2839 = vmatmul.mubr.bf16.gmra.mrb[0].mxu0 %v2682
        %v2840 = vpop.f32.mrb[0].mxu0
        %v2841 = vadd.f32 %v2520, %v2840
        %v2842 = vpop.f32.mrb[0].mxu0
        %v2843 = vpop.f32.mrb[0].mxu0
        %v2844 = vadd.f32 %v2523, %v2843
        %v2845 = vpop.f32.mrb[0].mxu0
        %2846 = vmatprep.mubr.bf16.mxu0 %v2685
        %2847 = vmatmul.mubr.bf16.gmra.mrb[0].mxu0 %v2684
        %v2848 = vpop.f32.mrb[0].mxu0
        %v2849 = vadd.f32 %v2528, %v2848
        %v2850 = vpop.f32.mrb[0].mxu0
        %v2851 = vpop.f32.mrb[0].mxu0
        %v2852 = vadd.f32 %v2531, %v2851
        %v2853 = vpop.f32.mrb[0].mxu0
        %2854 = vmatprep.mubr.bf16.mxu0 %v2687
        %2855 = vmatmul.mubr.bf16.gmra.mrb[0].mxu0 %v2686
        %v2856 = vpop.f32.mrb[0].mxu0
        %v2857 = vadd.f32 %v2536, %v2856
        %v2858 = vpop.f32.mrb[0].mxu0
        %v2859 = vpop.f32.mrb[0].mxu0
        %v2860 = vadd.f32 %v2539, %v2859
        %v2861 = vpop.f32.mrb[0].mxu0
        %2862 = vmatprep.mubr.bf16.mxu0 %v2689
        %2863 = vmatmul.mubr.bf16.gmra.mrb[0].mxu0 %v2688
        %v2864 = vpop.f32.mrb[0].mxu0
        %v2865 = vadd.f32 %v2544, %v2864
        %v2866 = vpop.f32.mrb[0].mxu0
        %v2867 = vpop.f32.mrb[0].mxu0
        %v2868 = vadd.f32 %v2547, %v2867
        %v2869 = vpop.f32.mrb[0].mxu0
        %2870 = vmatprep.mubr.bf16.mxu0 %v2691
        %2871 = vmatmul.mubr.bf16.gmra.mrb[0].mxu0 %v2690
        %v2872 = vpop.f32.mrb[0].mxu0
        %v2873 = vadd.f32 %v2552, %v2872
        %v2874 = vpop.f32.mrb[0].mxu0
        %v2875 = vpop.f32.mrb[0].mxu0
        %v2876 = vadd.f32 %v2555, %v2875
        %v2877 = vpop.f32.mrb[0].mxu0
        %2878 = vmatprep.mubr.bf16.mxu0 %v2693
        %2879 = vmatmul.mubr.bf16.gmra.mrb[0].mxu0 %v2692
        %v2880 = vpop.f32.mrb[0].mxu0
        %v2881 = vadd.f32 %v2560, %v2880
        %v2882 = vpop.f32.mrb[0].mxu0
        %v2883 = vpop.f32.mrb[0].mxu0
        %v2884 = vadd.f32 %v2563, %v2883
        %v2885 = vpop.f32.mrb[0].mxu0
        %2886 = vdwg.mxu0
        %v2888 = vlaneseq
        %v2889 = vshrl.u32 %v2888, 7
        %v2890 = vsub.s32 0, %v2889
        %v2891 = vrot.slane %v543, %v2890
        %v2893 = vadd.f32 %v2761, %v2891
        %v2894 = vadd.f32 %v2764, %v2891
        %v2895 = vadd.f32 %v2769, %v2891
        %v2896 = vadd.f32 %v2772, %v2891
        %v2897 = vadd.f32 %v2777, %v2891
        %v2898 = vadd.f32 %v2780, %v2891
        %v2899 = vadd.f32 %v2785, %v2891
        %v2900 = vadd.f32 %v2788, %v2891
        %v2901 = vadd.f32 %v2793, %v2891
        %v2902 = vadd.f32 %v2796, %v2891
        %v2903 = vadd.f32 %v2801, %v2891
        %v2904 = vadd.f32 %v2804, %v2891
        %v2905 = vadd.f32 %v2809, %v2891
        %v2906 = vadd.f32 %v2812, %v2891
        %v2907 = vadd.f32 %v2817, %v2891
        %v2908 = vadd.f32 %v2820, %v2891
        %v2909 = vadd.f32 %v2825, %v2891
        %v2910 = vadd.f32 %v2828, %v2891
        %v2911 = vadd.f32 %v2833, %v2891
        %v2912 = vadd.f32 %v2836, %v2891
        %v2913 = vadd.f32 %v2841, %v2891
        %v2914 = vadd.f32 %v2844, %v2891
        %v2915 = vadd.f32 %v2849, %v2891
        %v2916 = vadd.f32 %v2852, %v2891
        %v2917 = vadd.f32 %v2857, %v2891
        %v2918 = vadd.f32 %v2860, %v2891
        %v2919 = vadd.f32 %v2865, %v2891
        %v2920 = vadd.f32 %v2868, %v2891
        %v2921 = vadd.f32 %v2873, %v2891
        %v2922 = vadd.f32 %v2876, %v2891
        %v2923 = vadd.f32 %v2881, %v2891
        %v2924 = vadd.f32 %v2884, %v2891
        %v2926 = vlaneseq
        %v2927 = vshrl.u32 %v2926, 7
        %v2928 = vsub.s32 0, %v2927
        %v2929 = vrot.slane %v545, %v2928
        %v2932 = vsel %vm1331, %v930, 0
        %v2935 = vsel %vm1331, %v931, 0
        %v2938 = vsel %vm1331, %v932, 0
        %v2941 = vsel %vm1331, %v933, 0
        %v2944 = vsel %vm1331, %v934, 0
        %v2947 = vsel %vm1331, %v935, 0
        %v2950 = vsel %vm1331, %v936, 0
        %v2953 = vsel %vm1331, %v937, 0
        %v2956 = vsel %vm1331, %v938, 0
        %v2959 = vsel %vm1331, %v939, 0
        %v2962 = vsel %vm1331, %v940, 0
        %v2965 = vsel %vm1331, %v941, 0
        %v2968 = vsel %vm1331, %v942, 0
        %v2971 = vsel %vm1331, %v943, 0
        %v2974 = vsel %vm1331, %v944, 0
        %v2977 = vsel %vm1331, %v945, 0
        %vm2979 = vcmask 1043456
        %v2981 = vsel %vm2979, %v544, 0
        %2983 = vmatprep.subr.bf16.mxu0 0
        %2984 = vmatpush1.bf16.msra.mxu0 %v2981
        %2985 = vmatprep.subr.bf16.mxu0 0
        %2986 = vmatpush1.bf16.msra.mxu0 0
        %2987 = vmatprep.subr.bf16.mxu0 0
        %2988 = vmatpush1.bf16.msra.mxu0 0
        %2989 = vmatprep.subr.bf16.mxu0 0
        %2990 = vmatpush1.bf16.msra.mxu0 0
        %2991 = vmatprep.subr.bf16.mxu0 0
        %2992 = vmatpush1.bf16.msra.mxu0 0
        %2993 = vmatprep.subr.bf16.mxu0 0
        %2994 = vmatpush1.bf16.msra.mxu0 0
        %2995 = vmatprep.subr.bf16.mxu0 0
        %2996 = vmatpush1.bf16.msra.mxu0 0
        %2997 = vmatprep.subr.bf16.mxu0 0
        %2998 = vmatpush1.bf16.msra.mxu0 0
        %2999 = vmatprep.subr.bf16.mxu0 0
        %3000 = vmatpush1.bf16.msra.mxu0 0
        %3001 = vmatprep.subr.bf16.mxu0 0
        %3002 = vmatpush1.bf16.msra.mxu0 0
        %3003 = vmatprep.subr.bf16.mxu0 0
        %3004 = vmatpush1.bf16.msra.mxu0 0
        %3005 = vmatprep.subr.bf16.mxu0 0
        %3006 = vmatpush1.bf16.msra.mxu0 0
        %3007 = vmatprep.subr.bf16.mxu0 0
        %3008 = vmatpush1.bf16.msra.mxu0 0
        %3009 = vmatprep.subr.bf16.mxu0 0
        %3010 = vmatpush1.bf16.msra.mxu0 0
        %3011 = vmatprep.subr.bf16.mxu0 0
        %3012 = vmatpush1.bf16.msra.mxu0 0
        %3013 = vmatprep.subr.bf16.mxu0 0
        %3014 = vmatpush1.bf16.msra.mxu0 0
        %3015 = vmatprep.mubr.bf16.mxu0 0
        %3016 = vmatmul.mubr.bf16.gmra.mrb[0].mxu0 %v2932
        %v3017 = vpop.f32.mrb[0].mxu0
        %v3018 = vadd.f32 %v2929, %v3017
        %v3019 = vpop.f32.mrb[0].mxu0
        %v3020 = vpop.f32.mrb[0].mxu0
        %v3021 = vadd.f32 %v2929, %v3020
        %v3022 = vpop.f32.mrb[0].mxu0
        %3023 = vmatprep.mubr.bf16.mxu0 0
        %3024 = vmatmul.mubr.bf16.gmra.mrb[0].mxu0 %v2935
        %v3025 = vpop.f32.mrb[0].mxu0
        %v3026 = vadd.f32 %v2929, %v3025
        %v3027 = vpop.f32.mrb[0].mxu0
        %v3028 = vpop.f32.mrb[0].mxu0
        %v3029 = vadd.f32 %v2929, %v3028
        %v3030 = vpop.f32.mrb[0].mxu0
        %3031 = vmatprep.mubr.bf16.mxu0 0
        %3032 = vmatmul.mubr.bf16.gmra.mrb[0].mxu0 %v2938
        %v3033 = vpop.f32.mrb[0].mxu0
        %v3034 = vadd.f32 %v2929, %v3033
        %v3035 = vpop.f32.mrb[0].mxu0
        %v3036 = vpop.f32.mrb[0].mxu0
        %v3037 = vadd.f32 %v2929, %v3036
        %v3038 = vpop.f32.mrb[0].mxu0
        %3039 = vmatprep.mubr.bf16.mxu0 0
        %3040 = vmatmul.mubr.bf16.gmra.mrb[0].mxu0 %v2941
        %v3041 = vpop.f32.mrb[0].mxu0
        %v3042 = vadd.f32 %v2929, %v3041
        %v3043 = vpop.f32.mrb[0].mxu0
        %v3044 = vpop.f32.mrb[0].mxu0
        %v3045 = vadd.f32 %v2929, %v3044
        %v3046 = vpop.f32.mrb[0].mxu0
        %3047 = vmatprep.mubr.bf16.mxu0 0
        %3048 = vmatmul.mubr.bf16.gmra.mrb[0].mxu0 %v2944
        %v3049 = vpop.f32.mrb[0].mxu0
        %v3050 = vadd.f32 %v2929, %v3049
        %v3051 = vpop.f32.mrb[0].mxu0
        %v3052 = vpop.f32.mrb[0].mxu0
        %v3053 = vadd.f32 %v2929, %v3052
        %v3054 = vpop.f32.mrb[0].mxu0
        %3055 = vmatprep.mubr.bf16.mxu0 0
        %3056 = vmatmul.mubr.bf16.gmra.mrb[0].mxu0 %v2947
        %v3057 = vpop.f32.mrb[0].mxu0
        %v3058 = vadd.f32 %v2929, %v3057
        %v3059 = vpop.f32.mrb[0].mxu0
        %v3060 = vpop.f32.mrb[0].mxu0
        %v3061 = vadd.f32 %v2929, %v3060
        %v3062 = vpop.f32.mrb[0].mxu0
        %3063 = vmatprep.mubr.bf16.mxu0 0
        %3064 = vmatmul.mubr.bf16.gmra.mrb[0].mxu0 %v2950
        %v3065 = vpop.f32.mrb[0].mxu0
        %v3066 = vadd.f32 %v2929, %v3065
        %v3067 = vpop.f32.mrb[0].mxu0
        %v3068 = vpop.f32.mrb[0].mxu0
        %v3069 = vadd.f32 %v2929, %v3068
        %v3070 = vpop.f32.mrb[0].mxu0
        %3071 = vmatprep.mubr.bf16.mxu0 0
        %3072 = vmatmul.mubr.bf16.gmra.mrb[0].mxu0 %v2953
        %v3073 = vpop.f32.mrb[0].mxu0
        %v3074 = vadd.f32 %v2929, %v3073
        %v3075 = vpop.f32.mrb[0].mxu0
        %v3076 = vpop.f32.mrb[0].mxu0
        %v3077 = vadd.f32 %v2929, %v3076
        %v3078 = vpop.f32.mrb[0].mxu0
        %3079 = vmatprep.mubr.bf16.mxu0 0
        %3080 = vmatmul.mubr.bf16.gmra.mrb[0].mxu0 %v2956
        %v3081 = vpop.f32.mrb[0].mxu0
        %v3082 = vadd.f32 %v2929, %v3081
        %v3083 = vpop.f32.mrb[0].mxu0
        %v3084 = vpop.f32.mrb[0].mxu0
        %v3085 = vadd.f32 %v2929, %v3084
        %v3086 = vpop.f32.mrb[0].mxu0
        %3087 = vmatprep.mubr.bf16.mxu0 0
        %3088 = vmatmul.mubr.bf16.gmra.mrb[0].mxu0 %v2959
        %v3089 = vpop.f32.mrb[0].mxu0
        %v3090 = vadd.f32 %v2929, %v3089
        %v3091 = vpop.f32.mrb[0].mxu0
        %v3092 = vpop.f32.mrb[0].mxu0
        %v3093 = vadd.f32 %v2929, %v3092
        %v3094 = vpop.f32.mrb[0].mxu0
        %3095 = vmatprep.mubr.bf16.mxu0 0
        %3096 = vmatmul.mubr.bf16.gmra.mrb[0].mxu0 %v2962
        %v3097 = vpop.f32.mrb[0].mxu0
        %v3098 = vadd.f32 %v2929, %v3097
        %v3099 = vpop.f32.mrb[0].mxu0
        %v3100 = vpop.f32.mrb[0].mxu0
        %v3101 = vadd.f32 %v2929, %v3100
        %v3102 = vpop.f32.mrb[0].mxu0
        %3103 = vmatprep.mubr.bf16.mxu0 0
        %3104 = vmatmul.mubr.bf16.gmra.mrb[0].mxu0 %v2965
        %v3105 = vpop.f32.mrb[0].mxu0
        %v3106 = vadd.f32 %v2929, %v3105
        %v3107 = vpop.f32.mrb[0].mxu0
        %v3108 = vpop.f32.mrb[0].mxu0
        %v3109 = vadd.f32 %v2929, %v3108
        %v3110 = vpop.f32.mrb[0].mxu0
        %3111 = vmatprep.mubr.bf16.mxu0 0
        %3112 = vmatmul.mubr.bf16.gmra.mrb[0].mxu0 %v2968
        %v3113 = vpop.f32.mrb[0].mxu0
        %v3114 = vadd.f32 %v2929, %v3113
        %v3115 = vpop.f32.mrb[0].mxu0
        %v3116 = vpop.f32.mrb[0].mxu0
        %v3117 = vadd.f32 %v2929, %v3116
        %v3118 = vpop.f32.mrb[0].mxu0
        %3119 = vmatprep.mubr.bf16.mxu0 0
        %3120 = vmatmul.mubr.bf16.gmra.mrb[0].mxu0 %v2971
        %v3121 = vpop.f32.mrb[0].mxu0
        %v3122 = vadd.f32 %v2929, %v3121
        %v3123 = vpop.f32.mrb[0].mxu0
        %v3124 = vpop.f32.mrb[0].mxu0
        %v3125 = vadd.f32 %v2929, %v3124
        %v3126 = vpop.f32.mrb[0].mxu0
        %3127 = vmatprep.mubr.bf16.mxu0 0
        %3128 = vmatmul.mubr.bf16.gmra.mrb[0].mxu0 %v2974
        %v3129 = vpop.f32.mrb[0].mxu0
        %v3130 = vadd.f32 %v2929, %v3129
        %v3131 = vpop.f32.mrb[0].mxu0
        %v3132 = vpop.f32.mrb[0].mxu0
        %v3133 = vadd.f32 %v2929, %v3132
        %v3134 = vpop.f32.mrb[0].mxu0
        %3135 = vmatprep.mubr.bf16.mxu0 0
        %3136 = vmatmul.mubr.bf16.gmra.mrb[0].mxu0 %v2977
        %v3137 = vpop.f32.mrb[0].mxu0
        %v3138 = vadd.f32 %v2929, %v3137
        %v3139 = vpop.f32.mrb[0].mxu0
        %v3140 = vpop.f32.mrb[0].mxu0
        %v3141 = vadd.f32 %v2929, %v3140
        %v3142 = vpop.f32.mrb[0].mxu0
        %3143 = vdwg.mxu0
        %v3144 = vadd.f32 %v2893, %v3018
        %v3145 = vadd.f32 %v2894, %v3021
        %v3146 = vadd.f32 %v2895, %v3026
        %v3147 = vadd.f32 %v2896, %v3029
        %v3148 = vadd.f32 %v2897, %v3034
        %v3149 = vadd.f32 %v2898, %v3037
        %v3150 = vadd.f32 %v2899, %v3042
        %v3151 = vadd.f32 %v2900, %v3045
        %v3152 = vadd.f32 %v2901, %v3050
        %v3153 = vadd.f32 %v2902, %v3053
        %v3154 = vadd.f32 %v2903, %v3058
        %v3155 = vadd.f32 %v2904, %v3061
        %v3156 = vadd.f32 %v2905, %v3066
        %v3157 = vadd.f32 %v2906, %v3069
        %v3158 = vadd.f32 %v2907, %v3074
        %v3159 = vadd.f32 %v2908, %v3077
        %v3160 = vadd.f32 %v2909, %v3082
        %v3161 = vadd.f32 %v2910, %v3085
        %v3162 = vadd.f32 %v2911, %v3090
        %v3163 = vadd.f32 %v2912, %v3093
        %v3164 = vadd.f32 %v2913, %v3098
        %v3165 = vadd.f32 %v2914, %v3101
        %v3166 = vadd.f32 %v2915, %v3106
        %v3167 = vadd.f32 %v2916, %v3109
        %v3168 = vadd.f32 %v2917, %v3114
        %v3169 = vadd.f32 %v2918, %v3117
        %v3170 = vadd.f32 %v2919, %v3122
        %v3171 = vadd.f32 %v2920, %v3125
        %v3172 = vadd.f32 %v2921, %v3130
        %v3173 = vadd.f32 %v2922, %v3133
        %v3174 = vadd.f32 %v2923, %v3138
        %v3175 = vadd.f32 %v2924, %v3141
        %v3176 = vmul.f32 %v3144, 0.5
        %v3177 = vmul.f32 %v3145, 0.5
        %v3178 = vmul.f32 %v3146, 0.5
        %v3179 = vmul.f32 %v3147, 0.5
        %v3180 = vmul.f32 %v3148, 0.5
        %v3181 = vmul.f32 %v3149, 0.5
        %v3182 = vmul.f32 %v3150, 0.5
        %v3183 = vmul.f32 %v3151, 0.5
        %v3184 = vmul.f32 %v3152, 0.5
        %v3185 = vmul.f32 %v3153, 0.5
        %v3186 = vmul.f32 %v3154, 0.5
        %v3187 = vmul.f32 %v3155, 0.5
        %v3188 = vmul.f32 %v3156, 0.5
        %v3189 = vmul.f32 %v3157, 0.5
        %v3190 = vmul.f32 %v3158, 0.5
        %v3191 = vmul.f32 %v3159, 0.5
        %v3192 = vmul.f32 %v3160, 0.5
        %v3193 = vmul.f32 %v3161, 0.5
        %v3194 = vmul.f32 %v3162, 0.5
        %v3195 = vmul.f32 %v3163, 0.5
        %v3196 = vmul.f32 %v3164, 0.5
        %v3197 = vmul.f32 %v3165, 0.5
        %v3198 = vmul.f32 %v3166, 0.5
        %v3199 = vmul.f32 %v3167, 0.5
        %v3200 = vmul.f32 %v3168, 0.5
        %v3201 = vmul.f32 %v3169, 0.5
        %v3202 = vmul.f32 %v3170, 0.5
        %v3203 = vmul.f32 %v3171, 0.5
        %v3204 = vmul.f32 %v3172, 0.5
        %v3205 = vmul.f32 %v3173, 0.5
        %v3206 = vmul.f32 %v3174, 0.5
        %v3207 = vmul.f32 %v3175, 0.5
        %v3208 = vmul.f32 %v3144, 0.70710677
        %v3209 = vmul.f32 %v3145, 0.70710677
        %v3210 = vmul.f32 %v3146, 0.70710677
        %v3211 = vmul.f32 %v3147, 0.70710677
        %v3212 = vmul.f32 %v3148, 0.70710677
        %v3213 = vmul.f32 %v3149, 0.70710677
        %v3214 = vmul.f32 %v3150, 0.70710677
        %v3215 = vmul.f32 %v3151, 0.70710677
        %v3216 = vmul.f32 %v3152, 0.70710677
        %v3217 = vmul.f32 %v3153, 0.70710677
        %v3218 = vmul.f32 %v3154, 0.70710677
        %v3219 = vmul.f32 %v3155, 0.70710677
        %v3220 = vmul.f32 %v3156, 0.70710677
        %v3221 = vmul.f32 %v3157, 0.70710677
        %v3222 = vmul.f32 %v3158, 0.70710677
        %v3223 = vmul.f32 %v3159, 0.70710677
        %v3224 = vmul.f32 %v3160, 0.70710677
        %v3225 = vmul.f32 %v3161, 0.70710677
        %v3226 = vmul.f32 %v3162, 0.70710677
        %v3227 = vmul.f32 %v3163, 0.70710677
        %v3228 = vmul.f32 %v3164, 0.70710677
        %v3229 = vmul.f32 %v3165, 0.70710677
        %v3230 = vmul.f32 %v3166, 0.70710677
        %v3231 = vmul.f32 %v3167, 0.70710677
        %v3232 = vmul.f32 %v3168, 0.70710677
        %v3233 = vmul.f32 %v3169, 0.70710677
        %v3234 = vmul.f32 %v3170, 0.70710677
        %v3235 = vmul.f32 %v3171, 0.70710677
        %v3236 = vmul.f32 %v3172, 0.70710677
        %v3237 = vmul.f32 %v3173, 0.70710677
        %v3238 = vmul.f32 %v3174, 0.70710677
        %v3239 = vmul.f32 %v3175, 0.70710677
        %v3240 = verf.f32.pop %v3208
        %v3241 = verf.f32.pop %v3209
        %v3242 = verf.f32.pop %v3210
        %v3243 = verf.f32.pop %v3211
        %v3244 = verf.f32.pop %v3212
        %v3245 = verf.f32.pop %v3213
        %v3246 = verf.f32.pop %v3214
        %v3247 = verf.f32.pop %v3215
        %v3248 = verf.f32.pop %v3216
        %v3249 = verf.f32.pop %v3217
        %v3250 = verf.f32.pop %v3218
        %v3251 = verf.f32.pop %v3219
        %v3252 = verf.f32.pop %v3220
        %v3253 = verf.f32.pop %v3221
        %v3254 = verf.f32.pop %v3222
        %v3255 = verf.f32.pop %v3223
        %v3256 = verf.f32.pop %v3224
        %v3257 = verf.f32.pop %v3225
        %v3258 = verf.f32.pop %v3226
        %v3259 = verf.f32.pop %v3227
        %v3260 = verf.f32.pop %v3228
        %v3261 = verf.f32.pop %v3229
        %v3262 = verf.f32.pop %v3230
        %v3263 = verf.f32.pop %v3231
        %v3264 = verf.f32.pop %v3232
        %v3265 = verf.f32.pop %v3233
        %v3266 = verf.f32.pop %v3234
        %v3267 = verf.f32.pop %v3235
        %v3268 = verf.f32.pop %v3236
        %v3269 = verf.f32.pop %v3237
        %v3270 = verf.f32.pop %v3238
        %v3271 = verf.f32.pop %v3239
        %v3272 = vadd.f32 %v3240, 1.0
        %v3273 = vadd.f32 %v3241, 1.0
        %v3274 = vadd.f32 %v3242, 1.0
        %v3275 = vadd.f32 %v3243, 1.0
        %v3276 = vadd.f32 %v3244, 1.0
        %v3277 = vadd.f32 %v3245, 1.0
        %v3278 = vadd.f32 %v3246, 1.0
        %v3279 = vadd.f32 %v3247, 1.0
        %v3280 = vadd.f32 %v3248, 1.0
        %v3281 = vadd.f32 %v3249, 1.0
        %v3282 = vadd.f32 %v3250, 1.0
        %v3283 = vadd.f32 %v3251, 1.0
        %v3284 = vadd.f32 %v3252, 1.0
        %v3285 = vadd.f32 %v3253, 1.0
        %v3286 = vadd.f32 %v3254, 1.0
        %v3287 = vadd.f32 %v3255, 1.0
        %v3288 = vadd.f32 %v3256, 1.0
        %v3289 = vadd.f32 %v3257, 1.0
        %v3290 = vadd.f32 %v3258, 1.0
        %v3291 = vadd.f32 %v3259, 1.0
        %v3292 = vadd.f32 %v3260, 1.0
        %v3293 = vadd.f32 %v3261, 1.0
        %v3294 = vadd.f32 %v3262, 1.0
        %v3295 = vadd.f32 %v3263, 1.0
        %v3296 = vadd.f32 %v3264, 1.0
        %v3297 = vadd.f32 %v3265, 1.0
        %v3298 = vadd.f32 %v3266, 1.0
        %v3299 = vadd.f32 %v3267, 1.0
        %v3300 = vadd.f32 %v3268, 1.0
        %v3301 = vadd.f32 %v3269, 1.0
        %v3302 = vadd.f32 %v3270, 1.0
        %v3303 = vadd.f32 %v3271, 1.0
        %v3304 = vmul.f32 %v3176, %v3272
        %v3305 = vmul.f32 %v3177, %v3273
        %v3306 = vmul.f32 %v3178, %v3274
        %v3307 = vmul.f32 %v3179, %v3275
        %v3308 = vmul.f32 %v3180, %v3276
        %v3309 = vmul.f32 %v3181, %v3277
        %v3310 = vmul.f32 %v3182, %v3278
        %v3311 = vmul.f32 %v3183, %v3279
        %v3312 = vmul.f32 %v3184, %v3280
        %v3313 = vmul.f32 %v3185, %v3281
        %v3314 = vmul.f32 %v3186, %v3282
        %v3315 = vmul.f32 %v3187, %v3283
        %v3316 = vmul.f32 %v3188, %v3284
        %v3317 = vmul.f32 %v3189, %v3285
        %v3318 = vmul.f32 %v3190, %v3286
        %v3319 = vmul.f32 %v3191, %v3287
        %v3320 = vmul.f32 %v3192, %v3288
        %v3321 = vmul.f32 %v3193, %v3289
        %v3322 = vmul.f32 %v3194, %v3290
        %v3323 = vmul.f32 %v3195, %v3291
        %v3324 = vmul.f32 %v3196, %v3292
        %v3325 = vmul.f32 %v3197, %v3293
        %v3326 = vmul.f32 %v3198, %v3294
        %v3327 = vmul.f32 %v3199, %v3295
        %v3328 = vmul.f32 %v3200, %v3296
        %v3329 = vmul.f32 %v3201, %v3297
        %v3330 = vmul.f32 %v3202, %v3298
        %v3331 = vmul.f32 %v3203, %v3299
        %v3332 = vmul.f32 %v3204, %v3300
        %v3333 = vmul.f32 %v3205, %v3301
        %v3334 = vmul.f32 %v3206, %v3302
        %v3335 = vmul.f32 %v3207, %v3303
        %3368 = vrot.lane.b32.xlu0 %v3018, 120
        %v3369 = vpop.permute.xlu0 %3368
        %3370 = vrot.lane.b32.xlu0 %v3021, 120
        %v3371 = vpop.permute.xlu0 %3370
        %3372 = vrot.lane.b32.xlu0 %v3026, 120
        %v3373 = vpop.permute.xlu0 %3372
        %3374 = vrot.lane.b32.xlu0 %v3029, 120
        %v3375 = vpop.permute.xlu0 %3374
        %3376 = vrot.lane.b32.xlu0 %v3034, 120
        %v3377 = vpop.permute.xlu0 %3376
        %3378 = vrot.lane.b32.xlu0 %v3037, 120
        %v3379 = vpop.permute.xlu0 %3378
        %3380 = vrot.lane.b32.xlu0 %v3042, 120
        %v3381 = vpop.permute.xlu0 %3380
        %3382 = vrot.lane.b32.xlu0 %v3045, 120
        %v3383 = vpop.permute.xlu0 %3382
        %3384 = vrot.lane.b32.xlu0 %v3050, 120
        %v3385 = vpop.permute.xlu0 %3384
        %3386 = vrot.lane.b32.xlu0 %v3053, 120
        %v3387 = vpop.permute.xlu0 %3386
        %3388 = vrot.lane.b32.xlu0 %v3058, 120
        %v3389 = vpop.permute.xlu0 %3388
        %3390 = vrot.lane.b32.xlu0 %v3061, 120
        %v3391 = vpop.permute.xlu0 %3390
        %3392 = vrot.lane.b32.xlu0 %v3066, 120
        %v3393 = vpop.permute.xlu0 %3392
        %3394 = vrot.lane.b32.xlu0 %v3069, 120
        %v3395 = vpop.permute.xlu0 %3394
        %3396 = vrot.lane.b32.xlu0 %v3074, 120
        %v3397 = vpop.permute.xlu0 %3396
        %3398 = vrot.lane.b32.xlu0 %v3077, 120
        %v3399 = vpop.permute.xlu0 %3398
        %3400 = vrot.lane.b32.xlu0 %v3082, 120
        %v3401 = vpop.permute.xlu0 %3400
        %3402 = vrot.lane.b32.xlu0 %v3085, 120
        %v3403 = vpop.permute.xlu0 %3402
        %3404 = vrot.lane.b32.xlu0 %v3090, 120
        %v3405 = vpop.permute.xlu0 %3404
        %3406 = vrot.lane.b32.xlu0 %v3093, 120
        %v3407 = vpop.permute.xlu0 %3406
        %3408 = vrot.lane.b32.xlu0 %v3098, 120
        %v3409 = vpop.permute.xlu0 %3408
        %3410 = vrot.lane.b32.xlu0 %v3101, 120
        %v3411 = vpop.permute.xlu0 %3410
        %3412 = vrot.lane.b32.xlu0 %v3106, 120
        %v3413 = vpop.permute.xlu0 %3412
        %3414 = vrot.lane.b32.xlu0 %v3109, 120
        %v3415 = vpop.permute.xlu0 %3414
        %3416 = vrot.lane.b32.xlu0 %v3114, 120
        %v3417 = vpop.permute.xlu0 %3416
        %3418 = vrot.lane.b32.xlu0 %v3117, 120
        %v3419 = vpop.permute.xlu0 %3418
        %3420 = vrot.lane.b32.xlu0 %v3122, 120
        %v3421 = vpop.permute.xlu0 %3420
        %3422 = vrot.lane.b32.xlu0 %v3125, 120
        %v3423 = vpop.permute.xlu0 %3422
        %3424 = vrot.lane.b32.xlu0 %v3130, 120
        %v3425 = vpop.permute.xlu0 %3424
        %3426 = vrot.lane.b32.xlu0 %v3133, 120
        %v3427 = vpop.permute.xlu0 %3426
        %3428 = vrot.lane.b32.xlu0 %v3138, 120
        %v3429 = vpop.permute.xlu0 %3428
        %3430 = vrot.lane.b32.xlu0 %v3141, 120
        %v3431 = vpop.permute.xlu0 %3430
        %v3464 = vadd.f32 %v3304, %v3369
        %v3465 = vadd.f32 %v3305, %v3371
        %v3466 = vadd.f32 %v3306, %v3373
        %v3467 = vadd.f32 %v3307, %v3375
        %v3468 = vadd.f32 %v3308, %v3377
        %v3469 = vadd.f32 %v3309, %v3379
        %v3470 = vadd.f32 %v3310, %v3381
        %v3471 = vadd.f32 %v3311, %v3383
        %v3472 = vadd.f32 %v3312, %v3385
        %v3473 = vadd.f32 %v3313, %v3387
        %v3474 = vadd.f32 %v3314, %v3389
        %v3475 = vadd.f32 %v3315, %v3391
        %v3476 = vadd.f32 %v3316, %v3393
        %v3477 = vadd.f32 %v3317, %v3395
        %v3478 = vadd.f32 %v3318, %v3397
        %v3479 = vadd.f32 %v3319, %v3399
        %v3480 = vadd.f32 %v3320, %v3401
        %v3481 = vadd.f32 %v3321, %v3403
        %v3482 = vadd.f32 %v3322, %v3405
        %v3483 = vadd.f32 %v3323, %v3407
        %v3484 = vadd.f32 %v3324, %v3409
        %v3485 = vadd.f32 %v3325, %v3411
        %v3486 = vadd.f32 %v3326, %v3413
        %v3487 = vadd.f32 %v3327, %v3415
        %v3488 = vadd.f32 %v3328, %v3417
        %v3489 = vadd.f32 %v3329, %v3419
        %v3490 = vadd.f32 %v3330, %v3421
        %v3491 = vadd.f32 %v3331, %v3423
        %v3492 = vadd.f32 %v3332, %v3425
        %v3493 = vadd.f32 %v3333, %v3427
        %v3494 = vadd.f32 %v3334, %v3429
        %v3495 = vadd.f32 %v3335, %v3431
        %3496 = vst.msk [vmem:[%s349] sm:$0xff] %vm1331, %v3464
        %3497 = vst.msk [vmem:[%s349 + $0x8] sm:$0xff] %vm1331, %v3465
        %3498 = vst.msk [vmem:[%s349 + $0x10] sm:$0xff] %vm1331, %v3466
        %3499 = vst.msk [vmem:[%s349 + $0x18] sm:$0xff] %vm1331, %v3467
        %3500 = vst.msk [vmem:[%s349 + $0x20] sm:$0xff] %vm1331, %v3468
        %3501 = vst.msk [vmem:[%s349 + $0x28] sm:$0xff] %vm1331, %v3469
        %3502 = vst.msk [vmem:[%s349 + $0x30] sm:$0xff] %vm1331, %v3470
        %3503 = vst.msk [vmem:[%s349 + $0x38] sm:$0xff] %vm1331, %v3471
        %3504 = vst.msk [vmem:[%s349 + $0x40] sm:$0xff] %vm1331, %v3472
        %3505 = vst.msk [vmem:[%s349 + $0x48] sm:$0xff] %vm1331, %v3473
        %3506 = vst.msk [vmem:[%s349 + $0x50] sm:$0xff] %vm1331, %v3474
        %3507 = vst.msk [vmem:[%s349 + $0x58] sm:$0xff] %vm1331, %v3475
        %3508 = vst.msk [vmem:[%s349 + $0x60] sm:$0xff] %vm1331, %v3476
        %3509 = vst.msk [vmem:[%s349 + $0x68] sm:$0xff] %vm1331, %v3477
        %3510 = vst.msk [vmem:[%s349 + $0x70] sm:$0xff] %vm1331, %v3478
        %3511 = vst.msk [vmem:[%s349 + $0x78] sm:$0xff] %vm1331, %v3479
        %3512 = vst.msk [vmem:[%s349 + $0x80] sm:$0xff] %vm1331, %v3480
        %3513 = vst.msk [vmem:[%s349 + $0x88] sm:$0xff] %vm1331, %v3481
        %3514 = vst.msk [vmem:[%s349 + $0x90] sm:$0xff] %vm1331, %v3482
        %3515 = vst.msk [vmem:[%s349 + $0x98] sm:$0xff] %vm1331, %v3483
        %3516 = vst.msk [vmem:[%s349 + $0xa0] sm:$0xff] %vm1331, %v3484
        %3517 = vst.msk [vmem:[%s349 + $0xa8] sm:$0xff] %vm1331, %v3485
        %3518 = vst.msk [vmem:[%s349 + $0xb0] sm:$0xff] %vm1331, %v3486
        %3519 = vst.msk [vmem:[%s349 + $0xb8] sm:$0xff] %vm1331, %v3487
        %3520 = vst.msk [vmem:[%s349 + $0xc0] sm:$0xff] %vm1331, %v3488
        %3521 = vst.msk [vmem:[%s349 + $0xc8] sm:$0xff] %vm1331, %v3489
        %3522 = vst.msk [vmem:[%s349 + $0xd0] sm:$0xff] %vm1331, %v3490
        %3523 = vst.msk [vmem:[%s349 + $0xd8] sm:$0xff] %vm1331, %v3491
        %3524 = vst.msk [vmem:[%s349 + $0xe0] sm:$0xff] %vm1331, %v3492
        %3525 = vst.msk [vmem:[%s349 + $0xe8] sm:$0xff] %vm1331, %v3493
        %3526 = vst.msk [vmem:[%s349 + $0xf0] sm:$0xff] %vm1331, %v3494
        %3527 = vst.msk [vmem:[%s349 + $0xf8] sm:$0xff] %vm1331, %v3495
        %p3528 = scmp.lt.s32.totalorder %s21, 1
        %s3529 = scalar_select %p3528, %s21, 1
        %s3530 = smul.addr %s3529, 32
        %s3531 = smul.addr %s3530, 8
        %s3532 = scalar_lea.vmem %s8, %s3531
        // Predicated region
        $region65: #{tpu_custom_call.1} parent=51 // pred_check
          %p3533 = pneg %p212
        $region66: #{tpu_custom_call.1} parent=51 // pred_check_branch
          %3535 = sbr.rel (%p3533) target = $region68
        $region67: #{tpu_custom_call.1} parent=51 // pred_region
          _
        $region68: #{tpu_custom_call.1} parent=51 // pred_fallthru
          _
      $region52: #{tpu_custom_call.1} parent=5 // pred_fallthru
        _
      %p3536 = scmp.le.s32.totalorder 2, %s16
      // Predicated region
      $region69: #{tpu_custom_call.1} parent=5 // pred_check
        %p3537 = pneg %p3536
      $region70: #{tpu_custom_call.1} parent=5 // pred_check_branch
        %3539 = sbr.rel (%p3537) target = $region72
      $region71: #{tpu_custom_call.1} parent=5 // pred_region
        %s3540 = ssub.s32 %s16, 2
        // Predicated region
        $region73: #{tpu_custom_call.1} parent=71 // pred_check
          %p3541 = pneg %p218
        $region74: #{tpu_custom_call.1} parent=71 // pred_check_branch
          %3543 = sbr.rel (%p3541) target = $region76
        $region75: #{tpu_custom_call.1} parent=71 // pred_region
          %p3544 = scmp.lt.s32.totalorder %s22, 1
          %s3545 = scalar_select %p3544, %s22, 1
          %s3546 = smul.addr %s3545, 32
          %s3547 = smul.addr %s3546, 8
          %s3548 = scalar_lea.vmem %s8, %s3547
        $region76: #{tpu_custom_call.1} parent=71 // pred_fallthru
          _
      $region72: #{tpu_custom_call.1} parent=5 // pred_fallthru
        _
    $region6: #{tpu_custom_call.1} parent=1 // loop_footer
      %s20 = sadd.s32 1, %s16
    $region7: #{tpu_custom_call.1} parent=1 // loop_footer_branch
      %15 = sbr.rel target = $region3
    $region8: #{tpu_custom_call.1} parent=1 // loop_exit
      _
    %3549 = vsyncpa [#allocation3], 1
    %s3550 = scalar_lea.sflag [#allocation3], 1
    %3551 = vsyncpa %s3550, 1
    %3552 = vsyncpa [#allocation5], 1

</llo_original>
